<compile_context>
chip_gen: v7x
topology: tpu7x:2x2x1
jax: 0.10.0
libtpu: 0.0.40
codegen_flags: <defaults>
</compile_context>

<pallas_src>
import functools

import jax
import jax.numpy as jnp
from jax.experimental import pallas as pl
from jax.experimental.pallas import tpu as pltpu

_VMEM_LIMIT = 32 * 1024 * 1024  # safe scoped-VMEM budget on v5e/v6e/v7x


def _round_up(x, m):
    return ((x + m - 1) // m) * m


# Tap table for a 3x3 / stride-2 / pad-1 conv after space-to-depth.
# Tap t = di*3 + dj reads parity slab S[di%2][dj%2] at row offset di//2 and
# column offset dj//2; slabs are ordered S00, S01, S10, S11.
_TAPS = tuple((di // 2, dj // 2, (di % 2) * 2 + (dj % 2))
              for di in range(3) for dj in range(3))


# ---------------------------------------------------------------------------
# Wrapper-side one-time space-to-depth (the only activation rearrangement).
# ---------------------------------------------------------------------------
def _space_to_depth_slabs(x_nhwc, cp, lp):
    """Pad spatially by 1, split into 4 parity slabs, flatten spatial dims.

    Returns 4 arrays of shape (N, lp, cp) in bf16 (zero padded)."""
    n, h, w, c = x_nhwc.shape
    xb = x_nhwc.astype(jnp.bfloat16)
    xp = jnp.pad(xb, ((0, 0), (1, 1), (1, 1), (0, cp - c)))
    hs, ws = (h + 2) // 2, (w + 2) // 2
    slabs = []
    for a in (0, 1):
        for b in (0, 1):
            s = xp[:, a::2, b::2, :].reshape(n, hs * ws, cp)
            slabs.append(jnp.pad(s, ((0, 0), (0, lp - hs * ws), (0, 0))))
    return slabs


# ---------------------------------------------------------------------------
# Kernel bodies
# ---------------------------------------------------------------------------
def _tap_accumulate(slab_refs, w_ref, taps, ws, m, coutp):
    """Sum of 9 shifted-window MXU dots, accumulated in f32 registers."""
    slabs = tuple(s_ref[0] for s_ref in slab_refs)      # each (lp, cp) bf16
    acc = jnp.zeros((m, coutp), jnp.float32)
    for t, (qi, qj, ab) in enumerate(taps):
        start = qi * ws + qj                             # static Python int
        x_tap = slabs[ab][start:start + m, :]            # (m, cp) bf16, unit stride
        acc = acc + jnp.dot(x_tap, w_ref[t],
                            preferred_element_type=jnp.float32)
    return acc


def _conv_relu_kernel(s00, s01, s10, s11, w_ref, b_ref, o_ref,
                      *, taps, ws, m, coutp):
    acc = _tap_accumulate((s00, s01, s10, s11), w_ref, taps, ws, m, coutp)
    y = jnp.maximum(acc + b_ref[...], 0.0)               # bias + ReLU inline
    o_ref[0] = y.astype(o_ref.dtype)                     # lane-dense (m, coutp) store


def _conv_pool_embed_kernel(s00, s01, s10, s11, w_ref, b_ref, we_ref, be_ref,
                            o_ref, *, taps, ws, ow, valid_rows, m, fp, inv_p):
    acc = _tap_accumulate((s00, s01, s10, s11), w_ref, taps, ws, m, fp)
    y = jnp.maximum(acc + b_ref[...], 0.0)               # (m, fp) f32
    # Mask junk rows (phantom column j == ow of each flattened output row and
    # rows beyond the valid spatial extent) before pooling.
    row = jax.lax.broadcasted_iota(jnp.int32, (m, 1), 0)
    valid = ((row % ws) < ow) & (row < valid_rows)
    y = jnp.where(valid, y, 0.0)
    # Fused AdaptiveAvgPool2d(1): exact f32 mean over the true spatial count.
    feat = jnp.sum(y, axis=0, keepdims=True) * inv_p      # (1, fp) f32
    # Fused Linear embed, kept in f32 (review: no bf16 downcast of the mean).
    emb = jnp.dot(feat, we_ref[...],
                  preferred_element_type=jnp.float32) + be_ref[...]
    o_ref[0] = emb.astype(o_ref.dtype)


# ---------------------------------------------------------------------------
# pallas_call wrappers
# ---------------------------------------------------------------------------
def _conv_geometry(h, w, m_align=16):
    oh, ow = h // 2, w // 2
    ws = ow + 1                                   # slab width (incl. 1 pad col)
    m = _round_up(oh * ws, m_align)               # 16-aligned bf16 store rows
    lp = _round_up(max((oh + 1) * ws, ws + 1 + m), 16)
    return oh, ow, ws, m, lp


def conv3x3s2_relu(x_nhwc, w, b):
    """3x3 / stride-2 / pad-1 conv + bias + ReLU.  Returns (N, OH, OW, Coutp) bf16
    with the channel axis left zero-padded to a multiple of 128."""
    n, h, w_sp, c = x_nhwc.shape
    cin_w = w.shape[0] // 9
    cout = w.shape[1]
    assert w.shape[0] == 9 * cin_w and cin_w <= c and b.shape == (cout,)
    cp = _round_up(c, 128)
    coutp = _round_up(cout, 128)
    oh, ow, ws, m, lp = _conv_geometry(h, w_sp)

    slabs = _space_to_depth_slabs(x_nhwc, cp, lp)
    wt = jnp.pad(w.astype(jnp.float32).reshape(9, cin_w, cout),
                 ((0, 0), (0, cp - cin_w), (0, coutp - cout))).astype(jnp.bfloat16)
    bt = jnp.pad(b.astype(jnp.float32), (0, coutp - cout)).reshape(1, coutp)

    out = pl.pallas_call(
        functools.partial(_conv_relu_kernel, taps=_TAPS, ws=ws, m=m, coutp=coutp),
        out_shape=jax.ShapeDtypeStruct((n, m, coutp), jnp.bfloat16),
        grid_spec=pltpu.PrefetchScalarGridSpec(
            num_scalar_prefetch=0,
            grid=(n,),
            in_specs=[pl.BlockSpec((1, lp, cp), lambda i: (i, 0, 0))] * 4 + [
                pl.BlockSpec((9, cp, coutp), lambda i: (0, 0, 0)),
                pl.BlockSpec((1, coutp), lambda i: (0, 0)),
            ],
            out_specs=pl.BlockSpec((1, m, coutp), lambda i: (i, 0, 0)),
        ),
        compiler_params=pltpu.CompilerParams(
            dimension_semantics=("parallel",),
            vmem_limit_bytes=_VMEM_LIMIT,
        ),
        cost_estimate=pl.CostEstimate(
            flops=int(2 * n * m * cp * coutp * 9),
            transcendentals=0,
            bytes_accessed=int(4 * n * lp * cp * 2 + 9 * cp * coutp * 2
                               + n * m * coutp * 2),
        ),
    )(*slabs, wt, bt)
    # Drop phantom column / padded rows; channels stay padded to coutp.
    return out[:, :oh * ws, :].reshape(n, oh, ws, coutp)[:, :, :ow, :]


def conv3x3s2_pool_embed(x_nhwc, w, b, we, be):
    """3x3/s2/p1 conv + bias + ReLU + global average pool + Linear embed,
    fully fused (the conv activation never reaches HBM)."""
    n, h, w_sp, c = x_nhwc.shape
    cin_w = w.shape[0] // 9
    feat = w.shape[1]
    feat2, embed = we.shape
    assert w.shape[0] == 9 * cin_w and cin_w <= c and feat == feat2
    cp = _round_up(c, 128)
    fp = _round_up(feat, 128)
    ep = _round_up(embed, 128)
    oh, ow, ws, m, lp = _conv_geometry(h, w_sp)

    slabs = _space_to_depth_slabs(x_nhwc, cp, lp)
    wt = jnp.pad(w.astype(jnp.float32).reshape(9, cin_w, feat),
                 ((0, 0), (0, cp - cin_w), (0, fp - feat))).astype(jnp.bfloat16)
    bt = jnp.pad(b.astype(jnp.float32), (0, fp - feat)).reshape(1, fp)
    wet = jnp.pad(we.astype(jnp.float32), ((0, fp - feat), (0, ep - embed)))
    bet = jnp.pad(be.astype(jnp.float32), (0, ep - embed)).reshape(1, ep)

    out = pl.pallas_call(
        functools.partial(_conv_pool_embed_kernel, taps=_TAPS, ws=ws, ow=ow,
                          valid_rows=oh * ws, m=m, fp=fp, inv_p=1.0 / (oh * ow)),
        out_shape=jax.ShapeDtypeStruct((n, 1, ep), jnp.float32),
        grid_spec=pltpu.PrefetchScalarGridSpec(
            num_scalar_prefetch=0,
            grid=(n,),
            in_specs=[pl.BlockSpec((1, lp, cp), lambda i: (i, 0, 0))] * 4 + [
                pl.BlockSpec((9, cp, fp), lambda i: (0, 0, 0)),
                pl.BlockSpec((1, fp), lambda i: (0, 0)),
                pl.BlockSpec((fp, ep), lambda i: (0, 0)),
                pl.BlockSpec((1, ep), lambda i: (0, 0)),
            ],
            out_specs=pl.BlockSpec((1, 1, ep), lambda i: (i, 0, 0)),
        ),
        compiler_params=pltpu.CompilerParams(
            dimension_semantics=("parallel",),
            vmem_limit_bytes=_VMEM_LIMIT,
        ),
        cost_estimate=pl.CostEstimate(
            flops=int(2 * n * m * cp * fp * 9 + 2 * n * fp * ep),
            transcendentals=0,
            bytes_accessed=int(4 * n * lp * cp * 2 + 9 * cp * fp * 2
                               + fp * ep * 4 + n * ep * 4),
        ),
    )(*slabs, wt, bt, wet, bet)
    return out.reshape(n, ep)[:, :embed]


# ---------------------------------------------------------------------------
# EncoderCNN forward
# ---------------------------------------------------------------------------
def encoder_cnn_forward(images_nchw, params):
    x = jnp.transpose(images_nchw, (0, 2, 3, 1))             # NCHW -> NHWC
    x = conv3x3s2_relu(x, params["w1"], params["b1"])          # backbone conv 1
    return conv3x3s2_pool_embed(x, params["w2"], params["b2"],  # conv2+pool+embed
                                params["we"], params["be"])


# ---------------------------------------------------------------------------
# Pure-JAX f32 reference (correctness check only)
# ---------------------------------------------------------------------------
def _im2col(x_nhwc, kh, kw, stride, pad):
    n, h, w, c = x_nhwc.shape
    xp = jnp.pad(x_nhwc, ((0, 0), (pad, pad), (pad, pad), (0, 0)))
    oh = (h + 2 * pad - kh) // stride + 1
    ow = (w + 2 * pad - kw) // stride + 1
    cols = []
    for i in range(kh):
        for j in range(kw):
            cols.append(xp[:, i:i + stride * oh:stride, j:j + stride * ow:stride, :])
    patches = jnp.concatenate(cols, axis=-1)
    return patches.reshape(n * oh * ow, kh * kw * c), (n, oh, ow)


def _reference_forward(images_nchw, params):
    x = jnp.transpose(images_nchw, (0, 2, 3, 1)).astype(jnp.float32)
    cols, (n, oh, ow) = _im2col(x, 3, 3, 2, 1)
    y = jnp.maximum(cols @ params["w1"] + params["b1"], 0.0).reshape(n, oh, ow, -1)
    cols, (n, oh, ow) = _im2col(y, 3, 3, 2, 1)
    y = jnp.maximum(cols @ params["w2"] + params["b2"], 0.0).reshape(n, oh * ow, -1)
    feat = jnp.mean(y, axis=1)
    return feat @ params["we"] + params["be"]


# ---------------------------------------------------------------------------
# Main
# ---------------------------------------------------------------------------
if __name__ == "__main__":
    N, CIN, H, W = 2, 3, 16, 16            # small ImageNet-like input
    C1, FEAT, EMBED = 16, 64, 32           # FEAT stands in for resnet.fc.in_features

    key = jax.random.PRNGKey(0)
    k_img, k_w1, k_w2, k_we, k_be = jax.random.split(key, 5)

    images = jax.random.normal(k_img, (N, CIN, H, W), jnp.float32)

    params = {
        # conv weights stored in tap-major matmul layout: (kh*kw*Cin, Cout)
        "w1": jax.random.normal(k_w1, (3 * 3 * CIN, C1), jnp.float32)
              * (2.0 / (3 * 3 * CIN)) ** 0.5,
        "b1": jnp.zeros((C1,), jnp.float32),
        "w2": jax.random.normal(k_w2, (3 * 3 * C1, FEAT), jnp.float32)
              * (2.0 / (3 * 3 * C1)) ** 0.5,
        "b2": jnp.zeros((FEAT,), jnp.float32),
        # nn.Linear(FEAT, EMBED): stored as (in, out) so y = x @ W + b
        "we": jax.random.normal(k_we, (FEAT, EMBED), jnp.float32)
              * (1.0 / FEAT) ** 0.5,
        "be": jax.random.normal(k_be, (EMBED,), jnp.float32) * 0.01,
    }

    features = jax.block_until_ready(jax.jit(encoder_cnn_forward)(images, params))

    assert features.shape == (N, EMBED), features.shape
    assert features.dtype == jnp.float32
    assert bool(jnp.all(jnp.isfinite(features)))

    ref = _reference_forward(images, params)
    assert bool(jnp.allclose(features, ref, rtol=1e-1, atol=1e-1)), (
        float(jnp.max(jnp.abs(features - ref))))

    print("KERNEL_OK")
</pallas_src>

<mosaic_0001>
module attributes {stable_mosaic.version = 11 : i64} {
  func.func @_conv_relu_kernel(%arg0: i32, %arg1: memref<1x96x128xbf16, #tpu.memory_space<vmem>>, %arg2: memref<1x96x128xbf16, #tpu.memory_space<vmem>>, %arg3: memref<1x96x128xbf16, #tpu.memory_space<vmem>>, %arg4: memref<1x96x128xbf16, #tpu.memory_space<vmem>>, %arg5: memref<9x128x128xbf16, #tpu.memory_space<vmem>>, %arg6: memref<1x128xf32, #tpu.memory_space<vmem>>, %arg7: memref<1x80x128xbf16, #tpu.memory_space<vmem>>) attributes {dimension_semantics = [#tpu.dimension_semantics<parallel>], iteration_bounds = array<i64: 2>, scalar_prefetch = 0 : i64, scratch_operands = 0 : i64, tpu.core_type = #tpu.core_type<tc>, window_params = [{transform_indices = @transform_0, window_bounds = array<i64: 1, 96, 128>}, {transform_indices = @transform_1, window_bounds = array<i64: 1, 96, 128>}, {transform_indices = @transform_2, window_bounds = array<i64: 1, 96, 128>}, {transform_indices = @transform_3, window_bounds = array<i64: 1, 96, 128>}, {pipeline_mode = #tpu.pipeline_mode<synchronous>, transform_indices = @transform_4, window_bounds = array<i64: 9, 128, 128>}, {pipeline_mode = #tpu.pipeline_mode<synchronous>, transform_indices = @transform_5, window_bounds = array<i64: 1, 128>}, {transform_indices = @transform_6, window_bounds = array<i64: 1, 80, 128>}]} {
    %c0 = arith.constant 0 : index
    %c0_0 = arith.constant 0 : index
    %c0_1 = arith.constant 0 : index
    %0 = vector.load %arg1[%c0, %c0_0, %c0_1] : memref<1x96x128xbf16, #tpu.memory_space<vmem>>, vector<1x96x128xbf16>
    %1 = vector.shape_cast %0 : vector<1x96x128xbf16> to vector<96x128xbf16>
    %c0_2 = arith.constant 0 : index
    %c0_3 = arith.constant 0 : index
    %c0_4 = arith.constant 0 : index
    %2 = vector.load %arg2[%c0_2, %c0_3, %c0_4] : memref<1x96x128xbf16, #tpu.memory_space<vmem>>, vector<1x96x128xbf16>
    %3 = vector.shape_cast %2 : vector<1x96x128xbf16> to vector<96x128xbf16>
    %c0_5 = arith.constant 0 : index
    %c0_6 = arith.constant 0 : index
    %c0_7 = arith.constant 0 : index
    %4 = vector.load %arg3[%c0_5, %c0_6, %c0_7] : memref<1x96x128xbf16, #tpu.memory_space<vmem>>, vector<1x96x128xbf16>
    %5 = vector.shape_cast %4 : vector<1x96x128xbf16> to vector<96x128xbf16>
    %c0_8 = arith.constant 0 : index
    %c0_9 = arith.constant 0 : index
    %c0_10 = arith.constant 0 : index
    %6 = vector.load %arg4[%c0_8, %c0_9, %c0_10] : memref<1x96x128xbf16, #tpu.memory_space<vmem>>, vector<1x96x128xbf16>
    %7 = vector.shape_cast %6 : vector<1x96x128xbf16> to vector<96x128xbf16>
    %cst = arith.constant 0.000000e+00 : f32
    %8 = vector.broadcast %cst : f32 to vector<80x128xf32>
    %9 = vector.extract_strided_slice %1 {offsets = [0, 0], sizes = [80, 128], strides = [1, 1]} : vector<96x128xbf16> to vector<80x128xbf16>
    %c0_11 = arith.constant 0 : index
    %c0_12 = arith.constant 0 : index
    %c0_13 = arith.constant 0 : index
    %10 = vector.load %arg5[%c0_11, %c0_12, %c0_13] : memref<9x128x128xbf16, #tpu.memory_space<vmem>>, vector<1x128x128xbf16>
    %11 = vector.shape_cast %10 : vector<1x128x128xbf16> to vector<128x128xbf16>
    %cst_14 = arith.constant dense<0.000000e+00> : vector<80x128xf32>
    %12 = tpu.matmul %9, %11, %cst_14 {dimension_numbers = #tpu.dot_dimension_numbers<[1], [0], [0], [1], [0, 0, 1, 1], [], []>} : vector<80x128xbf16>, vector<128x128xbf16>, vector<80x128xf32> -> vector<80x128xf32>
    %13 = arith.addf %8, %12 : vector<80x128xf32>
    %14 = vector.extract_strided_slice %3 {offsets = [0, 0], sizes = [80, 128], strides = [1, 1]} : vector<96x128xbf16> to vector<80x128xbf16>
    %c1 = arith.constant 1 : index
    %c0_15 = arith.constant 0 : index
    %c0_16 = arith.constant 0 : index
    %15 = vector.load %arg5[%c1, %c0_15, %c0_16] : memref<9x128x128xbf16, #tpu.memory_space<vmem>>, vector<1x128x128xbf16>
    %16 = vector.shape_cast %15 : vector<1x128x128xbf16> to vector<128x128xbf16>
    %cst_17 = arith.constant dense<0.000000e+00> : vector<80x128xf32>
    %17 = tpu.matmul %14, %16, %cst_17 {dimension_numbers = #tpu.dot_dimension_numbers<[1], [0], [0], [1], [0, 0, 1, 1], [], []>} : vector<80x128xbf16>, vector<128x128xbf16>, vector<80x128xf32> -> vector<80x128xf32>
    %18 = arith.addf %13, %17 : vector<80x128xf32>
    %19 = vector.extract_strided_slice %1 {offsets = [1, 0], sizes = [80, 128], strides = [1, 1]} : vector<96x128xbf16> to vector<80x128xbf16>
    %c2 = arith.constant 2 : index
    %c0_18 = arith.constant 0 : index
    %c0_19 = arith.constant 0 : index
    %20 = vector.load %arg5[%c2, %c0_18, %c0_19] : memref<9x128x128xbf16, #tpu.memory_space<vmem>>, vector<1x128x128xbf16>
    %21 = vector.shape_cast %20 : vector<1x128x128xbf16> to vector<128x128xbf16>
    %cst_20 = arith.constant dense<0.000000e+00> : vector<80x128xf32>
    %22 = tpu.matmul %19, %21, %cst_20 {dimension_numbers = #tpu.dot_dimension_numbers<[1], [0], [0], [1], [0, 0, 1, 1], [], []>} : vector<80x128xbf16>, vector<128x128xbf16>, vector<80x128xf32> -> vector<80x128xf32>
    %23 = arith.addf %18, %22 : vector<80x128xf32>
    %24 = vector.extract_strided_slice %5 {offsets = [0, 0], sizes = [80, 128], strides = [1, 1]} : vector<96x128xbf16> to vector<80x128xbf16>
    %c3 = arith.constant 3 : index
    %c0_21 = arith.constant 0 : index
    %c0_22 = arith.constant 0 : index
    %25 = vector.load %arg5[%c3, %c0_21, %c0_22] : memref<9x128x128xbf16, #tpu.memory_space<vmem>>, vector<1x128x128xbf16>
    %26 = vector.shape_cast %25 : vector<1x128x128xbf16> to vector<128x128xbf16>
    %cst_23 = arith.constant dense<0.000000e+00> : vector<80x128xf32>
    %27 = tpu.matmul %24, %26, %cst_23 {dimension_numbers = #tpu.dot_dimension_numbers<[1], [0], [0], [1], [0, 0, 1, 1], [], []>} : vector<80x128xbf16>, vector<128x128xbf16>, vector<80x128xf32> -> vector<80x128xf32>
    %28 = arith.addf %23, %27 : vector<80x128xf32>
    %29 = vector.extract_strided_slice %7 {offsets = [0, 0], sizes = [80, 128], strides = [1, 1]} : vector<96x128xbf16> to vector<80x128xbf16>
    %c4 = arith.constant 4 : index
    %c0_24 = arith.constant 0 : index
    %c0_25 = arith.constant 0 : index
    %30 = vector.load %arg5[%c4, %c0_24, %c0_25] : memref<9x128x128xbf16, #tpu.memory_space<vmem>>, vector<1x128x128xbf16>
    %31 = vector.shape_cast %30 : vector<1x128x128xbf16> to vector<128x128xbf16>
    %cst_26 = arith.constant dense<0.000000e+00> : vector<80x128xf32>
    %32 = tpu.matmul %29, %31, %cst_26 {dimension_numbers = #tpu.dot_dimension_numbers<[1], [0], [0], [1], [0, 0, 1, 1], [], []>} : vector<80x128xbf16>, vector<128x128xbf16>, vector<80x128xf32> -> vector<80x128xf32>
    %33 = arith.addf %28, %32 : vector<80x128xf32>
    %34 = vector.extract_strided_slice %5 {offsets = [1, 0], sizes = [80, 128], strides = [1, 1]} : vector<96x128xbf16> to vector<80x128xbf16>
    %c5 = arith.constant 5 : index
    %c0_27 = arith.constant 0 : index
    %c0_28 = arith.constant 0 : index
    %35 = vector.load %arg5[%c5, %c0_27, %c0_28] : memref<9x128x128xbf16, #tpu.memory_space<vmem>>, vector<1x128x128xbf16>
    %36 = vector.shape_cast %35 : vector<1x128x128xbf16> to vector<128x128xbf16>
    %cst_29 = arith.constant dense<0.000000e+00> : vector<80x128xf32>
    %37 = tpu.matmul %34, %36, %cst_29 {dimension_numbers = #tpu.dot_dimension_numbers<[1], [0], [0], [1], [0, 0, 1, 1], [], []>} : vector<80x128xbf16>, vector<128x128xbf16>, vector<80x128xf32> -> vector<80x128xf32>
    %38 = arith.addf %33, %37 : vector<80x128xf32>
    %39 = vector.extract_strided_slice %1 {offsets = [9, 0], sizes = [80, 128], strides = [1, 1]} : vector<96x128xbf16> to vector<80x128xbf16>
    %c6 = arith.constant 6 : index
    %c0_30 = arith.constant 0 : index
    %c0_31 = arith.constant 0 : index
    %40 = vector.load %arg5[%c6, %c0_30, %c0_31] : memref<9x128x128xbf16, #tpu.memory_space<vmem>>, vector<1x128x128xbf16>
    %41 = vector.shape_cast %40 : vector<1x128x128xbf16> to vector<128x128xbf16>
    %cst_32 = arith.constant dense<0.000000e+00> : vector<80x128xf32>
    %42 = tpu.matmul %39, %41, %cst_32 {dimension_numbers = #tpu.dot_dimension_numbers<[1], [0], [0], [1], [0, 0, 1, 1], [], []>} : vector<80x128xbf16>, vector<128x128xbf16>, vector<80x128xf32> -> vector<80x128xf32>
    %43 = arith.addf %38, %42 : vector<80x128xf32>
    %44 = vector.extract_strided_slice %3 {offsets = [9, 0], sizes = [80, 128], strides = [1, 1]} : vector<96x128xbf16> to vector<80x128xbf16>
    %c7 = arith.constant 7 : index
    %c0_33 = arith.constant 0 : index
    %c0_34 = arith.constant 0 : index
    %45 = vector.load %arg5[%c7, %c0_33, %c0_34] : memref<9x128x128xbf16, #tpu.memory_space<vmem>>, vector<1x128x128xbf16>
    %46 = vector.shape_cast %45 : vector<1x128x128xbf16> to vector<128x128xbf16>
    %cst_35 = arith.constant dense<0.000000e+00> : vector<80x128xf32>
    %47 = tpu.matmul %44, %46, %cst_35 {dimension_numbers = #tpu.dot_dimension_numbers<[1], [0], [0], [1], [0, 0, 1, 1], [], []>} : vector<80x128xbf16>, vector<128x128xbf16>, vector<80x128xf32> -> vector<80x128xf32>
    %48 = arith.addf %43, %47 : vector<80x128xf32>
    %49 = vector.extract_strided_slice %1 {offsets = [10, 0], sizes = [80, 128], strides = [1, 1]} : vector<96x128xbf16> to vector<80x128xbf16>
    %c8 = arith.constant 8 : index
    %c0_36 = arith.constant 0 : index
    %c0_37 = arith.constant 0 : index
    %50 = vector.load %arg5[%c8, %c0_36, %c0_37] : memref<9x128x128xbf16, #tpu.memory_space<vmem>>, vector<1x128x128xbf16>
    %51 = vector.shape_cast %50 : vector<1x128x128xbf16> to vector<128x128xbf16>
    %cst_38 = arith.constant dense<0.000000e+00> : vector<80x128xf32>
    %52 = tpu.matmul %49, %51, %cst_38 {dimension_numbers = #tpu.dot_dimension_numbers<[1], [0], [0], [1], [0, 0, 1, 1], [], []>} : vector<80x128xbf16>, vector<128x128xbf16>, vector<80x128xf32> -> vector<80x128xf32>
    %53 = arith.addf %48, %52 : vector<80x128xf32>
    %c0_39 = arith.constant 0 : index
    %c0_40 = arith.constant 0 : index
    %54 = vector.load %arg6[%c0_39, %c0_40] : memref<1x128xf32, #tpu.memory_space<vmem>>, vector<1x128xf32>
    %55 = vector.broadcast %54 : vector<1x128xf32> to vector<80x128xf32>
    %56 = arith.addf %53, %55 : vector<80x128xf32>
    %cst_41 = arith.constant 0.000000e+00 : f32
    %57 = vector.broadcast %cst_41 : f32 to vector<80x128xf32>
    %58 = arith.maximumf %56, %57 : vector<80x128xf32>
    %59 = arith.truncf %58 : vector<80x128xf32> to vector<80x128xbf16>
    %c0_42 = arith.constant 0 : index
    %c0_43 = arith.constant 0 : index
    %c0_44 = arith.constant 0 : index
    %60 = vector.load %arg7[%c0_42, %c0_43, %c0_44] : memref<1x80x128xbf16, #tpu.memory_space<vmem>>, vector<1x80x128xbf16>
    %61 = vector.shape_cast %60 : vector<1x80x128xbf16> to vector<80x128xbf16>
    %62 = vector.shape_cast %59 : vector<80x128xbf16> to vector<1x80x128xbf16>
    tpu.vector_store %arg7[%c0_42, %c0_43, %c0_44], %62 {strides = array<i32>} : memref<1x80x128xbf16, #tpu.memory_space<vmem>>, vector<1x80x128xbf16>,
    return
  }
  func.func @transform_0(%arg0: i32) -> (i32, i32, i32) {
    %c0_i32 = arith.constant 0 : i32
    %c0_i32_0 = arith.constant 0 : i32
    %c0_i32_1 = arith.constant 0 : i32
    return %arg0, %c0_i32, %c0_i32_0 : i32, i32, i32
  }
  func.func @transform_1(%arg0: i32) -> (i32, i32, i32) {
    %c0_i32 = arith.constant 0 : i32
    %c0_i32_0 = arith.constant 0 : i32
    %c0_i32_1 = arith.constant 0 : i32
    return %arg0, %c0_i32, %c0_i32_0 : i32, i32, i32
  }
  func.func @transform_2(%arg0: i32) -> (i32, i32, i32) {
    %c0_i32 = arith.constant 0 : i32
    %c0_i32_0 = arith.constant 0 : i32
    %c0_i32_1 = arith.constant 0 : i32
    return %arg0, %c0_i32, %c0_i32_0 : i32, i32, i32
  }
  func.func @transform_3(%arg0: i32) -> (i32, i32, i32) {
    %c0_i32 = arith.constant 0 : i32
    %c0_i32_0 = arith.constant 0 : i32
    %c0_i32_1 = arith.constant 0 : i32
    return %arg0, %c0_i32, %c0_i32_0 : i32, i32, i32
  }
  func.func @transform_4(%arg0: i32) -> (i32, i32, i32) {
    %c0_i32 = arith.constant 0 : i32
    %c0_i32_0 = arith.constant 0 : i32
    %c0_i32_1 = arith.constant 0 : i32
    %c0_i32_2 = arith.constant 0 : i32
    return %c0_i32, %c0_i32_0, %c0_i32_1 : i32, i32, i32
  }
  func.func @transform_5(%arg0: i32) -> (i32, i32) {
    %c0_i32 = arith.constant 0 : i32
    %c0_i32_0 = arith.constant 0 : i32
    %c0_i32_1 = arith.constant 0 : i32
    return %c0_i32, %c0_i32_0 : i32, i32
  }
  func.func @transform_6(%arg0: i32) -> (i32, i32, i32) {
    %c0_i32 = arith.constant 0 : i32
    %c0_i32_0 = arith.constant 0 : i32
    %c0_i32_1 = arith.constant 0 : i32
    return %arg0, %c0_i32, %c0_i32_0 : i32, i32, i32
  }
}

module attributes {stable_mosaic.version = 11 : i64} {
  func.func @_conv_pool_embed_kernel(%arg0: i32, %arg1: memref<1x48x128xbf16, #tpu.memory_space<vmem>>, %arg2: memref<1x48x128xbf16, #tpu.memory_space<vmem>>, %arg3: memref<1x48x128xbf16, #tpu.memory_space<vmem>>, %arg4: memref<1x48x128xbf16, #tpu.memory_space<vmem>>, %arg5: memref<9x128x128xbf16, #tpu.memory_space<vmem>>, %arg6: memref<1x128xf32, #tpu.memory_space<vmem>>, %arg7: memref<128x128xf32, #tpu.memory_space<vmem>>, %arg8: memref<1x128xf32, #tpu.memory_space<vmem>>, %arg9: memref<1x1x128xf32, #tpu.memory_space<vmem>>) attributes {dimension_semantics = [#tpu.dimension_semantics<parallel>], iteration_bounds = array<i64: 2>, scalar_prefetch = 0 : i64, scratch_operands = 0 : i64, tpu.core_type = #tpu.core_type<tc>, window_params = [{transform_indices = @transform_0, window_bounds = array<i64: 1, 48, 128>}, {transform_indices = @transform_1, window_bounds = array<i64: 1, 48, 128>}, {transform_indices = @transform_2, window_bounds = array<i64: 1, 48, 128>}, {transform_indices = @transform_3, window_bounds = array<i64: 1, 48, 128>}, {pipeline_mode = #tpu.pipeline_mode<synchronous>, transform_indices = @transform_4, window_bounds = array<i64: 9, 128, 128>}, {pipeline_mode = #tpu.pipeline_mode<synchronous>, transform_indices = @transform_5, window_bounds = array<i64: 1, 128>}, {pipeline_mode = #tpu.pipeline_mode<synchronous>, transform_indices = @transform_6, window_bounds = array<i64: 128, 128>}, {pipeline_mode = #tpu.pipeline_mode<synchronous>, transform_indices = @transform_7, window_bounds = array<i64: 1, 128>}, {transform_indices = @transform_8, window_bounds = array<i64: 1, 1, 128>}]} {
    %c0 = arith.constant 0 : index
    %c0_0 = arith.constant 0 : index
    %c0_1 = arith.constant 0 : index
    %0 = vector.load %arg1[%c0, %c0_0, %c0_1] : memref<1x48x128xbf16, #tpu.memory_space<vmem>>, vector<1x48x128xbf16>
    %1 = vector.shape_cast %0 : vector<1x48x128xbf16> to vector<48x128xbf16>
    %c0_2 = arith.constant 0 : index
    %c0_3 = arith.constant 0 : index
    %c0_4 = arith.constant 0 : index
    %2 = vector.load %arg2[%c0_2, %c0_3, %c0_4] : memref<1x48x128xbf16, #tpu.memory_space<vmem>>, vector<1x48x128xbf16>
    %3 = vector.shape_cast %2 : vector<1x48x128xbf16> to vector<48x128xbf16>
    %c0_5 = arith.constant 0 : index
    %c0_6 = arith.constant 0 : index
    %c0_7 = arith.constant 0 : index
    %4 = vector.load %arg3[%c0_5, %c0_6, %c0_7] : memref<1x48x128xbf16, #tpu.memory_space<vmem>>, vector<1x48x128xbf16>
    %5 = vector.shape_cast %4 : vector<1x48x128xbf16> to vector<48x128xbf16>
    %c0_8 = arith.constant 0 : index
    %c0_9 = arith.constant 0 : index
    %c0_10 = arith.constant 0 : index
    %6 = vector.load %arg4[%c0_8, %c0_9, %c0_10] : memref<1x48x128xbf16, #tpu.memory_space<vmem>>, vector<1x48x128xbf16>
    %7 = vector.shape_cast %6 : vector<1x48x128xbf16> to vector<48x128xbf16>
    %cst = arith.constant 0.000000e+00 : f32
    %8 = vector.broadcast %cst : f32 to vector<32x128xf32>
    %9 = vector.extract_strided_slice %1 {offsets = [0, 0], sizes = [32, 128], strides = [1, 1]} : vector<48x128xbf16> to vector<32x128xbf16>
    %c0_11 = arith.constant 0 : index
    %c0_12 = arith.constant 0 : index
    %c0_13 = arith.constant 0 : index
    %10 = vector.load %arg5[%c0_11, %c0_12, %c0_13] : memref<9x128x128xbf16, #tpu.memory_space<vmem>>, vector<1x128x128xbf16>
    %11 = vector.shape_cast %10 : vector<1x128x128xbf16> to vector<128x128xbf16>
    %cst_14 = arith.constant dense<0.000000e+00> : vector<32x128xf32>
    %12 = tpu.matmul %9, %11, %cst_14 {dimension_numbers = #tpu.dot_dimension_numbers<[1], [0], [0], [1], [0, 0, 1, 1], [], []>} : vector<32x128xbf16>, vector<128x128xbf16>, vector<32x128xf32> -> vector<32x128xf32>
    %13 = arith.addf %8, %12 : vector<32x128xf32>
    %14 = vector.extract_strided_slice %3 {offsets = [0, 0], sizes = [32, 128], strides = [1, 1]} : vector<48x128xbf16> to vector<32x128xbf16>
    %c1 = arith.constant 1 : index
    %c0_15 = arith.constant 0 : index
    %c0_16 = arith.constant 0 : index
    %15 = vector.load %arg5[%c1, %c0_15, %c0_16] : memref<9x128x128xbf16, #tpu.memory_space<vmem>>, vector<1x128x128xbf16>
    %16 = vector.shape_cast %15 : vector<1x128x128xbf16> to vector<128x128xbf16>
    %cst_17 = arith.constant dense<0.000000e+00> : vector<32x128xf32>
    %17 = tpu.matmul %14, %16, %cst_17 {dimension_numbers = #tpu.dot_dimension_numbers<[1], [0], [0], [1], [0, 0, 1, 1], [], []>} : vector<32x128xbf16>, vector<128x128xbf16>, vector<32x128xf32> -> vector<32x128xf32>
    %18 = arith.addf %13, %17 : vector<32x128xf32>
    %19 = vector.extract_strided_slice %1 {offsets = [1, 0], sizes = [32, 128], strides = [1, 1]} : vector<48x128xbf16> to vector<32x128xbf16>
    %c2 = arith.constant 2 : index
    %c0_18 = arith.constant 0 : index
    %c0_19 = arith.constant 0 : index
    %20 = vector.load %arg5[%c2, %c0_18, %c0_19] : memref<9x128x128xbf16, #tpu.memory_space<vmem>>, vector<1x128x128xbf16>
    %21 = vector.shape_cast %20 : vector<1x128x128xbf16> to vector<128x128xbf16>
    %cst_20 = arith.constant dense<0.000000e+00> : vector<32x128xf32>
    %22 = tpu.matmul %19, %21, %cst_20 {dimension_numbers = #tpu.dot_dimension_numbers<[1], [0], [0], [1], [0, 0, 1, 1], [], []>} : vector<32x128xbf16>, vector<128x128xbf16>, vector<32x128xf32> -> vector<32x128xf32>
    %23 = arith.addf %18, %22 : vector<32x128xf32>
    %24 = vector.extract_strided_slice %5 {offsets = [0, 0], sizes = [32, 128], strides = [1, 1]} : vector<48x128xbf16> to vector<32x128xbf16>
    %c3 = arith.constant 3 : index
    %c0_21 = arith.constant 0 : index
    %c0_22 = arith.constant 0 : index
    %25 = vector.load %arg5[%c3, %c0_21, %c0_22] : memref<9x128x128xbf16, #tpu.memory_space<vmem>>, vector<1x128x128xbf16>
    %26 = vector.shape_cast %25 : vector<1x128x128xbf16> to vector<128x128xbf16>
    %cst_23 = arith.constant dense<0.000000e+00> : vector<32x128xf32>
    %27 = tpu.matmul %24, %26, %cst_23 {dimension_numbers = #tpu.dot_dimension_numbers<[1], [0], [0], [1], [0, 0, 1, 1], [], []>} : vector<32x128xbf16>, vector<128x128xbf16>, vector<32x128xf32> -> vector<32x128xf32>
    %28 = arith.addf %23, %27 : vector<32x128xf32>
    %29 = vector.extract_strided_slice %7 {offsets = [0, 0], sizes = [32, 128], strides = [1, 1]} : vector<48x128xbf16> to vector<32x128xbf16>
    %c4 = arith.constant 4 : index
    %c0_24 = arith.constant 0 : index
    %c0_25 = arith.constant 0 : index
    %30 = vector.load %arg5[%c4, %c0_24, %c0_25] : memref<9x128x128xbf16, #tpu.memory_space<vmem>>, vector<1x128x128xbf16>
    %31 = vector.shape_cast %30 : vector<1x128x128xbf16> to vector<128x128xbf16>
    %cst_26 = arith.constant dense<0.000000e+00> : vector<32x128xf32>
    %32 = tpu.matmul %29, %31, %cst_26 {dimension_numbers = #tpu.dot_dimension_numbers<[1], [0], [0], [1], [0, 0, 1, 1], [], []>} : vector<32x128xbf16>, vector<128x128xbf16>, vector<32x128xf32> -> vector<32x128xf32>
    %33 = arith.addf %28, %32 : vector<32x128xf32>
    %34 = vector.extract_strided_slice %5 {offsets = [1, 0], sizes = [32, 128], strides = [1, 1]} : vector<48x128xbf16> to vector<32x128xbf16>
    %c5 = arith.constant 5 : index
    %c0_27 = arith.constant 0 : index
    %c0_28 = arith.constant 0 : index
    %35 = vector.load %arg5[%c5, %c0_27, %c0_28] : memref<9x128x128xbf16, #tpu.memory_space<vmem>>, vector<1x128x128xbf16>
    %36 = vector.shape_cast %35 : vector<1x128x128xbf16> to vector<128x128xbf16>
    %cst_29 = arith.constant dense<0.000000e+00> : vector<32x128xf32>
    %37 = tpu.matmul %34, %36, %cst_29 {dimension_numbers = #tpu.dot_dimension_numbers<[1], [0], [0], [1], [0, 0, 1, 1], [], []>} : vector<32x128xbf16>, vector<128x128xbf16>, vector<32x128xf32> -> vector<32x128xf32>
    %38 = arith.addf %33, %37 : vector<32x128xf32>
    %39 = vector.extract_strided_slice %1 {offsets = [5, 0], sizes = [32, 128], strides = [1, 1]} : vector<48x128xbf16> to vector<32x128xbf16>
    %c6 = arith.constant 6 : index
    %c0_30 = arith.constant 0 : index
    %c0_31 = arith.constant 0 : index
    %40 = vector.load %arg5[%c6, %c0_30, %c0_31] : memref<9x128x128xbf16, #tpu.memory_space<vmem>>, vector<1x128x128xbf16>
    %41 = vector.shape_cast %40 : vector<1x128x128xbf16> to vector<128x128xbf16>
    %cst_32 = arith.constant dense<0.000000e+00> : vector<32x128xf32>
    %42 = tpu.matmul %39, %41, %cst_32 {dimension_numbers = #tpu.dot_dimension_numbers<[1], [0], [0], [1], [0, 0, 1, 1], [], []>} : vector<32x128xbf16>, vector<128x128xbf16>, vector<32x128xf32> -> vector<32x128xf32>
    %43 = arith.addf %38, %42 : vector<32x128xf32>
    %44 = vector.extract_strided_slice %3 {offsets = [5, 0], sizes = [32, 128], strides = [1, 1]} : vector<48x128xbf16> to vector<32x128xbf16>
    %c7 = arith.constant 7 : index
    %c0_33 = arith.constant 0 : index
    %c0_34 = arith.constant 0 : index
    %45 = vector.load %arg5[%c7, %c0_33, %c0_34] : memref<9x128x128xbf16, #tpu.memory_space<vmem>>, vector<1x128x128xbf16>
    %46 = vector.shape_cast %45 : vector<1x128x128xbf16> to vector<128x128xbf16>
    %cst_35 = arith.constant dense<0.000000e+00> : vector<32x128xf32>
    %47 = tpu.matmul %44, %46, %cst_35 {dimension_numbers = #tpu.dot_dimension_numbers<[1], [0], [0], [1], [0, 0, 1, 1], [], []>} : vector<32x128xbf16>, vector<128x128xbf16>, vector<32x128xf32> -> vector<32x128xf32>
    %48 = arith.addf %43, %47 : vector<32x128xf32>
    %49 = vector.extract_strided_slice %1 {offsets = [6, 0], sizes = [32, 128], strides = [1, 1]} : vector<48x128xbf16> to vector<32x128xbf16>
    %c8 = arith.constant 8 : index
    %c0_36 = arith.constant 0 : index
    %c0_37 = arith.constant 0 : index
    %50 = vector.load %arg5[%c8, %c0_36, %c0_37] : memref<9x128x128xbf16, #tpu.memory_space<vmem>>, vector<1x128x128xbf16>
    %51 = vector.shape_cast %50 : vector<1x128x128xbf16> to vector<128x128xbf16>
    %cst_38 = arith.constant dense<0.000000e+00> : vector<32x128xf32>
    %52 = tpu.matmul %49, %51, %cst_38 {dimension_numbers = #tpu.dot_dimension_numbers<[1], [0], [0], [1], [0, 0, 1, 1], [], []>} : vector<32x128xbf16>, vector<128x128xbf16>, vector<32x128xf32> -> vector<32x128xf32>
    %53 = arith.addf %48, %52 : vector<32x128xf32>
    %c0_39 = arith.constant 0 : index
    %c0_40 = arith.constant 0 : index
    %54 = vector.load %arg6[%c0_39, %c0_40] : memref<1x128xf32, #tpu.memory_space<vmem>>, vector<1x128xf32>
    %55 = vector.broadcast %54 : vector<1x128xf32> to vector<32x128xf32>
    %56 = arith.addf %53, %55 : vector<32x128xf32>
    %cst_41 = arith.constant 0.000000e+00 : f32
    %57 = vector.broadcast %cst_41 : f32 to vector<32x128xf32>
    %58 = arith.maximumf %56, %57 : vector<32x128xf32>
    %59 = tpu.iota {dimensions = array<i32: 0>} : vector<32x1xi32>
    %c5_i32 = arith.constant 5 : i32
    %c0_i32 = arith.constant 0 : i32
    %60 = arith.cmpi eq, %c5_i32, %c0_i32 : i32
    %c1_i32 = arith.constant 1 : i32
    %61 = arith.select %60, %c1_i32, %c5_i32 : i32
    %62 = vector.broadcast %61 : i32 to vector<32x1xi32>
    %63 = arith.remsi %59, %62 : vector<32x1xi32>
    %c0_i32_42 = arith.constant 0 : i32
    %64 = vector.broadcast %c0_i32_42 : i32 to vector<32x1xi32>
    %65 = arith.cmpi ne, %63, %64 : vector<32x1xi32>
    %c0_i32_43 = arith.constant 0 : i32
    %66 = vector.broadcast %c0_i32_43 : i32 to vector<32x1xi32>
    %67 = arith.cmpi slt, %63, %66 : vector<32x1xi32>
    %c0_i32_44 = arith.constant 0 : i32
    %68 = arith.cmpi slt, %61, %c0_i32_44 : i32
    %69 = vector.broadcast %68 : i1 to vector<32x1xi1>
    %70 = vector.broadcast %69 : vector<32x1xi1> to vector<32x1xi1>
    %71 = arith.xori %67, %70 : vector<32x1xi1>
    %72 = arith.andi %71, %65 : vector<32x1xi1>
    %73 = vector.broadcast %61 : i32 to vector<32x1xi32>
    %74 = arith.addi %63, %73 : vector<32x1xi32>
    %75 = arith.select %72, %74, %63 : vector<32x1xi1>, vector<32x1xi32>
    %c4_i32 = arith.constant 4 : i32
    %76 = vector.broadcast %c4_i32 : i32 to vector<32x1xi32>
    %77 = arith.cmpi slt, %75, %76 : vector<32x1xi32>
    %c20_i32 = arith.constant 20 : i32
    %78 = vector.broadcast %c20_i32 : i32 to vector<32x1xi32>
    %79 = arith.cmpi slt, %59, %78 : vector<32x1xi32>
    %80 = arith.andi %77, %79 : vector<32x1xi1>
    %cst_45 = arith.constant 0.000000e+00 : f32
    %81 = vector.shape_cast %80 : vector<32x1xi1> to vector<32x1xi1>
    %82 = vector.broadcast %81 : vector<32x1xi1> to vector<32x128xi1>
    %83 = vector.broadcast %cst_45 : f32 to vector<32x128xf32>
    %84 = arith.select %82, %58, %83 : vector<32x128xi1>, vector<32x128xf32>
    %cst_46 = arith.constant dense<0.000000e+00> : vector<128xf32>
    %85 = vector.multi_reduction <add>, %84, %cst_46 [0] : vector<32x128xf32> to vector<128xf32>
    %86 = vector.shape_cast %85 : vector<128xf32> to vector<1x128xf32>
    %cst_47 = arith.constant 6.250000e-02 : f32
    %87 = vector.broadcast %cst_47 : f32 to vector<1x128xf32>
    %88 = arith.mulf %86, %87 : vector<1x128xf32>
    %c0_48 = arith.constant 0 : index
    %c0_49 = arith.constant 0 : index
    %89 = vector.load %arg7[%c0_48, %c0_49] : memref<128x128xf32, #tpu.memory_space<vmem>>, vector<128x128xf32>
    %cst_50 = arith.constant dense<0.000000e+00> : vector<1x128xf32>
    %90 = tpu.matmul %88, %89, %cst_50 {dimension_numbers = #tpu.dot_dimension_numbers<[1], [0], [0], [1], [0, 0, 1, 1], [], []>} : vector<1x128xf32>, vector<128x128xf32>, vector<1x128xf32> -> vector<1x128xf32>
    %c0_51 = arith.constant 0 : index
    %c0_52 = arith.constant 0 : index
    %91 = vector.load %arg8[%c0_51, %c0_52] : memref<1x128xf32, #tpu.memory_space<vmem>>, vector<1x128xf32>
    %92 = arith.addf %90, %91 : vector<1x128xf32>
    %c0_53 = arith.constant 0 : index
    %c0_54 = arith.constant 0 : index
    %c0_55 = arith.constant 0 : index
    %93 = vector.load %arg9[%c0_53, %c0_54, %c0_55] : memref<1x1x128xf32, #tpu.memory_space<vmem>>, vector<1x1x128xf32>
    %94 = vector.shape_cast %93 : vector<1x1x128xf32> to vector<1x128xf32>
    %95 = vector.shape_cast %92 : vector<1x128xf32> to vector<1x1x128xf32>
    tpu.vector_store %arg9[%c0_53, %c0_54, %c0_55], %95 {strides = array<i32>} : memref<1x1x128xf32, #tpu.memory_space<vmem>>, vector<1x1x128xf32>,
    return
  }
  func.func @transform_0(%arg0: i32) -> (i32, i32, i32) {
    %c0_i32 = arith.constant 0 : i32
    %c0_i32_0 = arith.constant 0 : i32
    %c0_i32_1 = arith.constant 0 : i32
    return %arg0, %c0_i32, %c0_i32_0 : i32, i32, i32
  }
  func.func @transform_1(%arg0: i32) -> (i32, i32, i32) {
    %c0_i32 = arith.constant 0 : i32
    %c0_i32_0 = arith.constant 0 : i32
    %c0_i32_1 = arith.constant 0 : i32
    return %arg0, %c0_i32, %c0_i32_0 : i32, i32, i32
  }
  func.func @transform_2(%arg0: i32) -> (i32, i32, i32) {
    %c0_i32 = arith.constant 0 : i32
    %c0_i32_0 = arith.constant 0 : i32
    %c0_i32_1 = arith.constant 0 : i32
    return %arg0, %c0_i32, %c0_i32_0 : i32, i32, i32
  }
  func.func @transform_3(%arg0: i32) -> (i32, i32, i32) {
    %c0_i32 = arith.constant 0 : i32
    %c0_i32_0 = arith.constant 0 : i32
    %c0_i32_1 = arith.constant 0 : i32
    return %arg0, %c0_i32, %c0_i32_0 : i32, i32, i32
  }
  func.func @transform_4(%arg0: i32) -> (i32, i32, i32) {
    %c0_i32 = arith.constant 0 : i32
    %c0_i32_0 = arith.constant 0 : i32
    %c0_i32_1 = arith.constant 0 : i32
    %c0_i32_2 = arith.constant 0 : i32
    return %c0_i32, %c0_i32_0, %c0_i32_1 : i32, i32, i32
  }
  func.func @transform_5(%arg0: i32) -> (i32, i32) {
    %c0_i32 = arith.constant 0 : i32
    %c0_i32_0 = arith.constant 0 : i32
    %c0_i32_1 = arith.constant 0 : i32
    return %c0_i32, %c0_i32_0 : i32, i32
  }
  func.func @transform_6(%arg0: i32) -> (i32, i32) {
    %c0_i32 = arith.constant 0 : i32
    %c0_i32_0 = arith.constant 0 : i32
    %c0_i32_1 = arith.constant 0 : i32
    return %c0_i32, %c0_i32_0 : i32, i32
  }
  func.func @transform_7(%arg0: i32) -> (i32, i32) {
    %c0_i32 = arith.constant 0 : i32
    %c0_i32_0 = arith.constant 0 : i32
    %c0_i32_1 = arith.constant 0 : i32
    return %c0_i32, %c0_i32_0 : i32, i32
  }
  func.func @transform_8(%arg0: i32) -> (i32, i32, i32) {
    %c0_i32 = arith.constant 0 : i32
    %c0_i32_0 = arith.constant 0 : i32
    %c0_i32_1 = arith.constant 0 : i32
    return %arg0, %c0_i32, %c0_i32_0 : i32, i32, i32
  }
}

</mosaic_0001>

<llo_original>
// kernel: encoder_cnn_forward.3
$region0: #{encoder_cnn_forward.3}
  #allocation0 [shape = 'u32[]', space=smem, size = 0x4, offset = 0x4, fixed_abs, tag = 'smem constant byte address 0x4 - core index']
  #allocation1 [shape = 'u32[144,128]{1,0:T(1,128)}', space=vmem, size = 0x12000, scoped, tag = 'internal scratch']
  %s0 = inlined_call_operand.vmem [shape: bf16[2,48,128], index: 0, kind: input, shape index: {}]
  %s1 = inlined_call_operand.vmem [shape: bf16[2,48,128], index: 1, kind: input, shape index: {}]
  %s2 = inlined_call_operand.vmem [shape: bf16[2,48,128], index: 2, kind: input, shape index: {}]
  %s3 = inlined_call_operand.vmem [shape: bf16[2,48,128], index: 3, kind: input, shape index: {}]
  %s4 = inlined_call_operand.vmem [shape: bf16[9,128,128], index: 4, kind: input, shape index: {}]
  %s5 = inlined_call_operand.vmem [shape: f32[1,128], index: 5, kind: input, shape index: {}]
  %s6 = inlined_call_operand.vmem [shape: f32[128,128], index: 6, kind: input, shape index: {}]
  %s7 = inlined_call_operand.vmem [shape: f32[1,128], index: 7, kind: input, shape index: {}]
  %s8 = inlined_call_operand.hbm [shape: f32[2,1,128], index: 8, kind: output, shape index: {}]
  %s9 = sld [smem:[#allocation0]]
  $region65: #{encoder_cnn_forward.3} parent=0
    _
  %s11 = ssub.s32 1, %s9
  %s12 = scalar_select 0, %s11, %s9
  $region1: #{encoder_cnn_forward.3} parent=0
    #allocation2 [shape = 'u8[1024]{0}', space=vmem, size = 0x400, scoped, tag = 'output window, operand 0']
    #allocation3 [shape = 's32[2]{0}', space=sflag, size = 0x8, scoped, tag = 'scoped memory for encoder_cnn_forward.3']
    %13 = vsyncpa [#allocation3], 0
    %s14 = scalar_lea.sflag [#allocation3], 1
    %15 = vsyncpa %s14, 0
    loop: start=0, step=1, limit=4
    $region2: #{encoder_cnn_forward.3} parent=1 // loop_pre_header
      _
    $region3: #{encoder_cnn_forward.3} parent=1 // loop_header
      %s17 = sphi 0, %s21
      %p18 = scmp.ge.s32.totalorder %s17, 4
      %s27 = sphi 0, %s29
      %s30 = sphi 0, %s27
      %s31 = sphi 0, %s30
      %s47 = sphi 0, %s31
      %s53 = sphi 0, %s55
      %s56 = sphi 0, %s53
      %s57 = sphi 0, %s56
      %s73 = sphi 0, %s57
      %s79 = sphi 0, %s81
      %s82 = sphi 0, %s79
      %s83 = sphi 0, %s82
      %s99 = sphi 0, %s83
      %s105 = sphi 0, %s107
      %s108 = sphi 0, %s105
      %s109 = sphi 0, %s108
      %s125 = sphi 0, %s109
      %s129 = sphi 0, %s129
      %s131 = sphi 0, %s129
      %s132 = sphi 0, %s131
      %s146 = sphi 0, %s132
      %s150 = sphi 0, %s150
      %s152 = sphi 0, %s150
      %s153 = sphi 0, %s152
      %s167 = sphi 0, %s153
      %s171 = sphi 0, %s171
      %s173 = sphi 0, %s171
      %s174 = sphi 0, %s173
      %s188 = sphi 0, %s174
      %s192 = sphi 0, %s192
      %s194 = sphi 0, %s192
      %s195 = sphi 0, %s194
      %s209 = sphi 0, %s195
      %s215 = sphi 0, %s217
      %s218 = sphi 0, %s215
      %s219 = sphi 0, %s218
      %s235 = sphi 0, %s219
    $region4: #{encoder_cnn_forward.3} parent=1 // loop_header_branch
      %20 = sbr.rel (%p18) target = $region8
    $region5: #{encoder_cnn_forward.3} parent=1 // loop_body
      %s22 = ssub.s32 %s17, 1
      %s23 = ssub.s32 %s17, 2
      %s24 = sadd.s32 %s17, 1
      %s25 = ssub.s32 %s17, %s24
      %p26 = scmp.eq.s32.totalorder %s25, 0
      %s28 = sadd.s32 %s27, 1
      %s29 = scalar_select %p26, %s27, %s28
      %p32 = pneg %p26
      %p33 = scmp.eq.s32.totalorder %s17, 1
      %p34 = por %p32, %p33
      %p35 = scmp.ne.s32.totalorder %s27, %s30
      %p36 = scmp.eq.s32.totalorder %s17, 0
      %p37 = por %p35, %p36
      %p38 = scmp.ne.s32.totalorder %s27, %s30
      %p39 = scmp.eq.s32.totalorder %s22, 1
      %p40 = por %p38, %p39
      %p41 = scmp.ne.s32.totalorder %s30, %s31
      %p42 = scmp.eq.s32.totalorder %s22, 0
      %p43 = por %p41, %p42
      %p44 = scmp.ne.s32.totalorder %s30, %s31
      %p45 = scmp.eq.s32.totalorder %s23, 1
      %p46 = por %p44, %p45
      %p48 = scmp.ne.s32.totalorder %s31, %s47
      %p49 = scmp.eq.s32.totalorder %s23, 0
      %p50 = por %p48, %p49
      %s51 = ssub.s32 %s17, %s24
      %p52 = scmp.eq.s32.totalorder %s51, 0
      %s54 = sadd.s32 %s53, 1
      %s55 = scalar_select %p52, %s53, %s54
      %p58 = pneg %p52
      %p59 = scmp.eq.s32.totalorder %s17, 1
      %p60 = por %p58, %p59
      %p61 = scmp.ne.s32.totalorder %s53, %s56
      %p62 = scmp.eq.s32.totalorder %s17, 0
      %p63 = por %p61, %p62
      %p64 = scmp.ne.s32.totalorder %s53, %s56
      %p65 = scmp.eq.s32.totalorder %s22, 1
      %p66 = por %p64, %p65
      %p67 = scmp.ne.s32.totalorder %s56, %s57
      %p68 = scmp.eq.s32.totalorder %s22, 0
      %p69 = por %p67, %p68
      %p70 = scmp.ne.s32.totalorder %s56, %s57
      %p71 = scmp.eq.s32.totalorder %s23, 1
      %p72 = por %p70, %p71
      %p74 = scmp.ne.s32.totalorder %s57, %s73
      %p75 = scmp.eq.s32.totalorder %s23, 0
      %p76 = por %p74, %p75
      %s77 = ssub.s32 %s17, %s24
      %p78 = scmp.eq.s32.totalorder %s77, 0
      %s80 = sadd.s32 %s79, 1
      %s81 = scalar_select %p78, %s79, %s80
      %p84 = pneg %p78
      %p85 = scmp.eq.s32.totalorder %s17, 1
      %p86 = por %p84, %p85
      %p87 = scmp.ne.s32.totalorder %s79, %s82
      %p88 = scmp.eq.s32.totalorder %s17, 0
      %p89 = por %p87, %p88
      %p90 = scmp.ne.s32.totalorder %s79, %s82
      %p91 = scmp.eq.s32.totalorder %s22, 1
      %p92 = por %p90, %p91
      %p93 = scmp.ne.s32.totalorder %s82, %s83
      %p94 = scmp.eq.s32.totalorder %s22, 0
      %p95 = por %p93, %p94
      %p96 = scmp.ne.s32.totalorder %s82, %s83
      %p97 = scmp.eq.s32.totalorder %s23, 1
      %p98 = por %p96, %p97
      %p100 = scmp.ne.s32.totalorder %s83, %s99
      %p101 = scmp.eq.s32.totalorder %s23, 0
      %p102 = por %p100, %p101
      %s103 = ssub.s32 %s17, %s24
      %p104 = scmp.eq.s32.totalorder %s103, 0
      %s106 = sadd.s32 %s105, 1
      %s107 = scalar_select %p104, %s105, %s106
      %p110 = pneg %p104
      %p111 = scmp.eq.s32.totalorder %s17, 1
      %p112 = por %p110, %p111
      %p113 = scmp.ne.s32.totalorder %s105, %s108
      %p114 = scmp.eq.s32.totalorder %s17, 0
      %p115 = por %p113, %p114
      %p116 = scmp.ne.s32.totalorder %s105, %s108
      %p117 = scmp.eq.s32.totalorder %s22, 1
      %p118 = por %p116, %p117
      %p119 = scmp.ne.s32.totalorder %s108, %s109
      %p120 = scmp.eq.s32.totalorder %s22, 0
      %p121 = por %p119, %p120
      %p122 = scmp.ne.s32.totalorder %s108, %s109
      %p123 = scmp.eq.s32.totalorder %s23, 1
      %p124 = por %p122, %p123
      %p126 = scmp.ne.s32.totalorder %s109, %s125
      %p127 = scmp.eq.s32.totalorder %s23, 0
      %p128 = por %p126, %p127
      %s130 = sadd.s32 %s129, 1
      %p133 = scmp.eq.s32.totalorder %s17, 1
      %p134 = scmp.ne.s32.totalorder %s129, %s131
      %p135 = scmp.eq.s32.totalorder %s17, 0
      %p136 = por %p134, %p135
      %p137 = scmp.ne.s32.totalorder %s129, %s131
      %p138 = scmp.eq.s32.totalorder %s22, 1
      %p139 = por %p137, %p138
      %p140 = scmp.ne.s32.totalorder %s131, %s132
      %p141 = scmp.eq.s32.totalorder %s22, 0
      %p142 = por %p140, %p141
      %p143 = scmp.ne.s32.totalorder %s131, %s132
      %p144 = scmp.eq.s32.totalorder %s23, 1
      %p145 = por %p143, %p144
      %p147 = scmp.ne.s32.totalorder %s132, %s146
      %p148 = scmp.eq.s32.totalorder %s23, 0
      %p149 = por %p147, %p148
      %s151 = sadd.s32 %s150, 1
      %p154 = scmp.eq.s32.totalorder %s17, 1
      %p155 = scmp.ne.s32.totalorder %s150, %s152
      %p156 = scmp.eq.s32.totalorder %s17, 0
      %p157 = por %p155, %p156
      %p158 = scmp.ne.s32.totalorder %s150, %s152
      %p159 = scmp.eq.s32.totalorder %s22, 1
      %p160 = por %p158, %p159
      %p161 = scmp.ne.s32.totalorder %s152, %s153
      %p162 = scmp.eq.s32.totalorder %s22, 0
      %p163 = por %p161, %p162
      %p164 = scmp.ne.s32.totalorder %s152, %s153
      %p165 = scmp.eq.s32.totalorder %s23, 1
      %p166 = por %p164, %p165
      %p168 = scmp.ne.s32.totalorder %s153, %s167
      %p169 = scmp.eq.s32.totalorder %s23, 0
      %p170 = por %p168, %p169
      %s172 = sadd.s32 %s171, 1
      %p175 = scmp.eq.s32.totalorder %s17, 1
      %p176 = scmp.ne.s32.totalorder %s171, %s173
      %p177 = scmp.eq.s32.totalorder %s17, 0
      %p178 = por %p176, %p177
      %p179 = scmp.ne.s32.totalorder %s171, %s173
      %p180 = scmp.eq.s32.totalorder %s22, 1
      %p181 = por %p179, %p180
      %p182 = scmp.ne.s32.totalorder %s173, %s174
      %p183 = scmp.eq.s32.totalorder %s22, 0
      %p184 = por %p182, %p183
      %p185 = scmp.ne.s32.totalorder %s173, %s174
      %p186 = scmp.eq.s32.totalorder %s23, 1
      %p187 = por %p185, %p186
      %p189 = scmp.ne.s32.totalorder %s174, %s188
      %p190 = scmp.eq.s32.totalorder %s23, 0
      %p191 = por %p189, %p190
      %s193 = sadd.s32 %s192, 1
      %p196 = scmp.eq.s32.totalorder %s17, 1
      %p197 = scmp.ne.s32.totalorder %s192, %s194
      %p198 = scmp.eq.s32.totalorder %s17, 0
      %p199 = por %p197, %p198
      %p200 = scmp.ne.s32.totalorder %s192, %s194
      %p201 = scmp.eq.s32.totalorder %s22, 1
      %p202 = por %p200, %p201
      %p203 = scmp.ne.s32.totalorder %s194, %s195
      %p204 = scmp.eq.s32.totalorder %s22, 0
      %p205 = por %p203, %p204
      %p206 = scmp.ne.s32.totalorder %s194, %s195
      %p207 = scmp.eq.s32.totalorder %s23, 1
      %p208 = por %p206, %p207
      %p210 = scmp.ne.s32.totalorder %s195, %s209
      %p211 = scmp.eq.s32.totalorder %s23, 0
      %p212 = por %p210, %p211
      %s213 = ssub.s32 %s17, %s24
      %p214 = scmp.eq.s32.totalorder %s213, 0
      %s216 = sadd.s32 %s215, 1
      %s217 = scalar_select %p214, %s215, %s216
      %p220 = pneg %p214
      %p221 = scmp.eq.s32.totalorder %s17, 1
      %p222 = por %p220, %p221
      %p223 = scmp.ne.s32.totalorder %s215, %s218
      %p224 = scmp.eq.s32.totalorder %s17, 0
      %p225 = por %p223, %p224
      %p226 = scmp.ne.s32.totalorder %s215, %s218
      %p227 = scmp.eq.s32.totalorder %s22, 1
      %p228 = por %p226, %p227
      %p229 = scmp.ne.s32.totalorder %s218, %s219
      %p230 = scmp.eq.s32.totalorder %s22, 0
      %p231 = por %p229, %p230
      %p232 = scmp.ne.s32.totalorder %s218, %s219
      %p233 = scmp.eq.s32.totalorder %s23, 1
      %p234 = por %p232, %p233
      %p236 = scmp.ne.s32.totalorder %s219, %s235
      %p237 = scmp.eq.s32.totalorder %s23, 0
      %p238 = por %p236, %p237
      %p239 = scmp.le.s32.totalorder 1, %s17
      %p240 = scmp.lt.s32.totalorder %s17, 3
      %p241 = pnand %p239, %p240
      %p242 = pneg %p241
      // Predicated region
      $region9: #{encoder_cnn_forward.3} parent=5 // pred_check
        _
      $region10: #{encoder_cnn_forward.3} parent=5 // pred_check_branch
        %244 = sbr.rel (%p241) target = $region12
      $region11: #{encoder_cnn_forward.3} parent=5 // pred_region
        %s245 = ssub.s32 %s17, 1
        // Predicated region
        $region13: #{encoder_cnn_forward.3} parent=11 // pred_check
          %p246 = pneg %p142
        $region14: #{encoder_cnn_forward.3} parent=11 // pred_check_branch
          %248 = sbr.rel (%p246) target = $region16
        $region15: #{encoder_cnn_forward.3} parent=11 // pred_region
          _
        $region16: #{encoder_cnn_forward.3} parent=11 // pred_fallthru
          _
        // Predicated region
        $region17: #{encoder_cnn_forward.3} parent=11 // pred_check
          %p249 = pneg %p163
        $region18: #{encoder_cnn_forward.3} parent=11 // pred_check_branch
          %251 = sbr.rel (%p249) target = $region20
        $region19: #{encoder_cnn_forward.3} parent=11 // pred_region
          _
        $region20: #{encoder_cnn_forward.3} parent=11 // pred_fallthru
          _
        // Predicated region
        $region21: #{encoder_cnn_forward.3} parent=11 // pred_check
          %p252 = pneg %p184
        $region22: #{encoder_cnn_forward.3} parent=11 // pred_check_branch
          %254 = sbr.rel (%p252) target = $region24
        $region23: #{encoder_cnn_forward.3} parent=11 // pred_region
          _
        $region24: #{encoder_cnn_forward.3} parent=11 // pred_fallthru
          _
        // Predicated region
        $region25: #{encoder_cnn_forward.3} parent=11 // pred_check
          %p255 = pneg %p205
        $region26: #{encoder_cnn_forward.3} parent=11 // pred_check_branch
          %257 = sbr.rel (%p255) target = $region28
        $region27: #{encoder_cnn_forward.3} parent=11 // pred_region
          _
        $region28: #{encoder_cnn_forward.3} parent=11 // pred_fallthru
          _
      $region12: #{encoder_cnn_forward.3} parent=5 // pred_fallthru
        _
      %p258 = scmp.lt.s32.totalorder %s17, 2
      // Predicated region
      $region29: #{encoder_cnn_forward.3} parent=5 // pred_check
        %p259 = pneg %p258
      $region30: #{encoder_cnn_forward.3} parent=5 // pred_check_branch
        %261 = sbr.rel (%p259) target = $region32
      $region31: #{encoder_cnn_forward.3} parent=5 // pred_region
        // Predicated region
        $region33: #{encoder_cnn_forward.3} parent=31 // pred_check
          %p262 = pneg %p37
        $region34: #{encoder_cnn_forward.3} parent=31 // pred_check_branch
          %264 = sbr.rel (%p262) target = $region36
        $region35: #{encoder_cnn_forward.3} parent=31 // pred_region
          %p265 = scmp.lt.s32.totalorder %s17, 1
          %s266 = scalar_select %p265, %s17, 1
          %s267 = smul.addr %s266, 6
          %s268 = smul.addr %s267, 4
          %s269 = scalar_lea.vmem %s0, %s268
        $region36: #{encoder_cnn_forward.3} parent=31 // pred_fallthru
          _
        // Predicated region
        $region37: #{encoder_cnn_forward.3} parent=31 // pred_check
          %p270 = pneg %p63
        $region38: #{encoder_cnn_forward.3} parent=31 // pred_check_branch
          %272 = sbr.rel (%p270) target = $region40
        $region39: #{encoder_cnn_forward.3} parent=31 // pred_region
          %p273 = scmp.lt.s32.totalorder %s17, 1
          %s274 = scalar_select %p273, %s17, 1
          %s275 = smul.addr %s274, 6
          %s276 = smul.addr %s275, 4
          %s277 = scalar_lea.vmem %s1, %s276
        $region40: #{encoder_cnn_forward.3} parent=31 // pred_fallthru
          _
        // Predicated region
        $region41: #{encoder_cnn_forward.3} parent=31 // pred_check
          %p278 = pneg %p89
        $region42: #{encoder_cnn_forward.3} parent=31 // pred_check_branch
          %280 = sbr.rel (%p278) target = $region44
        $region43: #{encoder_cnn_forward.3} parent=31 // pred_region
          %p281 = scmp.lt.s32.totalorder %s17, 1
          %s282 = scalar_select %p281, %s17, 1
          %s283 = smul.addr %s282, 6
          %s284 = smul.addr %s283, 4
          %s285 = scalar_lea.vmem %s2, %s284
        $region44: #{encoder_cnn_forward.3} parent=31 // pred_fallthru
          _
        // Predicated region
        $region45: #{encoder_cnn_forward.3} parent=31 // pred_check
          %p286 = pneg %p115
        $region46: #{encoder_cnn_forward.3} parent=31 // pred_check_branch
          %288 = sbr.rel (%p286) target = $region48
        $region47: #{encoder_cnn_forward.3} parent=31 // pred_region
          %p289 = scmp.lt.s32.totalorder %s17, 1
          %s290 = scalar_select %p289, %s17, 1
          %s291 = smul.addr %s290, 6
          %s292 = smul.addr %s291, 4
          %s293 = scalar_lea.vmem %s3, %s292
        $region48: #{encoder_cnn_forward.3} parent=31 // pred_fallthru
          _
      $region32: #{encoder_cnn_forward.3} parent=5 // pred_fallthru
        _
      %p294 = scmp.le.s32.totalorder 1, %s17
      %p295 = scmp.lt.s32.totalorder %s17, 3
      %p296 = pnand %p294, %p295
      %p297 = pneg %p296
      // Predicated region
      $region49: #{encoder_cnn_forward.3} parent=5 // pred_check
        _
      $region50: #{encoder_cnn_forward.3} parent=5 // pred_check_branch
        %299 = sbr.rel (%p296) target = $region52
      $region51: #{encoder_cnn_forward.3} parent=5 // pred_region
        %s300 = ssub.s32 %s17, 1
        %p301 = scmp.lt.s32.totalorder %s22, 1
        %s302 = scalar_select %p301, %s22, 1
        %s303 = smul.addr %s302, 6
        %s304 = smul.addr %s303, 4
        %s305 = scalar_lea.vmem %s0, %s304
        %p306 = pneg %p43
        %p307 = pneg %p40
        %p308 = scmp.lt.s32.totalorder %s22, 1
        %s309 = scalar_select %p308, %s22, 1
        %s310 = smul.addr %s309, 6
        %s311 = smul.addr %s310, 4
        %s312 = scalar_lea.vmem %s1, %s311
        %p313 = pneg %p69
        %p314 = pneg %p66
        %p315 = scmp.lt.s32.totalorder %s22, 1
        %s316 = scalar_select %p315, %s22, 1
        %s317 = smul.addr %s316, 6
        %s318 = smul.addr %s317, 4
        %s319 = scalar_lea.vmem %s2, %s318
        %p320 = pneg %p95
        %p321 = pneg %p92
        %p322 = scmp.lt.s32.totalorder %s22, 1
        %s323 = scalar_select %p322, %s22, 1
        %s324 = smul.addr %s323, 6
        %s325 = smul.addr %s324, 4
        %s326 = scalar_lea.vmem %s3, %s325
        %p327 = pneg %p121
        %p328 = pneg %p118
        %p329 = pneg %p142
        %p330 = pneg %p139
        %p331 = pneg %p163
        %p332 = pneg %p160
        %p333 = pneg %p184
        %p334 = pneg %p181
        %p335 = pneg %p205
        %p336 = pneg %p202
        %p337 = pneg %p231
        %p338 = pneg %p228
        %s339 = sand.u32 %s218, 1
        %s340 = scalar_lea.sflag [#allocation3], %s339
        %s341 = sand.u32 %s218, 1
        %s342 = scalar_lea.vmem [#allocation2], %s341
        %p343 = scmp.lt.s32.totalorder %s22, 1
        %s344 = scalar_select %p343, %s22, 1
        %s345 = smul.addr %s344, 6
        %s346 = smul.addr %s345, 4
        %s347 = scalar_lea.vmem %s0, %s346
        %p348 = scmp.lt.s32.totalorder %s22, 1
        %s349 = scalar_select %p348, %s22, 1
        %s350 = smul.addr %s349, 6
        %s351 = smul.addr %s350, 4
        %s352 = scalar_lea.vmem %s1, %s351
        %p353 = scmp.lt.s32.totalorder %s22, 1
        %s354 = scalar_select %p353, %s22, 1
        %s355 = smul.addr %s354, 6
        %s356 = smul.addr %s355, 4
        %s357 = scalar_lea.vmem %s2, %s356
        %p358 = scmp.lt.s32.totalorder %s22, 1
        %s359 = scalar_select %p358, %s22, 1
        %s360 = smul.addr %s359, 6
        %s361 = smul.addr %s360, 4
        %s362 = scalar_lea.vmem %s3, %s361
        %v364 = vld [vmem:[%s347] sm:$0xf]
        %v365 = vld [vmem:[%s347 + $0x4] sm:$0xf]
        %v366 = vld [vmem:[%s347 + $0x8] sm:$0xf]
        %v367 = vld [vmem:[%s347 + $0xc] sm:$0xf]
        %v368 = vld [vmem:[%s347 + $0x10] sm:$0xf]
        %v369 = vld [vmem:[%s352] sm:$0xf]
        %v370 = vld [vmem:[%s352 + $0x4] sm:$0xf]
        %v371 = vld [vmem:[%s352 + $0x8] sm:$0xf]
        %v372 = vld [vmem:[%s352 + $0xc] sm:$0xf]
        %v373 = vld [vmem:[%s352 + $0x10] sm:$0xf]
        %v374 = vld [vmem:[%s357] sm:$0xf]
        %v375 = vld [vmem:[%s357 + $0x4] sm:$0xf]
        %v376 = vld [vmem:[%s357 + $0x8] sm:$0xf]
        %v377 = vld [vmem:[%s357 + $0xc] sm:$0xf]
        %v378 = vld [vmem:[%s357 + $0x10] sm:$0xf]
        %v379 = vld [vmem:[%s362] sm:$0xf]
        %v380 = vld [vmem:[%s362 + $0x4] sm:$0xf]
        %v381 = vld [vmem:[%s362 + $0x8] sm:$0xf]
        %v382 = vld [vmem:[%s362 + $0xc] sm:$0xf]
        %v383 = vld [vmem:[%s4] sm:$0xf]
        %v384 = vld [vmem:[%s4 + $0x4] sm:$0xf]
        %v385 = vld [vmem:[%s4 + $0x8] sm:$0xf]
        %v386 = vld [vmem:[%s4 + $0xc] sm:$0xf]
        %v387 = vld [vmem:[%s4 + $0x10] sm:$0xf]
        %v388 = vld [vmem:[%s4 + $0x14] sm:$0xf]
        %v389 = vld [vmem:[%s4 + $0x18] sm:$0xf]
        %v390 = vld [vmem:[%s4 + $0x1c] sm:$0xf]
        %v391 = vld [vmem:[%s4 + $0x20] sm:$0xf]
        %v392 = vld [vmem:[%s4 + $0x24] sm:$0xf]
        %v393 = vld [vmem:[%s4 + $0x28] sm:$0xf]
        %v394 = vld [vmem:[%s4 + $0x2c] sm:$0xf]
        %v395 = vld [vmem:[%s4 + $0x30] sm:$0xf]
        %v396 = vld [vmem:[%s4 + $0x34] sm:$0xf]
        %v397 = vld [vmem:[%s4 + $0x38] sm:$0xf]
        %v398 = vld [vmem:[%s4 + $0x3c] sm:$0xf]
        %s399 = scalar_lea.vmem %s4, 64
        %v400 = vld [vmem:[%s399] sm:$0xf]
        %v401 = vld [vmem:[%s399 + $0x4] sm:$0xf]
        %v402 = vld [vmem:[%s399 + $0x8] sm:$0xf]
        %v403 = vld [vmem:[%s399 + $0xc] sm:$0xf]
        %v404 = vld [vmem:[%s399 + $0x10] sm:$0xf]
        %v405 = vld [vmem:[%s399 + $0x14] sm:$0xf]
        %v406 = vld [vmem:[%s399 + $0x18] sm:$0xf]
        %v407 = vld [vmem:[%s399 + $0x1c] sm:$0xf]
        %v408 = vld [vmem:[%s399 + $0x20] sm:$0xf]
        %v409 = vld [vmem:[%s399 + $0x24] sm:$0xf]
        %v410 = vld [vmem:[%s399 + $0x28] sm:$0xf]
        %v411 = vld [vmem:[%s399 + $0x2c] sm:$0xf]
        %v412 = vld [vmem:[%s399 + $0x30] sm:$0xf]
        %v413 = vld [vmem:[%s399 + $0x34] sm:$0xf]
        %v414 = vld [vmem:[%s399 + $0x38] sm:$0xf]
        %v415 = vld [vmem:[%s399 + $0x3c] sm:$0xf]
        %v420 = vunpack.c.l.b16 %v369
        %v421 = vunpack.c.l.b16 %v370
        %v422 = vunpack.c.l.b16 %v371
        %v423 = vunpack.c.l.b16 %v372
        %v424 = vpack.c.b16 %v421, %v420
        %v425 = vpack.c.b16 %v423, %v422
        %v444 = vunpack.c.l.b16 %v400
        %v445 = vunpack.c.l.b16 %v401
        %v446 = vunpack.c.l.b16 %v402
        %v447 = vunpack.c.l.b16 %v403
        %v448 = vunpack.c.l.b16 %v404
        %v449 = vunpack.c.l.b16 %v405
        %v450 = vunpack.c.l.b16 %v406
        %v451 = vunpack.c.l.b16 %v407
        %v452 = vunpack.c.l.b16 %v408
        %v453 = vunpack.c.l.b16 %v409
        %v454 = vunpack.c.l.b16 %v410
        %v455 = vunpack.c.l.b16 %v411
        %v456 = vunpack.c.l.b16 %v412
        %v457 = vunpack.c.l.b16 %v413
        %v458 = vunpack.c.l.b16 %v414
        %v459 = vunpack.c.l.b16 %v415
        %v460 = vpack.c.b16 %v445, %v444
        %v461 = vpack.c.b16 %v447, %v446
        %v462 = vpack.c.b16 %v449, %v448
        %v463 = vpack.c.b16 %v451, %v450
        %v464 = vpack.c.b16 %v453, %v452
        %v465 = vpack.c.b16 %v455, %v454
        %v466 = vpack.c.b16 %v457, %v456
        %v467 = vpack.c.b16 %v459, %v458
        %476 = vmatprep.subr.bf16.mxu0 0
        %477 = vmatpush1.bf16.msra.mxu0 %v460
        %478 = vmatprep.subr.bf16.mxu0 0
        %479 = vmatpush1.bf16.msra.mxu0 %v461
        %480 = vmatprep.subr.bf16.mxu0 0
        %481 = vmatpush1.bf16.msra.mxu0 %v462
        %482 = vmatprep.subr.bf16.mxu0 0
        %483 = vmatpush1.bf16.msra.mxu0 %v463
        %484 = vmatprep.subr.bf16.mxu0 0
        %485 = vmatpush1.bf16.msra.mxu0 %v464
        %486 = vmatprep.subr.bf16.mxu0 0
        %487 = vmatpush1.bf16.msra.mxu0 %v465
        %488 = vmatprep.subr.bf16.mxu0 0
        %489 = vmatpush1.bf16.msra.mxu0 %v466
        %490 = vmatprep.subr.bf16.mxu0 0
        %491 = vmatpush1.bf16.msra.mxu0 %v467
        %492 = vmatprep.subr.bf16.mxu0 0
        %493 = vmatpush1.bf16.msra.mxu0 0
        %494 = vmatprep.subr.bf16.mxu0 0
        %495 = vmatpush1.bf16.msra.mxu0 0
        %496 = vmatprep.subr.bf16.mxu0 0
        %497 = vmatpush1.bf16.msra.mxu0 0
        %498 = vmatprep.subr.bf16.mxu0 0
        %499 = vmatpush1.bf16.msra.mxu0 0
        %500 = vmatprep.subr.bf16.mxu0 0
        %501 = vmatpush1.bf16.msra.mxu0 0
        %502 = vmatprep.subr.bf16.mxu0 0
        %503 = vmatpush1.bf16.msra.mxu0 0
        %504 = vmatprep.subr.bf16.mxu0 0
        %505 = vmatpush1.bf16.msra.mxu0 0
        %506 = vmatprep.subr.bf16.mxu0 0
        %507 = vmatpush1.bf16.msra.mxu0 0
        %508 = vmatprep.mubr.bf16.mxu0 0
        %509 = vmatmul.mubr.bf16.gmra.mrb[0].mxu0 %v424
        %v510 = vpop.f32.mrb[0].mxu0
        %v511 = vadd.f32 0.0, %v510
        %v512 = vpop.f32.mrb[0].mxu0
        %v513 = vpop.f32.mrb[0].mxu0
        %v514 = vadd.f32 0.0, %v513
        %v515 = vpop.f32.mrb[0].mxu0
        %516 = vmatprep.mubr.bf16.mxu0 0
        %517 = vmatmul.mubr.bf16.gmra.mrb[0].mxu0 %v425
        %v518 = vpop.f32.mrb[0].mxu0
        %v519 = vadd.f32 0.0, %v518
        %v520 = vpop.f32.mrb[0].mxu0
        %v521 = vpop.f32.mrb[0].mxu0
        %v522 = vadd.f32 0.0, %v521
        %v523 = vpop.f32.mrb[0].mxu0
        %524 = vdwg.mxu0
        %v529 = vunpack.c.l.b16 %v364
        %v530 = vunpack.c.l.b16 %v365
        %v531 = vunpack.c.l.b16 %v366
        %v532 = vunpack.c.l.b16 %v367
        %v533 = vpack.c.b16 %v530, %v529
        %v534 = vpack.c.b16 %v532, %v531
        %v553 = vunpack.c.l.b16 %v383
        %v554 = vunpack.c.l.b16 %v384
        %v555 = vunpack.c.l.b16 %v385
        %v556 = vunpack.c.l.b16 %v386
        %v557 = vunpack.c.l.b16 %v387
        %v558 = vunpack.c.l.b16 %v388
        %v559 = vunpack.c.l.b16 %v389
        %v560 = vunpack.c.l.b16 %v390
        %v561 = vunpack.c.l.b16 %v391
        %v562 = vunpack.c.l.b16 %v392
        %v563 = vunpack.c.l.b16 %v393
        %v564 = vunpack.c.l.b16 %v394
        %v565 = vunpack.c.l.b16 %v395
        %v566 = vunpack.c.l.b16 %v396
        %v567 = vunpack.c.l.b16 %v397
        %v568 = vunpack.c.l.b16 %v398
        %v569 = vpack.c.b16 %v554, %v553
        %v570 = vpack.c.b16 %v556, %v555
        %v571 = vpack.c.b16 %v558, %v557
        %v572 = vpack.c.b16 %v560, %v559
        %v573 = vpack.c.b16 %v562, %v561
        %v574 = vpack.c.b16 %v564, %v563
        %v575 = vpack.c.b16 %v566, %v565
        %v576 = vpack.c.b16 %v568, %v567
        %585 = vmatprep.subr.bf16.mxu0 0
        %586 = vmatpush1.bf16.msra.mxu0 %v569
        %587 = vmatprep.subr.bf16.mxu0 0
        %588 = vmatpush1.bf16.msra.mxu0 %v570
        %589 = vmatprep.subr.bf16.mxu0 0
        %590 = vmatpush1.bf16.msra.mxu0 %v571
        %591 = vmatprep.subr.bf16.mxu0 0
        %592 = vmatpush1.bf16.msra.mxu0 %v572
        %593 = vmatprep.subr.bf16.mxu0 0
        %594 = vmatpush1.bf16.msra.mxu0 %v573
        %595 = vmatprep.subr.bf16.mxu0 0
        %596 = vmatpush1.bf16.msra.mxu0 %v574
        %597 = vmatprep.subr.bf16.mxu0 0
        %598 = vmatpush1.bf16.msra.mxu0 %v575
        %599 = vmatprep.subr.bf16.mxu0 0
        %600 = vmatpush1.bf16.msra.mxu0 %v576
        %601 = vmatprep.subr.bf16.mxu0 0
        %602 = vmatpush1.bf16.msra.mxu0 0
        %603 = vmatprep.subr.bf16.mxu0 0
        %604 = vmatpush1.bf16.msra.mxu0 0
        %605 = vmatprep.subr.bf16.mxu0 0
        %606 = vmatpush1.bf16.msra.mxu0 0
        %607 = vmatprep.subr.bf16.mxu0 0
        %608 = vmatpush1.bf16.msra.mxu0 0
        %609 = vmatprep.subr.bf16.mxu0 0
        %610 = vmatpush1.bf16.msra.mxu0 0
        %611 = vmatprep.subr.bf16.mxu0 0
        %612 = vmatpush1.bf16.msra.mxu0 0
        %613 = vmatprep.subr.bf16.mxu0 0
        %614 = vmatpush1.bf16.msra.mxu0 0
        %615 = vmatprep.subr.bf16.mxu0 0
        %616 = vmatpush1.bf16.msra.mxu0 0
        %617 = vmatprep.mubr.bf16.mxu0 0
        %618 = vmatmul.mubr.bf16.gmra.mrb[0].mxu0 %v533
        %v619 = vpop.f32.mrb[0].mxu0
        %v620 = vadd.f32 %v511, %v619
        %v621 = vpop.f32.mrb[0].mxu0
        %v622 = vpop.f32.mrb[0].mxu0
        %v623 = vadd.f32 %v514, %v622
        %v624 = vpop.f32.mrb[0].mxu0
        %625 = vmatprep.mubr.bf16.mxu0 0
        %626 = vmatmul.mubr.bf16.gmra.mrb[0].mxu0 %v534
        %v627 = vpop.f32.mrb[0].mxu0
        %v628 = vadd.f32 %v519, %v627
        %v629 = vpop.f32.mrb[0].mxu0
        %v630 = vpop.f32.mrb[0].mxu0
        %v631 = vadd.f32 %v522, %v630
        %v632 = vpop.f32.mrb[0].mxu0
        %633 = vdwg.mxu0
        %s634 = scalar_lea.vmem %s4, 128
        %v635 = vld [vmem:[%s634] sm:$0xf]
        %v636 = vld [vmem:[%s634 + $0x4] sm:$0xf]
        %v637 = vld [vmem:[%s634 + $0x8] sm:$0xf]
        %v638 = vld [vmem:[%s634 + $0xc] sm:$0xf]
        %v639 = vld [vmem:[%s634 + $0x10] sm:$0xf]
        %v640 = vld [vmem:[%s634 + $0x14] sm:$0xf]
        %v641 = vld [vmem:[%s634 + $0x18] sm:$0xf]
        %v642 = vld [vmem:[%s634 + $0x1c] sm:$0xf]
        %v643 = vld [vmem:[%s634 + $0x20] sm:$0xf]
        %v644 = vld [vmem:[%s634 + $0x24] sm:$0xf]
        %v645 = vld [vmem:[%s634 + $0x28] sm:$0xf]
        %v646 = vld [vmem:[%s634 + $0x2c] sm:$0xf]
        %v647 = vld [vmem:[%s634 + $0x30] sm:$0xf]
        %v648 = vld [vmem:[%s634 + $0x34] sm:$0xf]
        %v649 = vld [vmem:[%s634 + $0x38] sm:$0xf]
        %v650 = vld [vmem:[%s634 + $0x3c] sm:$0xf]
        %v652 = vunpack.c.l.b16 %v368
        %v653 = vpack.c.b16 %v652, %v652
        %vm654 = vsmask.f32 7424
        %v656 = vshrl.u32 %v533, 16
        %v658 = vshll.u32 %v533, 16
        %v660 = vrot.slane %v658, 1
        %v661 = vor.u32 %v656, %v660
        %v663 = vshll.u32 %v534, 16
        %v665 = vrot.slane %v663, 1
        %v666 = vsel %vm654, %v661, %v665
        %v667 = vshrl.u32 %v534, 16
        %v669 = vor.u32 %v667, %v665
        %v671 = vshll.u32 %v653, 16
        %v673 = vrot.slane %v671, 1
        %v674 = vsel %vm654, %v669, %v673
        %v693 = vunpack.c.l.b16 %v635
        %v694 = vunpack.c.l.b16 %v636
        %v695 = vunpack.c.l.b16 %v637
        %v696 = vunpack.c.l.b16 %v638
        %v697 = vunpack.c.l.b16 %v639
        %v698 = vunpack.c.l.b16 %v640
        %v699 = vunpack.c.l.b16 %v641
        %v700 = vunpack.c.l.b16 %v642
        %v701 = vunpack.c.l.b16 %v643
        %v702 = vunpack.c.l.b16 %v644
        %v703 = vunpack.c.l.b16 %v645
        %v704 = vunpack.c.l.b16 %v646
        %v705 = vunpack.c.l.b16 %v647
        %v706 = vunpack.c.l.b16 %v648
        %v707 = vunpack.c.l.b16 %v649
        %v708 = vunpack.c.l.b16 %v650
        %v709 = vpack.c.b16 %v694, %v693
        %v710 = vpack.c.b16 %v696, %v695
        %v711 = vpack.c.b16 %v698, %v697
        %v712 = vpack.c.b16 %v700, %v699
        %v713 = vpack.c.b16 %v702, %v701
        %v714 = vpack.c.b16 %v704, %v703
        %v715 = vpack.c.b16 %v706, %v705
        %v716 = vpack.c.b16 %v708, %v707
        %725 = vmatprep.subr.bf16.mxu0 0
        %726 = vmatpush1.bf16.msra.mxu0 %v709
        %727 = vmatprep.subr.bf16.mxu0 0
        %728 = vmatpush1.bf16.msra.mxu0 %v710
        %729 = vmatprep.subr.bf16.mxu0 0
        %730 = vmatpush1.bf16.msra.mxu0 %v711
        %731 = vmatprep.subr.bf16.mxu0 0
        %732 = vmatpush1.bf16.msra.mxu0 %v712
        %733 = vmatprep.subr.bf16.mxu0 0
        %734 = vmatpush1.bf16.msra.mxu0 %v713
        %735 = vmatprep.subr.bf16.mxu0 0
        %736 = vmatpush1.bf16.msra.mxu0 %v714
        %737 = vmatprep.subr.bf16.mxu0 0
        %738 = vmatpush1.bf16.msra.mxu0 %v715
        %739 = vmatprep.subr.bf16.mxu0 0
        %740 = vmatpush1.bf16.msra.mxu0 %v716
        %741 = vmatprep.subr.bf16.mxu0 0
        %742 = vmatpush1.bf16.msra.mxu0 0
        %743 = vmatprep.subr.bf16.mxu0 0
        %744 = vmatpush1.bf16.msra.mxu0 0
        %745 = vmatprep.subr.bf16.mxu0 0
        %746 = vmatpush1.bf16.msra.mxu0 0
        %747 = vmatprep.subr.bf16.mxu0 0
        %748 = vmatpush1.bf16.msra.mxu0 0
        %749 = vmatprep.subr.bf16.mxu0 0
        %750 = vmatpush1.bf16.msra.mxu0 0
        %751 = vmatprep.subr.bf16.mxu0 0
        %752 = vmatpush1.bf16.msra.mxu0 0
        %753 = vmatprep.subr.bf16.mxu0 0
        %754 = vmatpush1.bf16.msra.mxu0 0
        %755 = vmatprep.subr.bf16.mxu0 0
        %756 = vmatpush1.bf16.msra.mxu0 0
        %757 = vmatprep.mubr.bf16.mxu0 0
        %758 = vmatmul.mubr.bf16.gmra.mrb[0].mxu0 %v666
        %v759 = vpop.f32.mrb[0].mxu0
        %v760 = vadd.f32 0.0, %v759
        %v761 = vpop.f32.mrb[0].mxu0
        %v762 = vpop.f32.mrb[0].mxu0
        %v763 = vadd.f32 0.0, %v762
        %v764 = vpop.f32.mrb[0].mxu0
        %765 = vmatprep.mubr.bf16.mxu0 0
        %766 = vmatmul.mubr.bf16.gmra.mrb[0].mxu0 %v674
        %v767 = vpop.f32.mrb[0].mxu0
        %v768 = vadd.f32 0.0, %v767
        %v769 = vpop.f32.mrb[0].mxu0
        %v770 = vpop.f32.mrb[0].mxu0
        %v771 = vadd.f32 0.0, %v770
        %v772 = vpop.f32.mrb[0].mxu0
        %773 = vdwg.mxu0
        %v774 = vadd.f32 %v620, %v760
        %v775 = vadd.f32 %v623, %v763
        %v776 = vadd.f32 %v628, %v768
        %v777 = vadd.f32 %v631, %v771
        %s778 = scalar_lea.vmem %s4, 192
        %v779 = vld [vmem:[%s778] sm:$0xf]
        %v780 = vld [vmem:[%s778 + $0x4] sm:$0xf]
        %v781 = vld [vmem:[%s778 + $0x8] sm:$0xf]
        %v782 = vld [vmem:[%s778 + $0xc] sm:$0xf]
        %v783 = vld [vmem:[%s778 + $0x10] sm:$0xf]
        %v784 = vld [vmem:[%s778 + $0x14] sm:$0xf]
        %v785 = vld [vmem:[%s778 + $0x18] sm:$0xf]
        %v786 = vld [vmem:[%s778 + $0x1c] sm:$0xf]
        %v787 = vld [vmem:[%s778 + $0x20] sm:$0xf]
        %v788 = vld [vmem:[%s778 + $0x24] sm:$0xf]
        %v789 = vld [vmem:[%s778 + $0x28] sm:$0xf]
        %v790 = vld [vmem:[%s778 + $0x2c] sm:$0xf]
        %v791 = vld [vmem:[%s778 + $0x30] sm:$0xf]
        %v792 = vld [vmem:[%s778 + $0x34] sm:$0xf]
        %v793 = vld [vmem:[%s778 + $0x38] sm:$0xf]
        %v794 = vld [vmem:[%s778 + $0x3c] sm:$0xf]
        %v799 = vunpack.c.l.b16 %v374
        %v800 = vunpack.c.l.b16 %v375
        %v801 = vunpack.c.l.b16 %v376
        %v802 = vunpack.c.l.b16 %v377
        %v803 = vpack.c.b16 %v800, %v799
        %v804 = vpack.c.b16 %v802, %v801
        %v823 = vunpack.c.l.b16 %v779
        %v824 = vunpack.c.l.b16 %v780
        %v825 = vunpack.c.l.b16 %v781
        %v826 = vunpack.c.l.b16 %v782
        %v827 = vunpack.c.l.b16 %v783
        %v828 = vunpack.c.l.b16 %v784
        %v829 = vunpack.c.l.b16 %v785
        %v830 = vunpack.c.l.b16 %v786
        %v831 = vunpack.c.l.b16 %v787
        %v832 = vunpack.c.l.b16 %v788
        %v833 = vunpack.c.l.b16 %v789
        %v834 = vunpack.c.l.b16 %v790
        %v835 = vunpack.c.l.b16 %v791
        %v836 = vunpack.c.l.b16 %v792
        %v837 = vunpack.c.l.b16 %v793
        %v838 = vunpack.c.l.b16 %v794
        %v839 = vpack.c.b16 %v824, %v823
        %v840 = vpack.c.b16 %v826, %v825
        %v841 = vpack.c.b16 %v828, %v827
        %v842 = vpack.c.b16 %v830, %v829
        %v843 = vpack.c.b16 %v832, %v831
        %v844 = vpack.c.b16 %v834, %v833
        %v845 = vpack.c.b16 %v836, %v835
        %v846 = vpack.c.b16 %v838, %v837
        %855 = vmatprep.subr.bf16.mxu0 0
        %856 = vmatpush1.bf16.msra.mxu0 %v839
        %857 = vmatprep.subr.bf16.mxu0 0
        %858 = vmatpush1.bf16.msra.mxu0 %v840
        %859 = vmatprep.subr.bf16.mxu0 0
        %860 = vmatpush1.bf16.msra.mxu0 %v841
        %861 = vmatprep.subr.bf16.mxu0 0
        %862 = vmatpush1.bf16.msra.mxu0 %v842
        %863 = vmatprep.subr.bf16.mxu0 0
        %864 = vmatpush1.bf16.msra.mxu0 %v843
        %865 = vmatprep.subr.bf16.mxu0 0
        %866 = vmatpush1.bf16.msra.mxu0 %v844
        %867 = vmatprep.subr.bf16.mxu0 0
        %868 = vmatpush1.bf16.msra.mxu0 %v845
        %869 = vmatprep.subr.bf16.mxu0 0
        %870 = vmatpush1.bf16.msra.mxu0 %v846
        %871 = vmatprep.subr.bf16.mxu0 0
        %872 = vmatpush1.bf16.msra.mxu0 0
        %873 = vmatprep.subr.bf16.mxu0 0
        %874 = vmatpush1.bf16.msra.mxu0 0
        %875 = vmatprep.subr.bf16.mxu0 0
        %876 = vmatpush1.bf16.msra.mxu0 0
        %877 = vmatprep.subr.bf16.mxu0 0
        %878 = vmatpush1.bf16.msra.mxu0 0
        %879 = vmatprep.subr.bf16.mxu0 0
        %880 = vmatpush1.bf16.msra.mxu0 0
        %881 = vmatprep.subr.bf16.mxu0 0
        %882 = vmatpush1.bf16.msra.mxu0 0
        %883 = vmatprep.subr.bf16.mxu0 0
        %884 = vmatpush1.bf16.msra.mxu0 0
        %885 = vmatprep.subr.bf16.mxu0 0
        %886 = vmatpush1.bf16.msra.mxu0 0
        %887 = vmatprep.mubr.bf16.mxu0 0
        %888 = vmatmul.mubr.bf16.gmra.mrb[0].mxu0 %v803
        %v889 = vpop.f32.mrb[0].mxu0
        %v890 = vadd.f32 0.0, %v889
        %v891 = vpop.f32.mrb[0].mxu0
        %v892 = vpop.f32.mrb[0].mxu0
        %v893 = vadd.f32 0.0, %v892
        %v894 = vpop.f32.mrb[0].mxu0
        %895 = vmatprep.mubr.bf16.mxu0 0
        %896 = vmatmul.mubr.bf16.gmra.mrb[0].mxu0 %v804
        %v897 = vpop.f32.mrb[0].mxu0
        %v898 = vadd.f32 0.0, %v897
        %v899 = vpop.f32.mrb[0].mxu0
        %v900 = vpop.f32.mrb[0].mxu0
        %v901 = vadd.f32 0.0, %v900
        %v902 = vpop.f32.mrb[0].mxu0
        %903 = vdwg.mxu0
        %v904 = vadd.f32 %v774, %v890
        %v905 = vadd.f32 %v775, %v893
        %v906 = vadd.f32 %v776, %v898
        %v907 = vadd.f32 %v777, %v901
        %s908 = scalar_lea.vmem %s4, 256
        %v909 = vld [vmem:[%s908] sm:$0xf]
        %v910 = vld [vmem:[%s908 + $0x4] sm:$0xf]
        %v911 = vld [vmem:[%s908 + $0x8] sm:$0xf]
        %v912 = vld [vmem:[%s908 + $0xc] sm:$0xf]
        %v913 = vld [vmem:[%s908 + $0x10] sm:$0xf]
        %v914 = vld [vmem:[%s908 + $0x14] sm:$0xf]
        %v915 = vld [vmem:[%s908 + $0x18] sm:$0xf]
        %v916 = vld [vmem:[%s908 + $0x1c] sm:$0xf]
        %v917 = vld [vmem:[%s908 + $0x20] sm:$0xf]
        %v918 = vld [vmem:[%s908 + $0x24] sm:$0xf]
        %v919 = vld [vmem:[%s908 + $0x28] sm:$0xf]
        %v920 = vld [vmem:[%s908 + $0x2c] sm:$0xf]
        %v921 = vld [vmem:[%s908 + $0x30] sm:$0xf]
        %v922 = vld [vmem:[%s908 + $0x34] sm:$0xf]
        %v923 = vld [vmem:[%s908 + $0x38] sm:$0xf]
        %v924 = vld [vmem:[%s908 + $0x3c] sm:$0xf]
        %v929 = vunpack.c.l.b16 %v379
        %v930 = vunpack.c.l.b16 %v380
        %v931 = vunpack.c.l.b16 %v381
        %v932 = vunpack.c.l.b16 %v382
        %v933 = vpack.c.b16 %v930, %v929
        %v934 = vpack.c.b16 %v932, %v931
        %v953 = vunpack.c.l.b16 %v909
        %v954 = vunpack.c.l.b16 %v910
        %v955 = vunpack.c.l.b16 %v911
        %v956 = vunpack.c.l.b16 %v912
        %v957 = vunpack.c.l.b16 %v913
        %v958 = vunpack.c.l.b16 %v914
        %v959 = vunpack.c.l.b16 %v915
        %v960 = vunpack.c.l.b16 %v916
        %v961 = vunpack.c.l.b16 %v917
        %v962 = vunpack.c.l.b16 %v918
        %v963 = vunpack.c.l.b16 %v919
        %v964 = vunpack.c.l.b16 %v920
        %v965 = vunpack.c.l.b16 %v921
        %v966 = vunpack.c.l.b16 %v922
        %v967 = vunpack.c.l.b16 %v923
        %v968 = vunpack.c.l.b16 %v924
        %v969 = vpack.c.b16 %v954, %v953
        %v970 = vpack.c.b16 %v956, %v955
        %v971 = vpack.c.b16 %v958, %v957
        %v972 = vpack.c.b16 %v960, %v959
        %v973 = vpack.c.b16 %v962, %v961
        %v974 = vpack.c.b16 %v964, %v963
        %v975 = vpack.c.b16 %v966, %v965
        %v976 = vpack.c.b16 %v968, %v967
        %985 = vmatprep.subr.bf16.mxu0 0
        %986 = vmatpush1.bf16.msra.mxu0 %v969
        %987 = vmatprep.subr.bf16.mxu0 0
        %988 = vmatpush1.bf16.msra.mxu0 %v970
        %989 = vmatprep.subr.bf16.mxu0 0
        %990 = vmatpush1.bf16.msra.mxu0 %v971
        %991 = vmatprep.subr.bf16.mxu0 0
        %992 = vmatpush1.bf16.msra.mxu0 %v972
        %993 = vmatprep.subr.bf16.mxu0 0
        %994 = vmatpush1.bf16.msra.mxu0 %v973
        %995 = vmatprep.subr.bf16.mxu0 0
        %996 = vmatpush1.bf16.msra.mxu0 %v974
        %997 = vmatprep.subr.bf16.mxu0 0
        %998 = vmatpush1.bf16.msra.mxu0 %v975
        %999 = vmatprep.subr.bf16.mxu0 0
        %1000 = vmatpush1.bf16.msra.mxu0 %v976
        %1001 = vmatprep.subr.bf16.mxu0 0
        %1002 = vmatpush1.bf16.msra.mxu0 0
        %1003 = vmatprep.subr.bf16.mxu0 0
        %1004 = vmatpush1.bf16.msra.mxu0 0
        %1005 = vmatprep.subr.bf16.mxu0 0
        %1006 = vmatpush1.bf16.msra.mxu0 0
        %1007 = vmatprep.subr.bf16.mxu0 0
        %1008 = vmatpush1.bf16.msra.mxu0 0
        %1009 = vmatprep.subr.bf16.mxu0 0
        %1010 = vmatpush1.bf16.msra.mxu0 0
        %1011 = vmatprep.subr.bf16.mxu0 0
        %1012 = vmatpush1.bf16.msra.mxu0 0
        %1013 = vmatprep.subr.bf16.mxu0 0
        %1014 = vmatpush1.bf16.msra.mxu0 0
        %1015 = vmatprep.subr.bf16.mxu0 0
        %1016 = vmatpush1.bf16.msra.mxu0 0
        %1017 = vmatprep.mubr.bf16.mxu0 0
        %1018 = vmatmul.mubr.bf16.gmra.mrb[0].mxu0 %v933
        %v1019 = vpop.f32.mrb[0].mxu0
        %v1020 = vadd.f32 0.0, %v1019
        %v1021 = vpop.f32.mrb[0].mxu0
        %v1022 = vpop.f32.mrb[0].mxu0
        %v1023 = vadd.f32 0.0, %v1022
        %v1024 = vpop.f32.mrb[0].mxu0
        %1025 = vmatprep.mubr.bf16.mxu0 0
        %1026 = vmatmul.mubr.bf16.gmra.mrb[0].mxu0 %v934
        %v1027 = vpop.f32.mrb[0].mxu0
        %v1028 = vadd.f32 0.0, %v1027
        %v1029 = vpop.f32.mrb[0].mxu0
        %v1030 = vpop.f32.mrb[0].mxu0
        %v1031 = vadd.f32 0.0, %v1030
        %v1032 = vpop.f32.mrb[0].mxu0
        %1033 = vdwg.mxu0
        %v1034 = vadd.f32 %v904, %v1020
        %v1035 = vadd.f32 %v905, %v1023
        %v1036 = vadd.f32 %v906, %v1028
        %v1037 = vadd.f32 %v907, %v1031
        %s1038 = scalar_lea.vmem %s4, 320
        %v1039 = vld [vmem:[%s1038] sm:$0xf]
        %v1040 = vld [vmem:[%s1038 + $0x4] sm:$0xf]
        %v1041 = vld [vmem:[%s1038 + $0x8] sm:$0xf]
        %v1042 = vld [vmem:[%s1038 + $0xc] sm:$0xf]
        %v1043 = vld [vmem:[%s1038 + $0x10] sm:$0xf]
        %v1044 = vld [vmem:[%s1038 + $0x14] sm:$0xf]
        %v1045 = vld [vmem:[%s1038 + $0x18] sm:$0xf]
        %v1046 = vld [vmem:[%s1038 + $0x1c] sm:$0xf]
        %v1047 = vld [vmem:[%s1038 + $0x20] sm:$0xf]
        %v1048 = vld [vmem:[%s1038 + $0x24] sm:$0xf]
        %v1049 = vld [vmem:[%s1038 + $0x28] sm:$0xf]
        %v1050 = vld [vmem:[%s1038 + $0x2c] sm:$0xf]
        %v1051 = vld [vmem:[%s1038 + $0x30] sm:$0xf]
        %v1052 = vld [vmem:[%s1038 + $0x34] sm:$0xf]
        %v1053 = vld [vmem:[%s1038 + $0x38] sm:$0xf]
        %v1054 = vld [vmem:[%s1038 + $0x3c] sm:$0xf]
        %v1056 = vunpack.c.l.b16 %v378
        %v1057 = vpack.c.b16 %v1056, %v1056
        %v1059 = vshrl.u32 %v803, 16
        %v1061 = vshll.u32 %v803, 16
        %v1063 = vrot.slane %v1061, 1
        %v1064 = vor.u32 %v1059, %v1063
        %v1066 = vshll.u32 %v804, 16
        %v1068 = vrot.slane %v1066, 1
        %v1069 = vsel %vm654, %v1064, %v1068
        %v1070 = vshrl.u32 %v804, 16
        %v1072 = vor.u32 %v1070, %v1068
        %v1074 = vshll.u32 %v1057, 16
        %v1076 = vrot.slane %v1074, 1
        %v1077 = vsel %vm654, %v1072, %v1076
        %v1096 = vunpack.c.l.b16 %v1039
        %v1097 = vunpack.c.l.b16 %v1040
        %v1098 = vunpack.c.l.b16 %v1041
        %v1099 = vunpack.c.l.b16 %v1042
        %v1100 = vunpack.c.l.b16 %v1043
        %v1101 = vunpack.c.l.b16 %v1044
        %v1102 = vunpack.c.l.b16 %v1045
        %v1103 = vunpack.c.l.b16 %v1046
        %v1104 = vunpack.c.l.b16 %v1047
        %v1105 = vunpack.c.l.b16 %v1048
        %v1106 = vunpack.c.l.b16 %v1049
        %v1107 = vunpack.c.l.b16 %v1050
        %v1108 = vunpack.c.l.b16 %v1051
        %v1109 = vunpack.c.l.b16 %v1052
        %v1110 = vunpack.c.l.b16 %v1053
        %v1111 = vunpack.c.l.b16 %v1054
        %v1112 = vpack.c.b16 %v1097, %v1096
        %v1113 = vpack.c.b16 %v1099, %v1098
        %v1114 = vpack.c.b16 %v1101, %v1100
        %v1115 = vpack.c.b16 %v1103, %v1102
        %v1116 = vpack.c.b16 %v1105, %v1104
        %v1117 = vpack.c.b16 %v1107, %v1106
        %v1118 = vpack.c.b16 %v1109, %v1108
        %v1119 = vpack.c.b16 %v1111, %v1110
        %1128 = vmatprep.subr.bf16.mxu0 0
        %1129 = vmatpush1.bf16.msra.mxu0 %v1112
        %1130 = vmatprep.subr.bf16.mxu0 0
        %1131 = vmatpush1.bf16.msra.mxu0 %v1113
        %1132 = vmatprep.subr.bf16.mxu0 0
        %1133 = vmatpush1.bf16.msra.mxu0 %v1114
        %1134 = vmatprep.subr.bf16.mxu0 0
        %1135 = vmatpush1.bf16.msra.mxu0 %v1115
        %1136 = vmatprep.subr.bf16.mxu0 0
        %1137 = vmatpush1.bf16.msra.mxu0 %v1116
        %1138 = vmatprep.subr.bf16.mxu0 0
        %1139 = vmatpush1.bf16.msra.mxu0 %v1117
        %1140 = vmatprep.subr.bf16.mxu0 0
        %1141 = vmatpush1.bf16.msra.mxu0 %v1118
        %1142 = vmatprep.subr.bf16.mxu0 0
        %1143 = vmatpush1.bf16.msra.mxu0 %v1119
        %1144 = vmatprep.subr.bf16.mxu0 0
        %1145 = vmatpush1.bf16.msra.mxu0 0
        %1146 = vmatprep.subr.bf16.mxu0 0
        %1147 = vmatpush1.bf16.msra.mxu0 0
        %1148 = vmatprep.subr.bf16.mxu0 0
        %1149 = vmatpush1.bf16.msra.mxu0 0
        %1150 = vmatprep.subr.bf16.mxu0 0
        %1151 = vmatpush1.bf16.msra.mxu0 0
        %1152 = vmatprep.subr.bf16.mxu0 0
        %1153 = vmatpush1.bf16.msra.mxu0 0
        %1154 = vmatprep.subr.bf16.mxu0 0
        %1155 = vmatpush1.bf16.msra.mxu0 0
        %1156 = vmatprep.subr.bf16.mxu0 0
        %1157 = vmatpush1.bf16.msra.mxu0 0
        %1158 = vmatprep.subr.bf16.mxu0 0
        %1159 = vmatpush1.bf16.msra.mxu0 0
        %1160 = vmatprep.mubr.bf16.mxu0 0
        %1161 = vmatmul.mubr.bf16.gmra.mrb[0].mxu0 %v1069
        %v1162 = vpop.f32.mrb[0].mxu0
        %v1163 = vadd.f32 0.0, %v1162
        %v1164 = vpop.f32.mrb[0].mxu0
        %v1165 = vpop.f32.mrb[0].mxu0
        %v1166 = vadd.f32 0.0, %v1165
        %v1167 = vpop.f32.mrb[0].mxu0
        %1168 = vmatprep.mubr.bf16.mxu0 0
        %1169 = vmatmul.mubr.bf16.gmra.mrb[0].mxu0 %v1077
        %v1170 = vpop.f32.mrb[0].mxu0
        %v1171 = vadd.f32 0.0, %v1170
        %v1172 = vpop.f32.mrb[0].mxu0
        %v1173 = vpop.f32.mrb[0].mxu0
        %v1174 = vadd.f32 0.0, %v1173
        %v1175 = vpop.f32.mrb[0].mxu0
        %1176 = vdwg.mxu0
        %v1177 = vadd.f32 %v1034, %v1163
        %v1178 = vadd.f32 %v1035, %v1166
        %v1179 = vadd.f32 %v1036, %v1171
        %v1180 = vadd.f32 %v1037, %v1174
        %s1181 = scalar_lea.vmem %s4, 384
        %v1182 = vld [vmem:[%s1181] sm:$0xf]
        %v1183 = vld [vmem:[%s1181 + $0x4] sm:$0xf]
        %v1184 = vld [vmem:[%s1181 + $0x8] sm:$0xf]
        %v1185 = vld [vmem:[%s1181 + $0xc] sm:$0xf]
        %v1186 = vld [vmem:[%s1181 + $0x10] sm:$0xf]
        %v1187 = vld [vmem:[%s1181 + $0x14] sm:$0xf]
        %v1188 = vld [vmem:[%s1181 + $0x18] sm:$0xf]
        %v1189 = vld [vmem:[%s1181 + $0x1c] sm:$0xf]
        %v1190 = vld [vmem:[%s1181 + $0x20] sm:$0xf]
        %v1191 = vld [vmem:[%s1181 + $0x24] sm:$0xf]
        %v1192 = vld [vmem:[%s1181 + $0x28] sm:$0xf]
        %v1193 = vld [vmem:[%s1181 + $0x2c] sm:$0xf]
        %v1194 = vld [vmem:[%s1181 + $0x30] sm:$0xf]
        %v1195 = vld [vmem:[%s1181 + $0x34] sm:$0xf]
        %v1196 = vld [vmem:[%s1181 + $0x38] sm:$0xf]
        %v1197 = vld [vmem:[%s1181 + $0x3c] sm:$0xf]
        %vm1198 = vsmask.f32 5376
        %v1199 = vrot.slane %v656, 2
        %v1200 = vrot.slane %v658, 3
        %v1201 = vor.u32 %v1199, %v1200
        %v1202 = vrot.slane %v667, 2
        %v1203 = vrot.slane %v663, 3
        %v1204 = vor.u32 %v1202, %v1203
        %v1205 = vsel %vm1198, %v1201, %v1204
        %v1206 = vshrl.u32 %v653, 16
        %v1208 = vrot.slane %v1206, 2
        %v1209 = vrot.slane %v671, 3
        %v1210 = vor.u32 %v1208, %v1209
        %v1211 = vsel %vm1198, %v1204, %v1210
        %v1230 = vunpack.c.l.b16 %v1182
        %v1231 = vunpack.c.l.b16 %v1183
        %v1232 = vunpack.c.l.b16 %v1184
        %v1233 = vunpack.c.l.b16 %v1185
        %v1234 = vunpack.c.l.b16 %v1186
        %v1235 = vunpack.c.l.b16 %v1187
        %v1236 = vunpack.c.l.b16 %v1188
        %v1237 = vunpack.c.l.b16 %v1189
        %v1238 = vunpack.c.l.b16 %v1190
        %v1239 = vunpack.c.l.b16 %v1191
        %v1240 = vunpack.c.l.b16 %v1192
        %v1241 = vunpack.c.l.b16 %v1193
        %v1242 = vunpack.c.l.b16 %v1194
        %v1243 = vunpack.c.l.b16 %v1195
        %v1244 = vunpack.c.l.b16 %v1196
        %v1245 = vunpack.c.l.b16 %v1197
        %v1246 = vpack.c.b16 %v1231, %v1230
        %v1247 = vpack.c.b16 %v1233, %v1232
        %v1248 = vpack.c.b16 %v1235, %v1234
        %v1249 = vpack.c.b16 %v1237, %v1236
        %v1250 = vpack.c.b16 %v1239, %v1238
        %v1251 = vpack.c.b16 %v1241, %v1240
        %v1252 = vpack.c.b16 %v1243, %v1242
        %v1253 = vpack.c.b16 %v1245, %v1244
        %1262 = vmatprep.subr.bf16.mxu0 0
        %1263 = vmatpush1.bf16.msra.mxu0 %v1246
        %1264 = vmatprep.subr.bf16.mxu0 0
        %1265 = vmatpush1.bf16.msra.mxu0 %v1247
        %1266 = vmatprep.subr.bf16.mxu0 0
        %1267 = vmatpush1.bf16.msra.mxu0 %v1248
        %1268 = vmatprep.subr.bf16.mxu0 0
        %1269 = vmatpush1.bf16.msra.mxu0 %v1249
        %1270 = vmatprep.subr.bf16.mxu0 0
        %1271 = vmatpush1.bf16.msra.mxu0 %v1250
        %1272 = vmatprep.subr.bf16.mxu0 0
        %1273 = vmatpush1.bf16.msra.mxu0 %v1251
        %1274 = vmatprep.subr.bf16.mxu0 0
        %1275 = vmatpush1.bf16.msra.mxu0 %v1252
        %1276 = vmatprep.subr.bf16.mxu0 0
        %1277 = vmatpush1.bf16.msra.mxu0 %v1253
        %1278 = vmatprep.subr.bf16.mxu0 0
        %1279 = vmatpush1.bf16.msra.mxu0 0
        %1280 = vmatprep.subr.bf16.mxu0 0
        %1281 = vmatpush1.bf16.msra.mxu0 0
        %1282 = vmatprep.subr.bf16.mxu0 0
        %1283 = vmatpush1.bf16.msra.mxu0 0
        %1284 = vmatprep.subr.bf16.mxu0 0
        %1285 = vmatpush1.bf16.msra.mxu0 0
        %1286 = vmatprep.subr.bf16.mxu0 0
        %1287 = vmatpush1.bf16.msra.mxu0 0
        %1288 = vmatprep.subr.bf16.mxu0 0
        %1289 = vmatpush1.bf16.msra.mxu0 0
        %1290 = vmatprep.subr.bf16.mxu0 0
        %1291 = vmatpush1.bf16.msra.mxu0 0
        %1292 = vmatprep.subr.bf16.mxu0 0
        %1293 = vmatpush1.bf16.msra.mxu0 0
        %1294 = vmatprep.mubr.bf16.mxu0 0
        %1295 = vmatmul.mubr.bf16.gmra.mrb[0].mxu0 %v1205
        %v1296 = vpop.f32.mrb[0].mxu0
        %v1297 = vadd.f32 0.0, %v1296
        %v1298 = vpop.f32.mrb[0].mxu0
        %v1299 = vpop.f32.mrb[0].mxu0
        %v1300 = vadd.f32 0.0, %v1299
        %v1301 = vpop.f32.mrb[0].mxu0
        %1302 = vmatprep.mubr.bf16.mxu0 0
        %1303 = vmatmul.mubr.bf16.gmra.mrb[0].mxu0 %v1211
        %v1304 = vpop.f32.mrb[0].mxu0
        %v1305 = vadd.f32 0.0, %v1304
        %v1306 = vpop.f32.mrb[0].mxu0
        %v1307 = vpop.f32.mrb[0].mxu0
        %v1308 = vadd.f32 0.0, %v1307
        %v1309 = vpop.f32.mrb[0].mxu0
        %1310 = vdwg.mxu0
        %v1311 = vadd.f32 %v1177, %v1297
        %v1312 = vadd.f32 %v1178, %v1300
        %v1313 = vadd.f32 %v1179, %v1305
        %v1314 = vadd.f32 %v1180, %v1308
        %s1315 = scalar_lea.vmem %s4, 448
        %v1316 = vld [vmem:[%s1315] sm:$0xf]
        %v1317 = vld [vmem:[%s1315 + $0x4] sm:$0xf]
        %v1318 = vld [vmem:[%s1315 + $0x8] sm:$0xf]
        %v1319 = vld [vmem:[%s1315 + $0xc] sm:$0xf]
        %v1320 = vld [vmem:[%s1315 + $0x10] sm:$0xf]
        %v1321 = vld [vmem:[%s1315 + $0x14] sm:$0xf]
        %v1322 = vld [vmem:[%s1315 + $0x18] sm:$0xf]
        %v1323 = vld [vmem:[%s1315 + $0x1c] sm:$0xf]
        %v1324 = vld [vmem:[%s1315 + $0x20] sm:$0xf]
        %v1325 = vld [vmem:[%s1315 + $0x24] sm:$0xf]
        %v1326 = vld [vmem:[%s1315 + $0x28] sm:$0xf]
        %v1327 = vld [vmem:[%s1315 + $0x2c] sm:$0xf]
        %v1328 = vld [vmem:[%s1315 + $0x30] sm:$0xf]
        %v1329 = vld [vmem:[%s1315 + $0x34] sm:$0xf]
        %v1330 = vld [vmem:[%s1315 + $0x38] sm:$0xf]
        %v1331 = vld [vmem:[%s1315 + $0x3c] sm:$0xf]
        %v1333 = vunpack.c.l.b16 %v373
        %v1334 = vpack.c.b16 %v1333, %v1333
        %v1336 = vshrl.u32 %v424, 16
        %v1338 = vrot.slane %v1336, 2
        %v1339 = vshll.u32 %v424, 16
        %v1341 = vrot.slane %v1339, 3
        %v1342 = vor.u32 %v1338, %v1341
        %v1344 = vshrl.u32 %v425, 16
        %v1346 = vrot.slane %v1344, 2
        %v1347 = vshll.u32 %v425, 16
        %v1349 = vrot.slane %v1347, 3
        %v1350 = vor.u32 %v1346, %v1349
        %v1351 = vsel %vm1198, %v1342, %v1350
        %v1353 = vshrl.u32 %v1334, 16
        %v1355 = vrot.slane %v1353, 2
        %v1356 = vshll.u32 %v1334, 16
        %v1358 = vrot.slane %v1356, 3
        %v1359 = vor.u32 %v1355, %v1358
        %v1360 = vsel %vm1198, %v1350, %v1359
        %v1379 = vunpack.c.l.b16 %v1316
        %v1380 = vunpack.c.l.b16 %v1317
        %v1381 = vunpack.c.l.b16 %v1318
        %v1382 = vunpack.c.l.b16 %v1319
        %v1383 = vunpack.c.l.b16 %v1320
        %v1384 = vunpack.c.l.b16 %v1321
        %v1385 = vunpack.c.l.b16 %v1322
        %v1386 = vunpack.c.l.b16 %v1323
        %v1387 = vunpack.c.l.b16 %v1324
        %v1388 = vunpack.c.l.b16 %v1325
        %v1389 = vunpack.c.l.b16 %v1326
        %v1390 = vunpack.c.l.b16 %v1327
        %v1391 = vunpack.c.l.b16 %v1328
        %v1392 = vunpack.c.l.b16 %v1329
        %v1393 = vunpack.c.l.b16 %v1330
        %v1394 = vunpack.c.l.b16 %v1331
        %v1395 = vpack.c.b16 %v1380, %v1379
        %v1396 = vpack.c.b16 %v1382, %v1381
        %v1397 = vpack.c.b16 %v1384, %v1383
        %v1398 = vpack.c.b16 %v1386, %v1385
        %v1399 = vpack.c.b16 %v1388, %v1387
        %v1400 = vpack.c.b16 %v1390, %v1389
        %v1401 = vpack.c.b16 %v1392, %v1391
        %v1402 = vpack.c.b16 %v1394, %v1393
        %1411 = vmatprep.subr.bf16.mxu0 0
        %1412 = vmatpush1.bf16.msra.mxu0 %v1395
        %1413 = vmatprep.subr.bf16.mxu0 0
        %1414 = vmatpush1.bf16.msra.mxu0 %v1396
        %1415 = vmatprep.subr.bf16.mxu0 0
        %1416 = vmatpush1.bf16.msra.mxu0 %v1397
        %1417 = vmatprep.subr.bf16.mxu0 0
        %1418 = vmatpush1.bf16.msra.mxu0 %v1398
        %1419 = vmatprep.subr.bf16.mxu0 0
        %1420 = vmatpush1.bf16.msra.mxu0 %v1399
        %1421 = vmatprep.subr.bf16.mxu0 0
        %1422 = vmatpush1.bf16.msra.mxu0 %v1400
        %1423 = vmatprep.subr.bf16.mxu0 0
        %1424 = vmatpush1.bf16.msra.mxu0 %v1401
        %1425 = vmatprep.subr.bf16.mxu0 0
        %1426 = vmatpush1.bf16.msra.mxu0 %v1402
        %1427 = vmatprep.subr.bf16.mxu0 0
        %1428 = vmatpush1.bf16.msra.mxu0 0
        %1429 = vmatprep.subr.bf16.mxu0 0
        %1430 = vmatpush1.bf16.msra.mxu0 0
        %1431 = vmatprep.subr.bf16.mxu0 0
        %1432 = vmatpush1.bf16.msra.mxu0 0
        %1433 = vmatprep.subr.bf16.mxu0 0
        %1434 = vmatpush1.bf16.msra.mxu0 0
        %1435 = vmatprep.subr.bf16.mxu0 0
        %1436 = vmatpush1.bf16.msra.mxu0 0
        %1437 = vmatprep.subr.bf16.mxu0 0
        %1438 = vmatpush1.bf16.msra.mxu0 0
        %1439 = vmatprep.subr.bf16.mxu0 0
        %1440 = vmatpush1.bf16.msra.mxu0 0
        %1441 = vmatprep.subr.bf16.mxu0 0
        %1442 = vmatpush1.bf16.msra.mxu0 0
        %1443 = vmatprep.mubr.bf16.mxu0 0
        %1444 = vmatmul.mubr.bf16.gmra.mrb[0].mxu0 %v1351
        %v1445 = vpop.f32.mrb[0].mxu0
        %v1446 = vadd.f32 0.0, %v1445
        %v1447 = vpop.f32.mrb[0].mxu0
        %v1448 = vpop.f32.mrb[0].mxu0
        %v1449 = vadd.f32 0.0, %v1448
        %v1450 = vpop.f32.mrb[0].mxu0
        %1451 = vmatprep.mubr.bf16.mxu0 0
        %1452 = vmatmul.mubr.bf16.gmra.mrb[0].mxu0 %v1360
        %v1453 = vpop.f32.mrb[0].mxu0
        %v1454 = vadd.f32 0.0, %v1453
        %v1455 = vpop.f32.mrb[0].mxu0
        %v1456 = vpop.f32.mrb[0].mxu0
        %v1457 = vadd.f32 0.0, %v1456
        %v1458 = vpop.f32.mrb[0].mxu0
        %1459 = vdwg.mxu0
        %v1460 = vadd.f32 %v1311, %v1446
        %v1461 = vadd.f32 %v1312, %v1449
        %v1462 = vadd.f32 %v1313, %v1454
        %v1463 = vadd.f32 %v1314, %v1457
        %s1464 = scalar_lea.vmem %s4, 512
        %v1465 = vld [vmem:[%s1464] sm:$0xf]
        %v1466 = vld [vmem:[%s1464 + $0x4] sm:$0xf]
        %v1467 = vld [vmem:[%s1464 + $0x8] sm:$0xf]
        %v1468 = vld [vmem:[%s1464 + $0xc] sm:$0xf]
        %v1469 = vld [vmem:[%s1464 + $0x10] sm:$0xf]
        %v1470 = vld [vmem:[%s1464 + $0x14] sm:$0xf]
        %v1471 = vld [vmem:[%s1464 + $0x18] sm:$0xf]
        %v1472 = vld [vmem:[%s1464 + $0x1c] sm:$0xf]
        %v1473 = vld [vmem:[%s1464 + $0x20] sm:$0xf]
        %v1474 = vld [vmem:[%s1464 + $0x24] sm:$0xf]
        %v1475 = vld [vmem:[%s1464 + $0x28] sm:$0xf]
        %v1476 = vld [vmem:[%s1464 + $0x2c] sm:$0xf]
        %v1477 = vld [vmem:[%s1464 + $0x30] sm:$0xf]
        %v1478 = vld [vmem:[%s1464 + $0x34] sm:$0xf]
        %v1479 = vld [vmem:[%s1464 + $0x38] sm:$0xf]
        %v1480 = vld [vmem:[%s1464 + $0x3c] sm:$0xf]
        %vm1481 = vcmask 1044480
        %v1482 = vrot.slane %v533, 3
        %v1483 = vrot.slane %v534, 3
        %v1484 = vsel %vm1481, %v1482, %v1483
        %v1485 = vrot.slane %v653, 3
        %v1486 = vsel %vm1481, %v1483, %v1485
        %v1505 = vunpack.c.l.b16 %v1465
        %v1506 = vunpack.c.l.b16 %v1466
        %v1507 = vunpack.c.l.b16 %v1467
        %v1508 = vunpack.c.l.b16 %v1468
        %v1509 = vunpack.c.l.b16 %v1469
        %v1510 = vunpack.c.l.b16 %v1470
        %v1511 = vunpack.c.l.b16 %v1471
        %v1512 = vunpack.c.l.b16 %v1472
        %v1513 = vunpack.c.l.b16 %v1473
        %v1514 = vunpack.c.l.b16 %v1474
        %v1515 = vunpack.c.l.b16 %v1475
        %v1516 = vunpack.c.l.b16 %v1476
        %v1517 = vunpack.c.l.b16 %v1477
        %v1518 = vunpack.c.l.b16 %v1478
        %v1519 = vunpack.c.l.b16 %v1479
        %v1520 = vunpack.c.l.b16 %v1480
        %v1521 = vpack.c.b16 %v1506, %v1505
        %v1522 = vpack.c.b16 %v1508, %v1507
        %v1523 = vpack.c.b16 %v1510, %v1509
        %v1524 = vpack.c.b16 %v1512, %v1511
        %v1525 = vpack.c.b16 %v1514, %v1513
        %v1526 = vpack.c.b16 %v1516, %v1515
        %v1527 = vpack.c.b16 %v1518, %v1517
        %v1528 = vpack.c.b16 %v1520, %v1519
        %1537 = vmatprep.subr.bf16.mxu0 0
        %1538 = vmatpush1.bf16.msra.mxu0 %v1521
        %1539 = vmatprep.subr.bf16.mxu0 0
        %1540 = vmatpush1.bf16.msra.mxu0 %v1522
        %1541 = vmatprep.subr.bf16.mxu0 0
        %1542 = vmatpush1.bf16.msra.mxu0 %v1523
        %1543 = vmatprep.subr.bf16.mxu0 0
        %1544 = vmatpush1.bf16.msra.mxu0 %v1524
        %1545 = vmatprep.subr.bf16.mxu0 0
        %1546 = vmatpush1.bf16.msra.mxu0 %v1525
        %1547 = vmatprep.subr.bf16.mxu0 0
        %1548 = vmatpush1.bf16.msra.mxu0 %v1526
        %1549 = vmatprep.subr.bf16.mxu0 0
        %1550 = vmatpush1.bf16.msra.mxu0 %v1527
        %1551 = vmatprep.subr.bf16.mxu0 0
        %1552 = vmatpush1.bf16.msra.mxu0 %v1528
        %1553 = vmatprep.subr.bf16.mxu0 0
        %1554 = vmatpush1.bf16.msra.mxu0 0
        %1555 = vmatprep.subr.bf16.mxu0 0
        %1556 = vmatpush1.bf16.msra.mxu0 0
        %1557 = vmatprep.subr.bf16.mxu0 0
        %1558 = vmatpush1.bf16.msra.mxu0 0
        %1559 = vmatprep.subr.bf16.mxu0 0
        %1560 = vmatpush1.bf16.msra.mxu0 0
        %1561 = vmatprep.subr.bf16.mxu0 0
        %1562 = vmatpush1.bf16.msra.mxu0 0
        %1563 = vmatprep.subr.bf16.mxu0 0
        %1564 = vmatpush1.bf16.msra.mxu0 0
        %1565 = vmatprep.subr.bf16.mxu0 0
        %1566 = vmatpush1.bf16.msra.mxu0 0
        %1567 = vmatprep.subr.bf16.mxu0 0
        %1568 = vmatpush1.bf16.msra.mxu0 0
        %1569 = vmatprep.mubr.bf16.mxu0 0
        %1570 = vmatmul.mubr.bf16.gmra.mrb[0].mxu0 %v1484
        %v1571 = vpop.f32.mrb[0].mxu0
        %v1572 = vadd.f32 0.0, %v1571
        %v1573 = vpop.f32.mrb[0].mxu0
        %v1574 = vpop.f32.mrb[0].mxu0
        %v1575 = vadd.f32 0.0, %v1574
        %v1576 = vpop.f32.mrb[0].mxu0
        %1577 = vmatprep.mubr.bf16.mxu0 0
        %1578 = vmatmul.mubr.bf16.gmra.mrb[0].mxu0 %v1486
        %v1579 = vpop.f32.mrb[0].mxu0
        %v1580 = vadd.f32 0.0, %v1579
        %v1581 = vpop.f32.mrb[0].mxu0
        %v1582 = vpop.f32.mrb[0].mxu0
        %v1583 = vadd.f32 0.0, %v1582
        %v1584 = vpop.f32.mrb[0].mxu0
        %1585 = vdwg.mxu0
        %v1586 = vadd.f32 %v1460, %v1572
        %v1587 = vadd.f32 %v1461, %v1575
        %v1588 = vadd.f32 %v1462, %v1580
        %v1589 = vadd.f32 %v1463, %v1583
        %v1590 = vld [vmem:[%s5] sm:$0x1]
        %v1592 = vlaneseq
        %v1593 = vshrl.u32 %v1592, 7
        %v1594 = vsub.s32 0, %v1593
        %v1595 = vrot.slane %v1590, %v1594
        %v1597 = vadd.f32 %v1586, %v1595
        %v1598 = vadd.f32 %v1587, %v1595
        %v1599 = vadd.f32 %v1588, %v1595
        %v1600 = vadd.f32 %v1589, %v1595
        %v1601 = vmax.f32 %v1597, 0.0
        %v1602 = vmax.f32 %v1598, 0.0
        %v1603 = vmax.f32 %v1599, 0.0
        %v1604 = vmax.f32 %v1600, 0.0
        %v1605 = vlaneseq
        %v1606 = vshrl.u32 %v1605, 7
        %v1607 = vadd.s32 %v1606, 8
        %v1608 = vadd.s32 %v1606, 16
        %v1609 = vadd.s32 %v1606, 24
        %vm1610 = vcmp.lt.s32.totalorder %v1606, 0
        %v1611 = vsub.s32 0, %v1606
        %v1612 = vsel %vm1610, %v1611, %v1606
        %v1613 = vmul.u32.u64.compose %v1612, 3435973837
        %v1614 = vextract.low.u32 %v1613
        %v1615 = vextract.high.u32 %v1613
        %v1616 = vshrl.u32 %v1615, 2
        %v1617 = vmul.u32 %v1616, 5
        %v1618 = vsub.s32 %v1612, %v1617
        %v1619 = vsub.s32 0, %v1618
        %v1620 = vsel %vm1610, %v1619, %v1618
        %vm1621 = vcmp.lt.s32.totalorder %v1607, 0
        %v1622 = vsub.s32 0, %v1607
        %v1623 = vsel %vm1621, %v1622, %v1607
        %v1624 = vmul.u32.u64.compose %v1623, 3435973837
        %v1625 = vextract.low.u32 %v1624
        %v1626 = vextract.high.u32 %v1624
        %v1627 = vshrl.u32 %v1626, 2
        %v1628 = vmul.u32 %v1627, 5
        %v1629 = vsub.s32 %v1623, %v1628
        %v1630 = vsub.s32 0, %v1629
        %v1631 = vsel %vm1621, %v1630, %v1629
        %vm1632 = vcmp.lt.s32.totalorder %v1608, 0
        %v1633 = vsub.s32 0, %v1608
        %v1634 = vsel %vm1632, %v1633, %v1608
        %v1635 = vmul.u32.u64.compose %v1634, 3435973837
        %v1636 = vextract.low.u32 %v1635
        %v1637 = vextract.high.u32 %v1635
        %v1638 = vshrl.u32 %v1637, 2
        %v1639 = vmul.u32 %v1638, 5
        %v1640 = vsub.s32 %v1634, %v1639
        %v1641 = vsub.s32 0, %v1640
        %v1642 = vsel %vm1632, %v1641, %v1640
        %vm1643 = vcmp.lt.s32.totalorder %v1609, 0
        %v1644 = vsub.s32 0, %v1609
        %v1645 = vsel %vm1643, %v1644, %v1609
        %v1646 = vmul.u32.u64.compose %v1645, 3435973837
        %v1647 = vextract.low.u32 %v1646
        %v1648 = vextract.high.u32 %v1646
        %v1649 = vshrl.u32 %v1648, 2
        %v1650 = vmul.u32 %v1649, 5
        %v1651 = vsub.s32 %v1645, %v1650
        %v1652 = vsub.s32 0, %v1651
        %v1653 = vsel %vm1643, %v1652, %v1651
        %vm1654 = vcmp.ne.s32.totalorder %v1620, 0
        %vm1655 = vcmp.ne.s32.totalorder %v1631, 0
        %vm1656 = vcmp.ne.s32.totalorder %v1642, 0
        %vm1657 = vcmp.ne.s32.totalorder %v1653, 0
        %vm1658 = vcmp.lt.s32.totalorder %v1620, 0
        %vm1659 = vcmp.lt.s32.totalorder %v1631, 0
        %vm1660 = vcmp.lt.s32.totalorder %v1642, 0
        %vm1661 = vcmp.lt.s32.totalorder %v1653, 0
        %vm1662 = vmand %vm1658, %vm1654
        %vm1663 = vmand %vm1659, %vm1655
        %vm1664 = vmand %vm1660, %vm1656
        %vm1665 = vmand %vm1661, %vm1657
        %v1666 = vadd.s32 %v1620, 5
        %v1667 = vadd.s32 %v1631, 5
        %v1668 = vadd.s32 %v1642, 5
        %v1669 = vadd.s32 %v1653, 5
        %v1670 = vsel %vm1662, %v1666, %v1620
        %v1671 = vsel %vm1663, %v1667, %v1631
        %v1672 = vsel %vm1664, %v1668, %v1642
        %v1673 = vsel %vm1665, %v1669, %v1653
        %vm1674 = vcmp.lt.s32.totalorder %v1670, 4
        %vm1675 = vcmp.lt.s32.totalorder %v1671, 4
        %vm1676 = vcmp.lt.s32.totalorder %v1672, 4
        %vm1677 = vcmp.lt.s32.totalorder %v1673, 4
        %vm1678 = vcmp.lt.s32.totalorder %v1606, 20
        %vm1679 = vcmp.lt.s32.totalorder %v1607, 20
        %vm1680 = vcmp.lt.s32.totalorder %v1608, 20
        %vm1681 = vcmp.lt.s32.totalorder %v1609, 20
        %vm1682 = vmand %vm1674, %vm1678
        %vm1683 = vmand %vm1675, %vm1679
        %vm1684 = vmand %vm1676, %vm1680
        %vm1685 = vmand %vm1677, %vm1681
        %v1686 = vsel %vm1682, 1, 0
        %v1687 = vsel %vm1683, 1, 0
        %v1688 = vsel %vm1684, 1, 0
        %v1689 = vsel %vm1685, 1, 0
        %vm1690 = vcmp.eq.s32.totalorder %v1686, 1
        %vm1691 = vcmp.eq.s32.totalorder %v1687, 1
        %vm1692 = vcmp.eq.s32.totalorder %v1688, 1
        %vm1693 = vcmp.eq.s32.totalorder %v1689, 1
        %v1694 = vsel %vm1690, %v1601, 0.0
        %v1695 = vsel %vm1691, %v1602, 0.0
        %v1696 = vsel %vm1692, %v1603, 0.0
        %v1697 = vsel %vm1693, %v1604, 0.0
        %v1698 = vadd.f32 %v1694, %v1695
        %v1699 = vadd.f32 %v1698, %v1696
        %v1700 = vadd.f32 %v1699, %v1697
        %v1701 = vrot.slane %v1700, 4
        %v1702 = vadd.f32 %v1700, %v1701
        %v1703 = vrot.slane %v1702, 2
        %v1704 = vadd.f32 %v1702, %v1703
        %v1705 = vrot.slane %v1704, 1
        %v1706 = vadd.f32 %v1704, %v1705
        %v1707 = vmul.f32 %v1706, 0.0625
        %v1708 = vld [vmem:[%s6] sm:$0xff]
        %v1709 = vld [vmem:[%s6 + $0x8] sm:$0xff]
        %v1710 = vld [vmem:[%s6 + $0x10] sm:$0xff]
        %v1711 = vld [vmem:[%s6 + $0x18] sm:$0xff]
        %v1712 = vld [vmem:[%s6 + $0x20] sm:$0xff]
        %v1713 = vld [vmem:[%s6 + $0x28] sm:$0xff]
        %v1714 = vld [vmem:[%s6 + $0x30] sm:$0xff]
        %v1715 = vld [vmem:[%s6 + $0x38] sm:$0xff]
        %v1716 = vld [vmem:[%s6 + $0x40] sm:$0xff]
        %v1717 = vld [vmem:[%s6 + $0x48] sm:$0xff]
        %v1718 = vld [vmem:[%s6 + $0x50] sm:$0xff]
        %v1719 = vld [vmem:[%s6 + $0x58] sm:$0xff]
        %v1720 = vld [vmem:[%s6 + $0x60] sm:$0xff]
        %v1721 = vld [vmem:[%s6 + $0x68] sm:$0xff]
        %v1722 = vld [vmem:[%s6 + $0x70] sm:$0xff]
        %v1723 = vld [vmem:[%s6 + $0x78] sm:$0xff]
        %v1724 = vld [vmem:[%s7] sm:$0x1]
        %1725 = vmatprep.subr.mxu0 0.0
        %1726 = vmatpush1.msra.mxu0 %v1708
        %1727 = vmatprep.subr.mxu0 0.0
        %1728 = vmatpush1.msra.mxu0 %v1709
        %1729 = vmatprep.subr.mxu0 0.0
        %1730 = vmatpush1.msra.mxu0 %v1710
        %1731 = vmatprep.subr.mxu0 0.0
        %1732 = vmatpush1.msra.mxu0 %v1711
        %1733 = vmatprep.subr.mxu0 0.0
        %1734 = vmatpush1.msra.mxu0 %v1712
        %1735 = vmatprep.subr.mxu0 0.0
        %1736 = vmatpush1.msra.mxu0 %v1713
        %1737 = vmatprep.subr.mxu0 0.0
        %1738 = vmatpush1.msra.mxu0 %v1714
        %1739 = vmatprep.subr.mxu0 0.0
        %1740 = vmatpush1.msra.mxu0 %v1715
        %1741 = vmatprep.subr.mxu0 0.0
        %1742 = vmatpush1.msra.mxu0 %v1716
        %1743 = vmatprep.subr.mxu0 0.0
        %1744 = vmatpush1.msra.mxu0 %v1717
        %1745 = vmatprep.subr.mxu0 0.0
        %1746 = vmatpush1.msra.mxu0 %v1718
        %1747 = vmatprep.subr.mxu0 0.0
        %1748 = vmatpush1.msra.mxu0 %v1719
        %1749 = vmatprep.subr.mxu0 0.0
        %1750 = vmatpush1.msra.mxu0 %v1720
        %1751 = vmatprep.subr.mxu0 0.0
        %1752 = vmatpush1.msra.mxu0 %v1721
        %1753 = vmatprep.subr.mxu0 0.0
        %1754 = vmatpush1.msra.mxu0 %v1722
        %1755 = vmatprep.subr.mxu0 0.0
        %1756 = vmatpush1.msra.mxu0 %v1723
        %1757 = vmatprep.subr.mxu0 0.0
        %1758 = vmatpush1.msra.mxu0 0.0
        %1759 = vmatprep.subr.mxu0 0.0
        %1760 = vmatpush1.msra.mxu0 0.0
        %1761 = vmatprep.subr.mxu0 0.0
        %1762 = vmatpush1.msra.mxu0 0.0
        %1763 = vmatprep.subr.mxu0 0.0
        %1764 = vmatpush1.msra.mxu0 0.0
        %1765 = vmatprep.subr.mxu0 0.0
        %1766 = vmatpush1.msra.mxu0 0.0
        %1767 = vmatprep.subr.mxu0 0.0
        %1768 = vmatpush1.msra.mxu0 0.0
        %1769 = vmatprep.subr.mxu0 0.0
        %1770 = vmatpush1.msra.mxu0 0.0
        %1771 = vmatprep.subr.mxu0 0.0
        %1772 = vmatpush1.msra.mxu0 0.0
        %1773 = vmatprep.subr.mxu0 0.0
        %1774 = vmatpush1.msra.mxu0 0.0
        %1775 = vmatprep.subr.mxu0 0.0
        %1776 = vmatpush1.msra.mxu0 0.0
        %1777 = vmatprep.subr.mxu0 0.0
        %1778 = vmatpush1.msra.mxu0 0.0
        %1779 = vmatprep.subr.mxu0 0.0
        %1780 = vmatpush1.msra.mxu0 0.0
        %1781 = vmatprep.subr.mxu0 0.0
        %1782 = vmatpush1.msra.mxu0 0.0
        %1783 = vmatprep.subr.mxu0 0.0
        %1784 = vmatpush1.msra.mxu0 0.0
        %1785 = vmatprep.subr.mxu0 0.0
        %1786 = vmatpush1.msra.mxu0 0.0
        %1787 = vmatprep.subr.mxu0 0.0
        %1788 = vmatpush1.msra.mxu0 0.0
        %1789 = vmatprep.mubr.f32.mxu0 0.0
        %1790 = vmatmul.mubr.f32.gmra.mrb[0].mxu0 %v1707
        %v1791 = vpop.f32.mrb[0].mxu0
        %v1792 = vadd.f32 %v1724, %v1791
        %v1793 = vpop.f32.mrb[0].mxu0
        %1794 = vdwg.mxu0
        %1795 = vst [vmem:[%s342] sm:$0x1] %v1792
        %s1796 = sand.u32 %s218, 1
        %s1797 = scalar_lea.sflag [#allocation3], %s1796
        %s1798 = sand.u32 %s218, 1
        %s1799 = scalar_lea.vmem [#allocation2], %s1798
        // Predicated region
        $region53: #{encoder_cnn_forward.3} parent=51 // pred_check
          %p1800 = pneg %p228
        $region54: #{encoder_cnn_forward.3} parent=51 // pred_check_branch
          %1802 = sbr.rel (%p1800) target = $region56
        $region55: #{encoder_cnn_forward.3} parent=51 // pred_region
          %s1804 = ssub.s32 16, 16
          %1805 = vsyncadd %s1797, %s1804
          %s1806 = smul.addr %s22, 16
          %s1807 = scalar_lea.hbm %s8, %s1806
          %s1809 = sshll.u32 %s1799, 4
          %s1810 = int_to_ptr.vmem [resolvable:$true] %s1809
          %1812 = dma.vmem_to_hbm [thread:$0]  %s1810, 16, %s1807, %s1797
        $region56: #{encoder_cnn_forward.3} parent=51 // pred_fallthru
          _
      $region52: #{encoder_cnn_forward.3} parent=5 // pred_fallthru
        _
      %p1813 = scmp.le.s32.totalorder 2, %s17
      // Predicated region
      $region57: #{encoder_cnn_forward.3} parent=5 // pred_check
        %p1814 = pneg %p1813
      $region58: #{encoder_cnn_forward.3} parent=5 // pred_check_branch
        %1816 = sbr.rel (%p1814) target = $region60
      $region59: #{encoder_cnn_forward.3} parent=5 // pred_region
        %s1817 = ssub.s32 %s17, 2
        // Predicated region
        $region61: #{encoder_cnn_forward.3} parent=59 // pred_check
          %p1818 = pneg %p234
        $region62: #{encoder_cnn_forward.3} parent=59 // pred_check_branch
          %1820 = sbr.rel (%p1818) target = $region64
        $region63: #{encoder_cnn_forward.3} parent=59 // pred_region
          %s1821 = sand.u32 %s219, 1
          %s1822 = scalar_lea.sflag [#allocation3], %s1821
          %s1823 = sand.u32 %s219, 1
          %s1824 = scalar_lea.vmem [#allocation2], %s1823
          %1825 = dma.done %s1822, 16
        $region64: #{encoder_cnn_forward.3} parent=59 // pred_fallthru
          _
      $region60: #{encoder_cnn_forward.3} parent=5 // pred_fallthru
        _
    $region6: #{encoder_cnn_forward.3} parent=1 // loop_footer
      %s21 = sadd.s32 1, %s17
    $region7: #{encoder_cnn_forward.3} parent=1 // loop_footer_branch
      %16 = sbr.rel target = $region3
    $region8: #{encoder_cnn_forward.3} parent=1 // loop_exit
      _
    %1826 = vsyncpa [#allocation3], 1
    %s1827 = scalar_lea.sflag [#allocation3], 1
    %1828 = vsyncpa %s1827, 1

// kernel: encoder_cnn_forward.2
$region0: #{encoder_cnn_forward.2}
  #allocation0 [shape = 'u32[]', space=smem, size = 0x4, offset = 0x4, fixed_abs, tag = 'smem constant byte address 0x4 - core index']
  #allocation1 [shape = 'u32[144,128]{1,0:T(1,128)}', space=vmem, size = 0x12000, scoped, tag = 'internal scratch']
  %s0 = inlined_call_operand.vmem [shape: bf16[2,96,128], index: 0, kind: input, shape index: {}]
  %s1 = inlined_call_operand.vmem [shape: bf16[2,96,128], index: 1, kind: input, shape index: {}]
  %s2 = inlined_call_operand.vmem [shape: bf16[2,96,128], index: 2, kind: input, shape index: {}]
  %s3 = inlined_call_operand.vmem [shape: bf16[2,96,128], index: 3, kind: input, shape index: {}]
  %s4 = inlined_call_operand.vmem [shape: bf16[9,128,128], index: 4, kind: input, shape index: {}]
  %s5 = inlined_call_operand.vmem [shape: f32[1,128], index: 5, kind: input, shape index: {}]
  %s6 = inlined_call_operand.vmem [shape: bf16[2,80,128], index: 6, kind: output, shape index: {}]
  %s7 = sld [smem:[#allocation0]]
  $region57: #{encoder_cnn_forward.2} parent=0
    _
  %s9 = ssub.s32 1, %s7
  %s10 = scalar_select 0, %s9, %s7
  loop: start=0, step=1, limit=4
  $region2: #{encoder_cnn_forward.2} parent=0 // loop_pre_header
    _
  $region3: #{encoder_cnn_forward.2} parent=0 // loop_header
    %s12 = sphi 0, %s16
    %p13 = scmp.ge.s32.totalorder %s12, 4
    %s22 = sphi 0, %s24
    %s25 = sphi 0, %s22
    %s26 = sphi 0, %s25
    %s42 = sphi 0, %s26
    %s48 = sphi 0, %s50
    %s51 = sphi 0, %s48
    %s52 = sphi 0, %s51
    %s68 = sphi 0, %s52
    %s74 = sphi 0, %s76
    %s77 = sphi 0, %s74
    %s78 = sphi 0, %s77
    %s94 = sphi 0, %s78
    %s100 = sphi 0, %s102
    %s103 = sphi 0, %s100
    %s104 = sphi 0, %s103
    %s120 = sphi 0, %s104
    %s124 = sphi 0, %s124
    %s126 = sphi 0, %s124
    %s127 = sphi 0, %s126
    %s141 = sphi 0, %s127
    %s145 = sphi 0, %s145
    %s147 = sphi 0, %s145
    %s148 = sphi 0, %s147
    %s162 = sphi 0, %s148
    %s168 = sphi 0, %s170
    %s171 = sphi 0, %s168
    %s172 = sphi 0, %s171
    %s188 = sphi 0, %s172
  $region4: #{encoder_cnn_forward.2} parent=0 // loop_header_branch
    %15 = sbr.rel (%p13) target = $region8
  $region5: #{encoder_cnn_forward.2} parent=0 // loop_body
    %s17 = ssub.s32 %s12, 1
    %s18 = ssub.s32 %s12, 2
    %s19 = sadd.s32 %s12, 1
    %s20 = ssub.s32 %s12, %s19
    %p21 = scmp.eq.s32.totalorder %s20, 0
    %s23 = sadd.s32 %s22, 1
    %s24 = scalar_select %p21, %s22, %s23
    %p27 = pneg %p21
    %p28 = scmp.eq.s32.totalorder %s12, 1
    %p29 = por %p27, %p28
    %p30 = scmp.ne.s32.totalorder %s22, %s25
    %p31 = scmp.eq.s32.totalorder %s12, 0
    %p32 = por %p30, %p31
    %p33 = scmp.ne.s32.totalorder %s22, %s25
    %p34 = scmp.eq.s32.totalorder %s17, 1
    %p35 = por %p33, %p34
    %p36 = scmp.ne.s32.totalorder %s25, %s26
    %p37 = scmp.eq.s32.totalorder %s17, 0
    %p38 = por %p36, %p37
    %p39 = scmp.ne.s32.totalorder %s25, %s26
    %p40 = scmp.eq.s32.totalorder %s18, 1
    %p41 = por %p39, %p40
    %p43 = scmp.ne.s32.totalorder %s26, %s42
    %p44 = scmp.eq.s32.totalorder %s18, 0
    %p45 = por %p43, %p44
    %s46 = ssub.s32 %s12, %s19
    %p47 = scmp.eq.s32.totalorder %s46, 0
    %s49 = sadd.s32 %s48, 1
    %s50 = scalar_select %p47, %s48, %s49
    %p53 = pneg %p47
    %p54 = scmp.eq.s32.totalorder %s12, 1
    %p55 = por %p53, %p54
    %p56 = scmp.ne.s32.totalorder %s48, %s51
    %p57 = scmp.eq.s32.totalorder %s12, 0
    %p58 = por %p56, %p57
    %p59 = scmp.ne.s32.totalorder %s48, %s51
    %p60 = scmp.eq.s32.totalorder %s17, 1
    %p61 = por %p59, %p60
    %p62 = scmp.ne.s32.totalorder %s51, %s52
    %p63 = scmp.eq.s32.totalorder %s17, 0
    %p64 = por %p62, %p63
    %p65 = scmp.ne.s32.totalorder %s51, %s52
    %p66 = scmp.eq.s32.totalorder %s18, 1
    %p67 = por %p65, %p66
    %p69 = scmp.ne.s32.totalorder %s52, %s68
    %p70 = scmp.eq.s32.totalorder %s18, 0
    %p71 = por %p69, %p70
    %s72 = ssub.s32 %s12, %s19
    %p73 = scmp.eq.s32.totalorder %s72, 0
    %s75 = sadd.s32 %s74, 1
    %s76 = scalar_select %p73, %s74, %s75
    %p79 = pneg %p73
    %p80 = scmp.eq.s32.totalorder %s12, 1
    %p81 = por %p79, %p80
    %p82 = scmp.ne.s32.totalorder %s74, %s77
    %p83 = scmp.eq.s32.totalorder %s12, 0
    %p84 = por %p82, %p83
    %p85 = scmp.ne.s32.totalorder %s74, %s77
    %p86 = scmp.eq.s32.totalorder %s17, 1
    %p87 = por %p85, %p86
    %p88 = scmp.ne.s32.totalorder %s77, %s78
    %p89 = scmp.eq.s32.totalorder %s17, 0
    %p90 = por %p88, %p89
    %p91 = scmp.ne.s32.totalorder %s77, %s78
    %p92 = scmp.eq.s32.totalorder %s18, 1
    %p93 = por %p91, %p92
    %p95 = scmp.ne.s32.totalorder %s78, %s94
    %p96 = scmp.eq.s32.totalorder %s18, 0
    %p97 = por %p95, %p96
    %s98 = ssub.s32 %s12, %s19
    %p99 = scmp.eq.s32.totalorder %s98, 0
    %s101 = sadd.s32 %s100, 1
    %s102 = scalar_select %p99, %s100, %s101
    %p105 = pneg %p99
    %p106 = scmp.eq.s32.totalorder %s12, 1
    %p107 = por %p105, %p106
    %p108 = scmp.ne.s32.totalorder %s100, %s103
    %p109 = scmp.eq.s32.totalorder %s12, 0
    %p110 = por %p108, %p109
    %p111 = scmp.ne.s32.totalorder %s100, %s103
    %p112 = scmp.eq.s32.totalorder %s17, 1
    %p113 = por %p111, %p112
    %p114 = scmp.ne.s32.totalorder %s103, %s104
    %p115 = scmp.eq.s32.totalorder %s17, 0
    %p116 = por %p114, %p115
    %p117 = scmp.ne.s32.totalorder %s103, %s104
    %p118 = scmp.eq.s32.totalorder %s18, 1
    %p119 = por %p117, %p118
    %p121 = scmp.ne.s32.totalorder %s104, %s120
    %p122 = scmp.eq.s32.totalorder %s18, 0
    %p123 = por %p121, %p122
    %s125 = sadd.s32 %s124, 1
    %p128 = scmp.eq.s32.totalorder %s12, 1
    %p129 = scmp.ne.s32.totalorder %s124, %s126
    %p130 = scmp.eq.s32.totalorder %s12, 0
    %p131 = por %p129, %p130
    %p132 = scmp.ne.s32.totalorder %s124, %s126
    %p133 = scmp.eq.s32.totalorder %s17, 1
    %p134 = por %p132, %p133
    %p135 = scmp.ne.s32.totalorder %s126, %s127
    %p136 = scmp.eq.s32.totalorder %s17, 0
    %p137 = por %p135, %p136
    %p138 = scmp.ne.s32.totalorder %s126, %s127
    %p139 = scmp.eq.s32.totalorder %s18, 1
    %p140 = por %p138, %p139
    %p142 = scmp.ne.s32.totalorder %s127, %s141
    %p143 = scmp.eq.s32.totalorder %s18, 0
    %p144 = por %p142, %p143
    %s146 = sadd.s32 %s145, 1
    %p149 = scmp.eq.s32.totalorder %s12, 1
    %p150 = scmp.ne.s32.totalorder %s145, %s147
    %p151 = scmp.eq.s32.totalorder %s12, 0
    %p152 = por %p150, %p151
    %p153 = scmp.ne.s32.totalorder %s145, %s147
    %p154 = scmp.eq.s32.totalorder %s17, 1
    %p155 = por %p153, %p154
    %p156 = scmp.ne.s32.totalorder %s147, %s148
    %p157 = scmp.eq.s32.totalorder %s17, 0
    %p158 = por %p156, %p157
    %p159 = scmp.ne.s32.totalorder %s147, %s148
    %p160 = scmp.eq.s32.totalorder %s18, 1
    %p161 = por %p159, %p160
    %p163 = scmp.ne.s32.totalorder %s148, %s162
    %p164 = scmp.eq.s32.totalorder %s18, 0
    %p165 = por %p163, %p164
    %s166 = ssub.s32 %s12, %s19
    %p167 = scmp.eq.s32.totalorder %s166, 0
    %s169 = sadd.s32 %s168, 1
    %s170 = scalar_select %p167, %s168, %s169
    %p173 = pneg %p167
    %p174 = scmp.eq.s32.totalorder %s12, 1
    %p175 = por %p173, %p174
    %p176 = scmp.ne.s32.totalorder %s168, %s171
    %p177 = scmp.eq.s32.totalorder %s12, 0
    %p178 = por %p176, %p177
    %p179 = scmp.ne.s32.totalorder %s168, %s171
    %p180 = scmp.eq.s32.totalorder %s17, 1
    %p181 = por %p179, %p180
    %p182 = scmp.ne.s32.totalorder %s171, %s172
    %p183 = scmp.eq.s32.totalorder %s17, 0
    %p184 = por %p182, %p183
    %p185 = scmp.ne.s32.totalorder %s171, %s172
    %p186 = scmp.eq.s32.totalorder %s18, 1
    %p187 = por %p185, %p186
    %p189 = scmp.ne.s32.totalorder %s172, %s188
    %p190 = scmp.eq.s32.totalorder %s18, 0
    %p191 = por %p189, %p190
    %p192 = scmp.le.s32.totalorder 1, %s12
    %p193 = scmp.lt.s32.totalorder %s12, 3
    %p194 = pnand %p192, %p193
    %p195 = pneg %p194
    // Predicated region
    $region9: #{encoder_cnn_forward.2} parent=5 // pred_check
      _
    $region10: #{encoder_cnn_forward.2} parent=5 // pred_check_branch
      %197 = sbr.rel (%p194) target = $region12
    $region11: #{encoder_cnn_forward.2} parent=5 // pred_region
      %s198 = ssub.s32 %s12, 1
      // Predicated region
      $region13: #{encoder_cnn_forward.2} parent=11 // pred_check
        %p199 = pneg %p137
      $region14: #{encoder_cnn_forward.2} parent=11 // pred_check_branch
        %201 = sbr.rel (%p199) target = $region16
      $region15: #{encoder_cnn_forward.2} parent=11 // pred_region
        _
      $region16: #{encoder_cnn_forward.2} parent=11 // pred_fallthru
        _
      // Predicated region
      $region17: #{encoder_cnn_forward.2} parent=11 // pred_check
        %p202 = pneg %p158
      $region18: #{encoder_cnn_forward.2} parent=11 // pred_check_branch
        %204 = sbr.rel (%p202) target = $region20
      $region19: #{encoder_cnn_forward.2} parent=11 // pred_region
        _
      $region20: #{encoder_cnn_forward.2} parent=11 // pred_fallthru
        _
    $region12: #{encoder_cnn_forward.2} parent=5 // pred_fallthru
      _
    %p205 = scmp.lt.s32.totalorder %s12, 2
    // Predicated region
    $region21: #{encoder_cnn_forward.2} parent=5 // pred_check
      %p206 = pneg %p205
    $region22: #{encoder_cnn_forward.2} parent=5 // pred_check_branch
      %208 = sbr.rel (%p206) target = $region24
    $region23: #{encoder_cnn_forward.2} parent=5 // pred_region
      // Predicated region
      $region25: #{encoder_cnn_forward.2} parent=23 // pred_check
        %p209 = pneg %p32
      $region26: #{encoder_cnn_forward.2} parent=23 // pred_check_branch
        %211 = sbr.rel (%p209) target = $region28
      $region27: #{encoder_cnn_forward.2} parent=23 // pred_region
        %p212 = scmp.lt.s32.totalorder %s12, 1
        %s213 = scalar_select %p212, %s12, 1
        %s214 = smul.addr %s213, 12
        %s215 = smul.addr %s214, 4
        %s216 = scalar_lea.vmem %s0, %s215
      $region28: #{encoder_cnn_forward.2} parent=23 // pred_fallthru
        _
      // Predicated region
      $region29: #{encoder_cnn_forward.2} parent=23 // pred_check
        %p217 = pneg %p58
      $region30: #{encoder_cnn_forward.2} parent=23 // pred_check_branch
        %219 = sbr.rel (%p217) target = $region32
      $region31: #{encoder_cnn_forward.2} parent=23 // pred_region
        %p220 = scmp.lt.s32.totalorder %s12, 1
        %s221 = scalar_select %p220, %s12, 1
        %s222 = smul.addr %s221, 12
        %s223 = smul.addr %s222, 4
        %s224 = scalar_lea.vmem %s1, %s223
      $region32: #{encoder_cnn_forward.2} parent=23 // pred_fallthru
        _
      // Predicated region
      $region33: #{encoder_cnn_forward.2} parent=23 // pred_check
        %p225 = pneg %p84
      $region34: #{encoder_cnn_forward.2} parent=23 // pred_check_branch
        %227 = sbr.rel (%p225) target = $region36
      $region35: #{encoder_cnn_forward.2} parent=23 // pred_region
        %p228 = scmp.lt.s32.totalorder %s12, 1
        %s229 = scalar_select %p228, %s12, 1
        %s230 = smul.addr %s229, 12
        %s231 = smul.addr %s230, 4
        %s232 = scalar_lea.vmem %s2, %s231
      $region36: #{encoder_cnn_forward.2} parent=23 // pred_fallthru
        _
      // Predicated region
      $region37: #{encoder_cnn_forward.2} parent=23 // pred_check
        %p233 = pneg %p110
      $region38: #{encoder_cnn_forward.2} parent=23 // pred_check_branch
        %235 = sbr.rel (%p233) target = $region40
      $region39: #{encoder_cnn_forward.2} parent=23 // pred_region
        %p236 = scmp.lt.s32.totalorder %s12, 1
        %s237 = scalar_select %p236, %s12, 1
        %s238 = smul.addr %s237, 12
        %s239 = smul.addr %s238, 4
        %s240 = scalar_lea.vmem %s3, %s239
      $region40: #{encoder_cnn_forward.2} parent=23 // pred_fallthru
        _
    $region24: #{encoder_cnn_forward.2} parent=5 // pred_fallthru
      _
    %p241 = scmp.le.s32.totalorder 1, %s12
    %p242 = scmp.lt.s32.totalorder %s12, 3
    %p243 = pnand %p241, %p242
    %p244 = pneg %p243
    // Predicated region
    $region41: #{encoder_cnn_forward.2} parent=5 // pred_check
      _
    $region42: #{encoder_cnn_forward.2} parent=5 // pred_check_branch
      %246 = sbr.rel (%p243) target = $region44
    $region43: #{encoder_cnn_forward.2} parent=5 // pred_region
      %s247 = ssub.s32 %s12, 1
      %p248 = scmp.lt.s32.totalorder %s17, 1
      %s249 = scalar_select %p248, %s17, 1
      %s250 = smul.addr %s249, 12
      %s251 = smul.addr %s250, 4
      %s252 = scalar_lea.vmem %s0, %s251
      %p253 = pneg %p38
      %p254 = pneg %p35
      %p255 = scmp.lt.s32.totalorder %s17, 1
      %s256 = scalar_select %p255, %s17, 1
      %s257 = smul.addr %s256, 12
      %s258 = smul.addr %s257, 4
      %s259 = scalar_lea.vmem %s1, %s258
      %p260 = pneg %p64
      %p261 = pneg %p61
      %p262 = scmp.lt.s32.totalorder %s17, 1
      %s263 = scalar_select %p262, %s17, 1
      %s264 = smul.addr %s263, 12
      %s265 = smul.addr %s264, 4
      %s266 = scalar_lea.vmem %s2, %s265
      %p267 = pneg %p90
      %p268 = pneg %p87
      %p269 = scmp.lt.s32.totalorder %s17, 1
      %s270 = scalar_select %p269, %s17, 1
      %s271 = smul.addr %s270, 12
      %s272 = smul.addr %s271, 4
      %s273 = scalar_lea.vmem %s3, %s272
      %p274 = pneg %p116
      %p275 = pneg %p113
      %p276 = pneg %p137
      %p277 = pneg %p134
      %p278 = pneg %p158
      %p279 = pneg %p155
      %p280 = pneg %p184
      %p281 = pneg %p181
      %p282 = scmp.lt.s32.totalorder %s17, 1
      %s283 = scalar_select %p282, %s17, 1
      %s284 = smul.addr %s283, 10
      %s285 = smul.addr %s284, 4
      %s286 = scalar_lea.vmem %s6, %s285
      %p287 = scmp.lt.s32.totalorder %s17, 1
      %s288 = scalar_select %p287, %s17, 1
      %s289 = smul.addr %s288, 12
      %s290 = smul.addr %s289, 4
      %s291 = scalar_lea.vmem %s0, %s290
      %p292 = scmp.lt.s32.totalorder %s17, 1
      %s293 = scalar_select %p292, %s17, 1
      %s294 = smul.addr %s293, 12
      %s295 = smul.addr %s294, 4
      %s296 = scalar_lea.vmem %s1, %s295
      %p297 = scmp.lt.s32.totalorder %s17, 1
      %s298 = scalar_select %p297, %s17, 1
      %s299 = smul.addr %s298, 12
      %s300 = smul.addr %s299, 4
      %s301 = scalar_lea.vmem %s2, %s300
      %p302 = scmp.lt.s32.totalorder %s17, 1
      %s303 = scalar_select %p302, %s17, 1
      %s304 = smul.addr %s303, 12
      %s305 = smul.addr %s304, 4
      %s306 = scalar_lea.vmem %s3, %s305
      %p307 = scmp.lt.s32.totalorder %s17, 1
      %s308 = scalar_select %p307, %s17, 1
      %s309 = smul.addr %s308, 10
      %s310 = smul.addr %s309, 4
      %s311 = scalar_lea.vmem %s6, %s310
      %v313 = vld [vmem:[%s291] sm:$0xf]
      %v314 = vld [vmem:[%s291 + $0x4] sm:$0xf]
      %v315 = vld [vmem:[%s291 + $0x8] sm:$0xf]
      %v316 = vld [vmem:[%s291 + $0xc] sm:$0xf]
      %v317 = vld [vmem:[%s291 + $0x10] sm:$0xf]
      %v318 = vld [vmem:[%s291 + $0x14] sm:$0xf]
      %v319 = vld [vmem:[%s291 + $0x18] sm:$0xf]
      %v320 = vld [vmem:[%s291 + $0x1c] sm:$0xf]
      %v321 = vld [vmem:[%s291 + $0x20] sm:$0xf]
      %v322 = vld [vmem:[%s291 + $0x24] sm:$0xf]
      %v323 = vld [vmem:[%s291 + $0x28] sm:$0xf]
      %v324 = vld [vmem:[%s291 + $0x2c] sm:$0xf]
      %v325 = vld [vmem:[%s296] sm:$0xf]
      %v326 = vld [vmem:[%s296 + $0x4] sm:$0xf]
      %v327 = vld [vmem:[%s296 + $0x8] sm:$0xf]
      %v328 = vld [vmem:[%s296 + $0xc] sm:$0xf]
      %v329 = vld [vmem:[%s296 + $0x10] sm:$0xf]
      %v330 = vld [vmem:[%s296 + $0x14] sm:$0xf]
      %v331 = vld [vmem:[%s296 + $0x18] sm:$0xf]
      %v332 = vld [vmem:[%s296 + $0x1c] sm:$0xf]
      %v333 = vld [vmem:[%s296 + $0x20] sm:$0xf]
      %v334 = vld [vmem:[%s296 + $0x24] sm:$0xf]
      %v335 = vld [vmem:[%s296 + $0x28] sm:$0xf]
      %v336 = vld [vmem:[%s296 + $0x2c] sm:$0xf]
      %v337 = vld [vmem:[%s301] sm:$0xf]
      %v338 = vld [vmem:[%s301 + $0x4] sm:$0xf]
      %v339 = vld [vmem:[%s301 + $0x8] sm:$0xf]
      %v340 = vld [vmem:[%s301 + $0xc] sm:$0xf]
      %v341 = vld [vmem:[%s301 + $0x10] sm:$0xf]
      %v342 = vld [vmem:[%s301 + $0x14] sm:$0xf]
      %v343 = vld [vmem:[%s301 + $0x18] sm:$0xf]
      %v344 = vld [vmem:[%s301 + $0x1c] sm:$0xf]
      %v345 = vld [vmem:[%s301 + $0x20] sm:$0xf]
      %v346 = vld [vmem:[%s301 + $0x24] sm:$0xf]
      %v347 = vld [vmem:[%s301 + $0x28] sm:$0xf]
      %v348 = vld [vmem:[%s306] sm:$0xf]
      %v349 = vld [vmem:[%s306 + $0x4] sm:$0xf]
      %v350 = vld [vmem:[%s306 + $0x8] sm:$0xf]
      %v351 = vld [vmem:[%s306 + $0xc] sm:$0xf]
      %v352 = vld [vmem:[%s306 + $0x10] sm:$0xf]
      %v353 = vld [vmem:[%s306 + $0x14] sm:$0xf]
      %v354 = vld [vmem:[%s306 + $0x18] sm:$0xf]
      %v355 = vld [vmem:[%s306 + $0x1c] sm:$0xf]
      %v356 = vld [vmem:[%s306 + $0x20] sm:$0xf]
      %v357 = vld [vmem:[%s306 + $0x24] sm:$0xf]
      %v358 = vld [vmem:[%s4] sm:$0xf]
      %v359 = vld [vmem:[%s4 + $0x4] sm:$0xf]
      %v360 = vld [vmem:[%s4 + $0x8] sm:$0xf]
      %v361 = vld [vmem:[%s4 + $0xc] sm:$0xf]
      %v362 = vld [vmem:[%s4 + $0x10] sm:$0xf]
      %v363 = vld [vmem:[%s4 + $0x14] sm:$0xf]
      %v364 = vld [vmem:[%s4 + $0x18] sm:$0xf]
      %v365 = vld [vmem:[%s4 + $0x1c] sm:$0xf]
      %v366 = vld [vmem:[%s4 + $0x20] sm:$0xf]
      %v367 = vld [vmem:[%s4 + $0x24] sm:$0xf]
      %v368 = vld [vmem:[%s4 + $0x28] sm:$0xf]
      %v369 = vld [vmem:[%s4 + $0x2c] sm:$0xf]
      %v370 = vld [vmem:[%s4 + $0x30] sm:$0xf]
      %v371 = vld [vmem:[%s4 + $0x34] sm:$0xf]
      %v372 = vld [vmem:[%s4 + $0x38] sm:$0xf]
      %v373 = vld [vmem:[%s4 + $0x3c] sm:$0xf]
      %s374 = scalar_lea.vmem %s4, 64
      %v375 = vld [vmem:[%s374] sm:$0xf]
      %v376 = vld [vmem:[%s374 + $0x4] sm:$0xf]
      %v377 = vld [vmem:[%s374 + $0x8] sm:$0xf]
      %v378 = vld [vmem:[%s374 + $0xc] sm:$0xf]
      %v379 = vld [vmem:[%s374 + $0x10] sm:$0xf]
      %v380 = vld [vmem:[%s374 + $0x14] sm:$0xf]
      %v381 = vld [vmem:[%s374 + $0x18] sm:$0xf]
      %v382 = vld [vmem:[%s374 + $0x1c] sm:$0xf]
      %v383 = vld [vmem:[%s374 + $0x20] sm:$0xf]
      %v384 = vld [vmem:[%s374 + $0x24] sm:$0xf]
      %v385 = vld [vmem:[%s374 + $0x28] sm:$0xf]
      %v386 = vld [vmem:[%s374 + $0x2c] sm:$0xf]
      %v387 = vld [vmem:[%s374 + $0x30] sm:$0xf]
      %v388 = vld [vmem:[%s374 + $0x34] sm:$0xf]
      %v389 = vld [vmem:[%s374 + $0x38] sm:$0xf]
      %v390 = vld [vmem:[%s374 + $0x3c] sm:$0xf]
      %v401 = vunpack.c.l.b16 %v325
      %v402 = vunpack.c.l.b16 %v326
      %v403 = vunpack.c.l.b16 %v327
      %v404 = vunpack.c.l.b16 %v328
      %v405 = vunpack.c.l.b16 %v329
      %v406 = vunpack.c.l.b16 %v330
      %v407 = vunpack.c.l.b16 %v331
      %v408 = vunpack.c.l.b16 %v332
      %v409 = vunpack.c.l.b16 %v333
      %v410 = vunpack.c.l.b16 %v334
      %v411 = vpack.c.b16 %v402, %v401
      %v412 = vpack.c.b16 %v404, %v403
      %v413 = vpack.c.b16 %v406, %v405
      %v414 = vpack.c.b16 %v408, %v407
      %v415 = vpack.c.b16 %v410, %v409
      %v437 = vunpack.c.l.b16 %v375
      %v438 = vunpack.c.l.b16 %v376
      %v439 = vunpack.c.l.b16 %v377
      %v440 = vunpack.c.l.b16 %v378
      %v441 = vunpack.c.l.b16 %v379
      %v442 = vunpack.c.l.b16 %v380
      %v443 = vunpack.c.l.b16 %v381
      %v444 = vunpack.c.l.b16 %v382
      %v445 = vunpack.c.l.b16 %v383
      %v446 = vunpack.c.l.b16 %v384
      %v447 = vunpack.c.l.b16 %v385
      %v448 = vunpack.c.l.b16 %v386
      %v449 = vunpack.c.l.b16 %v387
      %v450 = vunpack.c.l.b16 %v388
      %v451 = vunpack.c.l.b16 %v389
      %v452 = vunpack.c.l.b16 %v390
      %v453 = vpack.c.b16 %v438, %v437
      %v454 = vpack.c.b16 %v440, %v439
      %v455 = vpack.c.b16 %v442, %v441
      %v456 = vpack.c.b16 %v444, %v443
      %v457 = vpack.c.b16 %v446, %v445
      %v458 = vpack.c.b16 %v448, %v447
      %v459 = vpack.c.b16 %v450, %v449
      %v460 = vpack.c.b16 %v452, %v451
      %469 = vmatprep.subr.bf16.mxu0 0
      %470 = vmatpush1.bf16.msra.mxu0 %v453
      %471 = vmatprep.subr.bf16.mxu0 0
      %472 = vmatpush1.bf16.msra.mxu0 %v454
      %473 = vmatprep.subr.bf16.mxu0 0
      %474 = vmatpush1.bf16.msra.mxu0 %v455
      %475 = vmatprep.subr.bf16.mxu0 0
      %476 = vmatpush1.bf16.msra.mxu0 %v456
      %477 = vmatprep.subr.bf16.mxu0 0
      %478 = vmatpush1.bf16.msra.mxu0 %v457
      %479 = vmatprep.subr.bf16.mxu0 0
      %480 = vmatpush1.bf16.msra.mxu0 %v458
      %481 = vmatprep.subr.bf16.mxu0 0
      %482 = vmatpush1.bf16.msra.mxu0 %v459
      %483 = vmatprep.subr.bf16.mxu0 0
      %484 = vmatpush1.bf16.msra.mxu0 %v460
      %485 = vmatprep.subr.bf16.mxu0 0
      %486 = vmatpush1.bf16.msra.mxu0 0
      %487 = vmatprep.subr.bf16.mxu0 0
      %488 = vmatpush1.bf16.msra.mxu0 0
      %489 = vmatprep.subr.bf16.mxu0 0
      %490 = vmatpush1.bf16.msra.mxu0 0
      %491 = vmatprep.subr.bf16.mxu0 0
      %492 = vmatpush1.bf16.msra.mxu0 0
      %493 = vmatprep.subr.bf16.mxu0 0
      %494 = vmatpush1.bf16.msra.mxu0 0
      %495 = vmatprep.subr.bf16.mxu0 0
      %496 = vmatpush1.bf16.msra.mxu0 0
      %497 = vmatprep.subr.bf16.mxu0 0
      %498 = vmatpush1.bf16.msra.mxu0 0
      %499 = vmatprep.subr.bf16.mxu0 0
      %500 = vmatpush1.bf16.msra.mxu0 0
      %501 = vmatprep.mubr.bf16.mxu0 0
      %502 = vmatmul.mubr.bf16.gmra.mrb[0].mxu0 %v411
      %v503 = vpop.f32.mrb[0].mxu0
      %v504 = vadd.f32 0.0, %v503
      %v505 = vpop.f32.mrb[0].mxu0
      %v506 = vpop.f32.mrb[0].mxu0
      %v507 = vadd.f32 0.0, %v506
      %v508 = vpop.f32.mrb[0].mxu0
      %509 = vmatprep.mubr.bf16.mxu0 0
      %510 = vmatmul.mubr.bf16.gmra.mrb[0].mxu0 %v412
      %v511 = vpop.f32.mrb[0].mxu0
      %v512 = vadd.f32 0.0, %v511
      %v513 = vpop.f32.mrb[0].mxu0
      %v514 = vpop.f32.mrb[0].mxu0
      %v515 = vadd.f32 0.0, %v514
      %v516 = vpop.f32.mrb[0].mxu0
      %517 = vmatprep.mubr.bf16.mxu0 0
      %518 = vmatmul.mubr.bf16.gmra.mrb[0].mxu0 %v413
      %v519 = vpop.f32.mrb[0].mxu0
      %v520 = vadd.f32 0.0, %v519
      %v521 = vpop.f32.mrb[0].mxu0
      %v522 = vpop.f32.mrb[0].mxu0
      %v523 = vadd.f32 0.0, %v522
      %v524 = vpop.f32.mrb[0].mxu0
      %525 = vmatprep.mubr.bf16.mxu0 0
      %526 = vmatmul.mubr.bf16.gmra.mrb[0].mxu0 %v414
      %v527 = vpop.f32.mrb[0].mxu0
      %v528 = vadd.f32 0.0, %v527
      %v529 = vpop.f32.mrb[0].mxu0
      %v530 = vpop.f32.mrb[0].mxu0
      %v531 = vadd.f32 0.0, %v530
      %v532 = vpop.f32.mrb[0].mxu0
      %533 = vmatprep.mubr.bf16.mxu0 0
      %534 = vmatmul.mubr.bf16.gmra.mrb[0].mxu0 %v415
      %v535 = vpop.f32.mrb[0].mxu0
      %v536 = vadd.f32 0.0, %v535
      %v537 = vpop.f32.mrb[0].mxu0
      %v538 = vpop.f32.mrb[0].mxu0
      %v539 = vadd.f32 0.0, %v538
      %v540 = vpop.f32.mrb[0].mxu0
      %541 = vdwg.mxu0
      %v552 = vunpack.c.l.b16 %v313
      %v553 = vunpack.c.l.b16 %v314
      %v554 = vunpack.c.l.b16 %v315
      %v555 = vunpack.c.l.b16 %v316
      %v556 = vunpack.c.l.b16 %v317
      %v557 = vunpack.c.l.b16 %v318
      %v558 = vunpack.c.l.b16 %v319
      %v559 = vunpack.c.l.b16 %v320
      %v560 = vunpack.c.l.b16 %v321
      %v561 = vunpack.c.l.b16 %v322
      %v562 = vpack.c.b16 %v553, %v552
      %v563 = vpack.c.b16 %v555, %v554
      %v564 = vpack.c.b16 %v557, %v556
      %v565 = vpack.c.b16 %v559, %v558
      %v566 = vpack.c.b16 %v561, %v560
      %v588 = vunpack.c.l.b16 %v358
      %v589 = vunpack.c.l.b16 %v359
      %v590 = vunpack.c.l.b16 %v360
      %v591 = vunpack.c.l.b16 %v361
      %v592 = vunpack.c.l.b16 %v362
      %v593 = vunpack.c.l.b16 %v363
      %v594 = vunpack.c.l.b16 %v364
      %v595 = vunpack.c.l.b16 %v365
      %v596 = vunpack.c.l.b16 %v366
      %v597 = vunpack.c.l.b16 %v367
      %v598 = vunpack.c.l.b16 %v368
      %v599 = vunpack.c.l.b16 %v369
      %v600 = vunpack.c.l.b16 %v370
      %v601 = vunpack.c.l.b16 %v371
      %v602 = vunpack.c.l.b16 %v372
      %v603 = vunpack.c.l.b16 %v373
      %v604 = vpack.c.b16 %v589, %v588
      %v605 = vpack.c.b16 %v591, %v590
      %v606 = vpack.c.b16 %v593, %v592
      %v607 = vpack.c.b16 %v595, %v594
      %v608 = vpack.c.b16 %v597, %v596
      %v609 = vpack.c.b16 %v599, %v598
      %v610 = vpack.c.b16 %v601, %v600
      %v611 = vpack.c.b16 %v603, %v602
      %620 = vmatprep.subr.bf16.mxu0 0
      %621 = vmatpush1.bf16.msra.mxu0 %v604
      %622 = vmatprep.subr.bf16.mxu0 0
      %623 = vmatpush1.bf16.msra.mxu0 %v605
      %624 = vmatprep.subr.bf16.mxu0 0
      %625 = vmatpush1.bf16.msra.mxu0 %v606
      %626 = vmatprep.subr.bf16.mxu0 0
      %627 = vmatpush1.bf16.msra.mxu0 %v607
      %628 = vmatprep.subr.bf16.mxu0 0
      %629 = vmatpush1.bf16.msra.mxu0 %v608
      %630 = vmatprep.subr.bf16.mxu0 0
      %631 = vmatpush1.bf16.msra.mxu0 %v609
      %632 = vmatprep.subr.bf16.mxu0 0
      %633 = vmatpush1.bf16.msra.mxu0 %v610
      %634 = vmatprep.subr.bf16.mxu0 0
      %635 = vmatpush1.bf16.msra.mxu0 %v611
      %636 = vmatprep.subr.bf16.mxu0 0
      %637 = vmatpush1.bf16.msra.mxu0 0
      %638 = vmatprep.subr.bf16.mxu0 0
      %639 = vmatpush1.bf16.msra.mxu0 0
      %640 = vmatprep.subr.bf16.mxu0 0
      %641 = vmatpush1.bf16.msra.mxu0 0
      %642 = vmatprep.subr.bf16.mxu0 0
      %643 = vmatpush1.bf16.msra.mxu0 0
      %644 = vmatprep.subr.bf16.mxu0 0
      %645 = vmatpush1.bf16.msra.mxu0 0
      %646 = vmatprep.subr.bf16.mxu0 0
      %647 = vmatpush1.bf16.msra.mxu0 0
      %648 = vmatprep.subr.bf16.mxu0 0
      %649 = vmatpush1.bf16.msra.mxu0 0
      %650 = vmatprep.subr.bf16.mxu0 0
      %651 = vmatpush1.bf16.msra.mxu0 0
      %652 = vmatprep.mubr.bf16.mxu0 0
      %653 = vmatmul.mubr.bf16.gmra.mrb[0].mxu0 %v562
      %v654 = vpop.f32.mrb[0].mxu0
      %v655 = vadd.f32 %v504, %v654
      %v656 = vpop.f32.mrb[0].mxu0
      %v657 = vpop.f32.mrb[0].mxu0
      %v658 = vadd.f32 %v507, %v657
      %v659 = vpop.f32.mrb[0].mxu0
      %660 = vmatprep.mubr.bf16.mxu0 0
      %661 = vmatmul.mubr.bf16.gmra.mrb[0].mxu0 %v563
      %v662 = vpop.f32.mrb[0].mxu0
      %v663 = vadd.f32 %v512, %v662
      %v664 = vpop.f32.mrb[0].mxu0
      %v665 = vpop.f32.mrb[0].mxu0
      %v666 = vadd.f32 %v515, %v665
      %v667 = vpop.f32.mrb[0].mxu0
      %668 = vmatprep.mubr.bf16.mxu0 0
      %669 = vmatmul.mubr.bf16.gmra.mrb[0].mxu0 %v564
      %v670 = vpop.f32.mrb[0].mxu0
      %v671 = vadd.f32 %v520, %v670
      %v672 = vpop.f32.mrb[0].mxu0
      %v673 = vpop.f32.mrb[0].mxu0
      %v674 = vadd.f32 %v523, %v673
      %v675 = vpop.f32.mrb[0].mxu0
      %676 = vmatprep.mubr.bf16.mxu0 0
      %677 = vmatmul.mubr.bf16.gmra.mrb[0].mxu0 %v565
      %v678 = vpop.f32.mrb[0].mxu0
      %v679 = vadd.f32 %v528, %v678
      %v680 = vpop.f32.mrb[0].mxu0
      %v681 = vpop.f32.mrb[0].mxu0
      %v682 = vadd.f32 %v531, %v681
      %v683 = vpop.f32.mrb[0].mxu0
      %684 = vmatprep.mubr.bf16.mxu0 0
      %685 = vmatmul.mubr.bf16.gmra.mrb[0].mxu0 %v566
      %v686 = vpop.f32.mrb[0].mxu0
      %v687 = vadd.f32 %v536, %v686
      %v688 = vpop.f32.mrb[0].mxu0
      %v689 = vpop.f32.mrb[0].mxu0
      %v690 = vadd.f32 %v539, %v689
      %v691 = vpop.f32.mrb[0].mxu0
      %692 = vdwg.mxu0
      %s693 = scalar_lea.vmem %s4, 128
      %v694 = vld [vmem:[%s693] sm:$0xf]
      %v695 = vld [vmem:[%s693 + $0x4] sm:$0xf]
      %v696 = vld [vmem:[%s693 + $0x8] sm:$0xf]
      %v697 = vld [vmem:[%s693 + $0xc] sm:$0xf]
      %v698 = vld [vmem:[%s693 + $0x10] sm:$0xf]
      %v699 = vld [vmem:[%s693 + $0x14] sm:$0xf]
      %v700 = vld [vmem:[%s693 + $0x18] sm:$0xf]
      %v701 = vld [vmem:[%s693 + $0x1c] sm:$0xf]
      %v702 = vld [vmem:[%s693 + $0x20] sm:$0xf]
      %v703 = vld [vmem:[%s693 + $0x24] sm:$0xf]
      %v704 = vld [vmem:[%s693 + $0x28] sm:$0xf]
      %v705 = vld [vmem:[%s693 + $0x2c] sm:$0xf]
      %v706 = vld [vmem:[%s693 + $0x30] sm:$0xf]
      %v707 = vld [vmem:[%s693 + $0x34] sm:$0xf]
      %v708 = vld [vmem:[%s693 + $0x38] sm:$0xf]
      %v709 = vld [vmem:[%s693 + $0x3c] sm:$0xf]
      %v711 = vunpack.c.l.b16 %v323
      %v712 = vpack.c.b16 %v711, %v711
      %vm713 = vsmask.f32 7424
      %v715 = vshrl.u32 %v562, 16
      %v717 = vshll.u32 %v562, 16
      %v719 = vrot.slane %v717, 1
      %v720 = vor.u32 %v715, %v719
      %v722 = vshll.u32 %v563, 16
      %v724 = vrot.slane %v722, 1
      %v725 = vsel %vm713, %v720, %v724
      %v726 = vshrl.u32 %v563, 16
      %v728 = vor.u32 %v726, %v724
      %v730 = vshll.u32 %v564, 16
      %v732 = vrot.slane %v730, 1
      %v733 = vsel %vm713, %v728, %v732
      %v734 = vshrl.u32 %v564, 16
      %v736 = vor.u32 %v734, %v732
      %v738 = vshll.u32 %v565, 16
      %v740 = vrot.slane %v738, 1
      %v741 = vsel %vm713, %v736, %v740
      %v742 = vshrl.u32 %v565, 16
      %v744 = vor.u32 %v742, %v740
      %v746 = vshll.u32 %v566, 16
      %v748 = vrot.slane %v746, 1
      %v749 = vsel %vm713, %v744, %v748
      %v750 = vshrl.u32 %v566, 16
      %v752 = vor.u32 %v750, %v748
      %v754 = vshll.u32 %v712, 16
      %v756 = vrot.slane %v754, 1
      %v757 = vsel %vm713, %v752, %v756
      %v779 = vunpack.c.l.b16 %v694
      %v780 = vunpack.c.l.b16 %v695
      %v781 = vunpack.c.l.b16 %v696
      %v782 = vunpack.c.l.b16 %v697
      %v783 = vunpack.c.l.b16 %v698
      %v784 = vunpack.c.l.b16 %v699
      %v785 = vunpack.c.l.b16 %v700
      %v786 = vunpack.c.l.b16 %v701
      %v787 = vunpack.c.l.b16 %v702
      %v788 = vunpack.c.l.b16 %v703
      %v789 = vunpack.c.l.b16 %v704
      %v790 = vunpack.c.l.b16 %v705
      %v791 = vunpack.c.l.b16 %v706
      %v792 = vunpack.c.l.b16 %v707
      %v793 = vunpack.c.l.b16 %v708
      %v794 = vunpack.c.l.b16 %v709
      %v795 = vpack.c.b16 %v780, %v779
      %v796 = vpack.c.b16 %v782, %v781
      %v797 = vpack.c.b16 %v784, %v783
      %v798 = vpack.c.b16 %v786, %v785
      %v799 = vpack.c.b16 %v788, %v787
      %v800 = vpack.c.b16 %v790, %v789
      %v801 = vpack.c.b16 %v792, %v791
      %v802 = vpack.c.b16 %v794, %v793
      %811 = vmatprep.subr.bf16.mxu0 0
      %812 = vmatpush1.bf16.msra.mxu0 %v795
      %813 = vmatprep.subr.bf16.mxu0 0
      %814 = vmatpush1.bf16.msra.mxu0 %v796
      %815 = vmatprep.subr.bf16.mxu0 0
      %816 = vmatpush1.bf16.msra.mxu0 %v797
      %817 = vmatprep.subr.bf16.mxu0 0
      %818 = vmatpush1.bf16.msra.mxu0 %v798
      %819 = vmatprep.subr.bf16.mxu0 0
      %820 = vmatpush1.bf16.msra.mxu0 %v799
      %821 = vmatprep.subr.bf16.mxu0 0
      %822 = vmatpush1.bf16.msra.mxu0 %v800
      %823 = vmatprep.subr.bf16.mxu0 0
      %824 = vmatpush1.bf16.msra.mxu0 %v801
      %825 = vmatprep.subr.bf16.mxu0 0
      %826 = vmatpush1.bf16.msra.mxu0 %v802
      %827 = vmatprep.subr.bf16.mxu0 0
      %828 = vmatpush1.bf16.msra.mxu0 0
      %829 = vmatprep.subr.bf16.mxu0 0
      %830 = vmatpush1.bf16.msra.mxu0 0
      %831 = vmatprep.subr.bf16.mxu0 0
      %832 = vmatpush1.bf16.msra.mxu0 0
      %833 = vmatprep.subr.bf16.mxu0 0
      %834 = vmatpush1.bf16.msra.mxu0 0
      %835 = vmatprep.subr.bf16.mxu0 0
      %836 = vmatpush1.bf16.msra.mxu0 0
      %837 = vmatprep.subr.bf16.mxu0 0
      %838 = vmatpush1.bf16.msra.mxu0 0
      %839 = vmatprep.subr.bf16.mxu0 0
      %840 = vmatpush1.bf16.msra.mxu0 0
      %841 = vmatprep.subr.bf16.mxu0 0
      %842 = vmatpush1.bf16.msra.mxu0 0
      %843 = vmatprep.mubr.bf16.mxu0 0
      %844 = vmatmul.mubr.bf16.gmra.mrb[0].mxu0 %v725
      %v845 = vpop.f32.mrb[0].mxu0
      %v846 = vadd.f32 0.0, %v845
      %v847 = vpop.f32.mrb[0].mxu0
      %v848 = vpop.f32.mrb[0].mxu0
      %v849 = vadd.f32 0.0, %v848
      %v850 = vpop.f32.mrb[0].mxu0
      %851 = vmatprep.mubr.bf16.mxu0 0
      %852 = vmatmul.mubr.bf16.gmra.mrb[0].mxu0 %v733
      %v853 = vpop.f32.mrb[0].mxu0
      %v854 = vadd.f32 0.0, %v853
      %v855 = vpop.f32.mrb[0].mxu0
      %v856 = vpop.f32.mrb[0].mxu0
      %v857 = vadd.f32 0.0, %v856
      %v858 = vpop.f32.mrb[0].mxu0
      %859 = vmatprep.mubr.bf16.mxu0 0
      %860 = vmatmul.mubr.bf16.gmra.mrb[0].mxu0 %v741
      %v861 = vpop.f32.mrb[0].mxu0
      %v862 = vadd.f32 0.0, %v861
      %v863 = vpop.f32.mrb[0].mxu0
      %v864 = vpop.f32.mrb[0].mxu0
      %v865 = vadd.f32 0.0, %v864
      %v866 = vpop.f32.mrb[0].mxu0
      %867 = vmatprep.mubr.bf16.mxu0 0
      %868 = vmatmul.mubr.bf16.gmra.mrb[0].mxu0 %v749
      %v869 = vpop.f32.mrb[0].mxu0
      %v870 = vadd.f32 0.0, %v869
      %v871 = vpop.f32.mrb[0].mxu0
      %v872 = vpop.f32.mrb[0].mxu0
      %v873 = vadd.f32 0.0, %v872
      %v874 = vpop.f32.mrb[0].mxu0
      %875 = vmatprep.mubr.bf16.mxu0 0
      %876 = vmatmul.mubr.bf16.gmra.mrb[0].mxu0 %v757
      %v877 = vpop.f32.mrb[0].mxu0
      %v878 = vadd.f32 0.0, %v877
      %v879 = vpop.f32.mrb[0].mxu0
      %v880 = vpop.f32.mrb[0].mxu0
      %v881 = vadd.f32 0.0, %v880
      %v882 = vpop.f32.mrb[0].mxu0
      %883 = vdwg.mxu0
      %v884 = vadd.f32 %v655, %v846
      %v885 = vadd.f32 %v658, %v849
      %v886 = vadd.f32 %v663, %v854
      %v887 = vadd.f32 %v666, %v857
      %v888 = vadd.f32 %v671, %v862
      %v889 = vadd.f32 %v674, %v865
      %v890 = vadd.f32 %v679, %v870
      %v891 = vadd.f32 %v682, %v873
      %v892 = vadd.f32 %v687, %v878
      %v893 = vadd.f32 %v690, %v881
      %s894 = scalar_lea.vmem %s4, 192
      %v895 = vld [vmem:[%s894] sm:$0xf]
      %v896 = vld [vmem:[%s894 + $0x4] sm:$0xf]
      %v897 = vld [vmem:[%s894 + $0x8] sm:$0xf]
      %v898 = vld [vmem:[%s894 + $0xc] sm:$0xf]
      %v899 = vld [vmem:[%s894 + $0x10] sm:$0xf]
      %v900 = vld [vmem:[%s894 + $0x14] sm:$0xf]
      %v901 = vld [vmem:[%s894 + $0x18] sm:$0xf]
      %v902 = vld [vmem:[%s894 + $0x1c] sm:$0xf]
      %v903 = vld [vmem:[%s894 + $0x20] sm:$0xf]
      %v904 = vld [vmem:[%s894 + $0x24] sm:$0xf]
      %v905 = vld [vmem:[%s894 + $0x28] sm:$0xf]
      %v906 = vld [vmem:[%s894 + $0x2c] sm:$0xf]
      %v907 = vld [vmem:[%s894 + $0x30] sm:$0xf]
      %v908 = vld [vmem:[%s894 + $0x34] sm:$0xf]
      %v909 = vld [vmem:[%s894 + $0x38] sm:$0xf]
      %v910 = vld [vmem:[%s894 + $0x3c] sm:$0xf]
      %v921 = vunpack.c.l.b16 %v337
      %v922 = vunpack.c.l.b16 %v338
      %v923 = vunpack.c.l.b16 %v339
      %v924 = vunpack.c.l.b16 %v340
      %v925 = vunpack.c.l.b16 %v341
      %v926 = vunpack.c.l.b16 %v342
      %v927 = vunpack.c.l.b16 %v343
      %v928 = vunpack.c.l.b16 %v344
      %v929 = vunpack.c.l.b16 %v345
      %v930 = vunpack.c.l.b16 %v346
      %v931 = vpack.c.b16 %v922, %v921
      %v932 = vpack.c.b16 %v924, %v923
      %v933 = vpack.c.b16 %v926, %v925
      %v934 = vpack.c.b16 %v928, %v927
      %v935 = vpack.c.b16 %v930, %v929
      %v957 = vunpack.c.l.b16 %v895
      %v958 = vunpack.c.l.b16 %v896
      %v959 = vunpack.c.l.b16 %v897
      %v960 = vunpack.c.l.b16 %v898
      %v961 = vunpack.c.l.b16 %v899
      %v962 = vunpack.c.l.b16 %v900
      %v963 = vunpack.c.l.b16 %v901
      %v964 = vunpack.c.l.b16 %v902
      %v965 = vunpack.c.l.b16 %v903
      %v966 = vunpack.c.l.b16 %v904
      %v967 = vunpack.c.l.b16 %v905
      %v968 = vunpack.c.l.b16 %v906
      %v969 = vunpack.c.l.b16 %v907
      %v970 = vunpack.c.l.b16 %v908
      %v971 = vunpack.c.l.b16 %v909
      %v972 = vunpack.c.l.b16 %v910
      %v973 = vpack.c.b16 %v958, %v957
      %v974 = vpack.c.b16 %v960, %v959
      %v975 = vpack.c.b16 %v962, %v961
      %v976 = vpack.c.b16 %v964, %v963
      %v977 = vpack.c.b16 %v966, %v965
      %v978 = vpack.c.b16 %v968, %v967
      %v979 = vpack.c.b16 %v970, %v969
      %v980 = vpack.c.b16 %v972, %v971
      %989 = vmatprep.subr.bf16.mxu0 0
      %990 = vmatpush1.bf16.msra.mxu0 %v973
      %991 = vmatprep.subr.bf16.mxu0 0
      %992 = vmatpush1.bf16.msra.mxu0 %v974
      %993 = vmatprep.subr.bf16.mxu0 0
      %994 = vmatpush1.bf16.msra.mxu0 %v975
      %995 = vmatprep.subr.bf16.mxu0 0
      %996 = vmatpush1.bf16.msra.mxu0 %v976
      %997 = vmatprep.subr.bf16.mxu0 0
      %998 = vmatpush1.bf16.msra.mxu0 %v977
      %999 = vmatprep.subr.bf16.mxu0 0
      %1000 = vmatpush1.bf16.msra.mxu0 %v978
      %1001 = vmatprep.subr.bf16.mxu0 0
      %1002 = vmatpush1.bf16.msra.mxu0 %v979
      %1003 = vmatprep.subr.bf16.mxu0 0
      %1004 = vmatpush1.bf16.msra.mxu0 %v980
      %1005 = vmatprep.subr.bf16.mxu0 0
      %1006 = vmatpush1.bf16.msra.mxu0 0
      %1007 = vmatprep.subr.bf16.mxu0 0
      %1008 = vmatpush1.bf16.msra.mxu0 0
      %1009 = vmatprep.subr.bf16.mxu0 0
      %1010 = vmatpush1.bf16.msra.mxu0 0
      %1011 = vmatprep.subr.bf16.mxu0 0
      %1012 = vmatpush1.bf16.msra.mxu0 0
      %1013 = vmatprep.subr.bf16.mxu0 0
      %1014 = vmatpush1.bf16.msra.mxu0 0
      %1015 = vmatprep.subr.bf16.mxu0 0
      %1016 = vmatpush1.bf16.msra.mxu0 0
      %1017 = vmatprep.subr.bf16.mxu0 0
      %1018 = vmatpush1.bf16.msra.mxu0 0
      %1019 = vmatprep.subr.bf16.mxu0 0
      %1020 = vmatpush1.bf16.msra.mxu0 0
      %1021 = vmatprep.mubr.bf16.mxu0 0
      %1022 = vmatmul.mubr.bf16.gmra.mrb[0].mxu0 %v931
      %v1023 = vpop.f32.mrb[0].mxu0
      %v1024 = vadd.f32 0.0, %v1023
      %v1025 = vpop.f32.mrb[0].mxu0
      %v1026 = vpop.f32.mrb[0].mxu0
      %v1027 = vadd.f32 0.0, %v1026
      %v1028 = vpop.f32.mrb[0].mxu0
      %1029 = vmatprep.mubr.bf16.mxu0 0
      %1030 = vmatmul.mubr.bf16.gmra.mrb[0].mxu0 %v932
      %v1031 = vpop.f32.mrb[0].mxu0
      %v1032 = vadd.f32 0.0, %v1031
      %v1033 = vpop.f32.mrb[0].mxu0
      %v1034 = vpop.f32.mrb[0].mxu0
      %v1035 = vadd.f32 0.0, %v1034
      %v1036 = vpop.f32.mrb[0].mxu0
      %1037 = vmatprep.mubr.bf16.mxu0 0
      %1038 = vmatmul.mubr.bf16.gmra.mrb[0].mxu0 %v933
      %v1039 = vpop.f32.mrb[0].mxu0
      %v1040 = vadd.f32 0.0, %v1039
      %v1041 = vpop.f32.mrb[0].mxu0
      %v1042 = vpop.f32.mrb[0].mxu0
      %v1043 = vadd.f32 0.0, %v1042
      %v1044 = vpop.f32.mrb[0].mxu0
      %1045 = vmatprep.mubr.bf16.mxu0 0
      %1046 = vmatmul.mubr.bf16.gmra.mrb[0].mxu0 %v934
      %v1047 = vpop.f32.mrb[0].mxu0
      %v1048 = vadd.f32 0.0, %v1047
      %v1049 = vpop.f32.mrb[0].mxu0
      %v1050 = vpop.f32.mrb[0].mxu0
      %v1051 = vadd.f32 0.0, %v1050
      %v1052 = vpop.f32.mrb[0].mxu0
      %1053 = vmatprep.mubr.bf16.mxu0 0
      %1054 = vmatmul.mubr.bf16.gmra.mrb[0].mxu0 %v935
      %v1055 = vpop.f32.mrb[0].mxu0
      %v1056 = vadd.f32 0.0, %v1055
      %v1057 = vpop.f32.mrb[0].mxu0
      %v1058 = vpop.f32.mrb[0].mxu0
      %v1059 = vadd.f32 0.0, %v1058
      %v1060 = vpop.f32.mrb[0].mxu0
      %1061 = vdwg.mxu0
      %v1062 = vadd.f32 %v884, %v1024
      %v1063 = vadd.f32 %v885, %v1027
      %v1064 = vadd.f32 %v886, %v1032
      %v1065 = vadd.f32 %v887, %v1035
      %v1066 = vadd.f32 %v888, %v1040
      %v1067 = vadd.f32 %v889, %v1043
      %v1068 = vadd.f32 %v890, %v1048
      %v1069 = vadd.f32 %v891, %v1051
      %v1070 = vadd.f32 %v892, %v1056
      %v1071 = vadd.f32 %v893, %v1059
      %s1072 = scalar_lea.vmem %s4, 256
      %v1073 = vld [vmem:[%s1072] sm:$0xf]
      %v1074 = vld [vmem:[%s1072 + $0x4] sm:$0xf]
      %v1075 = vld [vmem:[%s1072 + $0x8] sm:$0xf]
      %v1076 = vld [vmem:[%s1072 + $0xc] sm:$0xf]
      %v1077 = vld [vmem:[%s1072 + $0x10] sm:$0xf]
      %v1078 = vld [vmem:[%s1072 + $0x14] sm:$0xf]
      %v1079 = vld [vmem:[%s1072 + $0x18] sm:$0xf]
      %v1080 = vld [vmem:[%s1072 + $0x1c] sm:$0xf]
      %v1081 = vld [vmem:[%s1072 + $0x20] sm:$0xf]
      %v1082 = vld [vmem:[%s1072 + $0x24] sm:$0xf]
      %v1083 = vld [vmem:[%s1072 + $0x28] sm:$0xf]
      %v1084 = vld [vmem:[%s1072 + $0x2c] sm:$0xf]
      %v1085 = vld [vmem:[%s1072 + $0x30] sm:$0xf]
      %v1086 = vld [vmem:[%s1072 + $0x34] sm:$0xf]
      %v1087 = vld [vmem:[%s1072 + $0x38] sm:$0xf]
      %v1088 = vld [vmem:[%s1072 + $0x3c] sm:$0xf]
      %v1099 = vunpack.c.l.b16 %v348
      %v1100 = vunpack.c.l.b16 %v349
      %v1101 = vunpack.c.l.b16 %v350
      %v1102 = vunpack.c.l.b16 %v351
      %v1103 = vunpack.c.l.b16 %v352
      %v1104 = vunpack.c.l.b16 %v353
      %v1105 = vunpack.c.l.b16 %v354
      %v1106 = vunpack.c.l.b16 %v355
      %v1107 = vunpack.c.l.b16 %v356
      %v1108 = vunpack.c.l.b16 %v357
      %v1109 = vpack.c.b16 %v1100, %v1099
      %v1110 = vpack.c.b16 %v1102, %v1101
      %v1111 = vpack.c.b16 %v1104, %v1103
      %v1112 = vpack.c.b16 %v1106, %v1105
      %v1113 = vpack.c.b16 %v1108, %v1107
      %v1135 = vunpack.c.l.b16 %v1073
      %v1136 = vunpack.c.l.b16 %v1074
      %v1137 = vunpack.c.l.b16 %v1075
      %v1138 = vunpack.c.l.b16 %v1076
      %v1139 = vunpack.c.l.b16 %v1077
      %v1140 = vunpack.c.l.b16 %v1078
      %v1141 = vunpack.c.l.b16 %v1079
      %v1142 = vunpack.c.l.b16 %v1080
      %v1143 = vunpack.c.l.b16 %v1081
      %v1144 = vunpack.c.l.b16 %v1082
      %v1145 = vunpack.c.l.b16 %v1083
      %v1146 = vunpack.c.l.b16 %v1084
      %v1147 = vunpack.c.l.b16 %v1085
      %v1148 = vunpack.c.l.b16 %v1086
      %v1149 = vunpack.c.l.b16 %v1087
      %v1150 = vunpack.c.l.b16 %v1088
      %v1151 = vpack.c.b16 %v1136, %v1135
      %v1152 = vpack.c.b16 %v1138, %v1137
      %v1153 = vpack.c.b16 %v1140, %v1139
      %v1154 = vpack.c.b16 %v1142, %v1141
      %v1155 = vpack.c.b16 %v1144, %v1143
      %v1156 = vpack.c.b16 %v1146, %v1145
      %v1157 = vpack.c.b16 %v1148, %v1147
      %v1158 = vpack.c.b16 %v1150, %v1149
      %1167 = vmatprep.subr.bf16.mxu0 0
      %1168 = vmatpush1.bf16.msra.mxu0 %v1151
      %1169 = vmatprep.subr.bf16.mxu0 0
      %1170 = vmatpush1.bf16.msra.mxu0 %v1152
      %1171 = vmatprep.subr.bf16.mxu0 0
      %1172 = vmatpush1.bf16.msra.mxu0 %v1153
      %1173 = vmatprep.subr.bf16.mxu0 0
      %1174 = vmatpush1.bf16.msra.mxu0 %v1154
      %1175 = vmatprep.subr.bf16.mxu0 0
      %1176 = vmatpush1.bf16.msra.mxu0 %v1155
      %1177 = vmatprep.subr.bf16.mxu0 0
      %1178 = vmatpush1.bf16.msra.mxu0 %v1156
      %1179 = vmatprep.subr.bf16.mxu0 0
      %1180 = vmatpush1.bf16.msra.mxu0 %v1157
      %1181 = vmatprep.subr.bf16.mxu0 0
      %1182 = vmatpush1.bf16.msra.mxu0 %v1158
      %1183 = vmatprep.subr.bf16.mxu0 0
      %1184 = vmatpush1.bf16.msra.mxu0 0
      %1185 = vmatprep.subr.bf16.mxu0 0
      %1186 = vmatpush1.bf16.msra.mxu0 0
      %1187 = vmatprep.subr.bf16.mxu0 0
      %1188 = vmatpush1.bf16.msra.mxu0 0
      %1189 = vmatprep.subr.bf16.mxu0 0
      %1190 = vmatpush1.bf16.msra.mxu0 0
      %1191 = vmatprep.subr.bf16.mxu0 0
      %1192 = vmatpush1.bf16.msra.mxu0 0
      %1193 = vmatprep.subr.bf16.mxu0 0
      %1194 = vmatpush1.bf16.msra.mxu0 0
      %1195 = vmatprep.subr.bf16.mxu0 0
      %1196 = vmatpush1.bf16.msra.mxu0 0
      %1197 = vmatprep.subr.bf16.mxu0 0
      %1198 = vmatpush1.bf16.msra.mxu0 0
      %1199 = vmatprep.mubr.bf16.mxu0 0
      %1200 = vmatmul.mubr.bf16.gmra.mrb[0].mxu0 %v1109
      %v1201 = vpop.f32.mrb[0].mxu0
      %v1202 = vadd.f32 0.0, %v1201
      %v1203 = vpop.f32.mrb[0].mxu0
      %v1204 = vpop.f32.mrb[0].mxu0
      %v1205 = vadd.f32 0.0, %v1204
      %v1206 = vpop.f32.mrb[0].mxu0
      %1207 = vmatprep.mubr.bf16.mxu0 0
      %1208 = vmatmul.mubr.bf16.gmra.mrb[0].mxu0 %v1110
      %v1209 = vpop.f32.mrb[0].mxu0
      %v1210 = vadd.f32 0.0, %v1209
      %v1211 = vpop.f32.mrb[0].mxu0
      %v1212 = vpop.f32.mrb[0].mxu0
      %v1213 = vadd.f32 0.0, %v1212
      %v1214 = vpop.f32.mrb[0].mxu0
      %1215 = vmatprep.mubr.bf16.mxu0 0
      %1216 = vmatmul.mubr.bf16.gmra.mrb[0].mxu0 %v1111
      %v1217 = vpop.f32.mrb[0].mxu0
      %v1218 = vadd.f32 0.0, %v1217
      %v1219 = vpop.f32.mrb[0].mxu0
      %v1220 = vpop.f32.mrb[0].mxu0
      %v1221 = vadd.f32 0.0, %v1220
      %v1222 = vpop.f32.mrb[0].mxu0
      %1223 = vmatprep.mubr.bf16.mxu0 0
      %1224 = vmatmul.mubr.bf16.gmra.mrb[0].mxu0 %v1112
      %v1225 = vpop.f32.mrb[0].mxu0
      %v1226 = vadd.f32 0.0, %v1225
      %v1227 = vpop.f32.mrb[0].mxu0
      %v1228 = vpop.f32.mrb[0].mxu0
      %v1229 = vadd.f32 0.0, %v1228
      %v1230 = vpop.f32.mrb[0].mxu0
      %1231 = vmatprep.mubr.bf16.mxu0 0
      %1232 = vmatmul.mubr.bf16.gmra.mrb[0].mxu0 %v1113
      %v1233 = vpop.f32.mrb[0].mxu0
      %v1234 = vadd.f32 0.0, %v1233
      %v1235 = vpop.f32.mrb[0].mxu0
      %v1236 = vpop.f32.mrb[0].mxu0
      %v1237 = vadd.f32 0.0, %v1236
      %v1238 = vpop.f32.mrb[0].mxu0
      %1239 = vdwg.mxu0
      %v1240 = vadd.f32 %v1062, %v1202
      %v1241 = vadd.f32 %v1063, %v1205
      %v1242 = vadd.f32 %v1064, %v1210
      %v1243 = vadd.f32 %v1065, %v1213
      %v1244 = vadd.f32 %v1066, %v1218
      %v1245 = vadd.f32 %v1067, %v1221
      %v1246 = vadd.f32 %v1068, %v1226
      %v1247 = vadd.f32 %v1069, %v1229
      %v1248 = vadd.f32 %v1070, %v1234
      %v1249 = vadd.f32 %v1071, %v1237
      %s1250 = scalar_lea.vmem %s4, 320
      %v1251 = vld [vmem:[%s1250] sm:$0xf]
      %v1252 = vld [vmem:[%s1250 + $0x4] sm:$0xf]
      %v1253 = vld [vmem:[%s1250 + $0x8] sm:$0xf]
      %v1254 = vld [vmem:[%s1250 + $0xc] sm:$0xf]
      %v1255 = vld [vmem:[%s1250 + $0x10] sm:$0xf]
      %v1256 = vld [vmem:[%s1250 + $0x14] sm:$0xf]
      %v1257 = vld [vmem:[%s1250 + $0x18] sm:$0xf]
      %v1258 = vld [vmem:[%s1250 + $0x1c] sm:$0xf]
      %v1259 = vld [vmem:[%s1250 + $0x20] sm:$0xf]
      %v1260 = vld [vmem:[%s1250 + $0x24] sm:$0xf]
      %v1261 = vld [vmem:[%s1250 + $0x28] sm:$0xf]
      %v1262 = vld [vmem:[%s1250 + $0x2c] sm:$0xf]
      %v1263 = vld [vmem:[%s1250 + $0x30] sm:$0xf]
      %v1264 = vld [vmem:[%s1250 + $0x34] sm:$0xf]
      %v1265 = vld [vmem:[%s1250 + $0x38] sm:$0xf]
      %v1266 = vld [vmem:[%s1250 + $0x3c] sm:$0xf]
      %v1268 = vunpack.c.l.b16 %v347
      %v1269 = vpack.c.b16 %v1268, %v1268
      %v1271 = vshrl.u32 %v931, 16
      %v1273 = vshll.u32 %v931, 16
      %v1275 = vrot.slane %v1273, 1
      %v1276 = vor.u32 %v1271, %v1275
      %v1278 = vshll.u32 %v932, 16
      %v1280 = vrot.slane %v1278, 1
      %v1281 = vsel %vm713, %v1276, %v1280
      %v1282 = vshrl.u32 %v932, 16
      %v1284 = vor.u32 %v1282, %v1280
      %v1286 = vshll.u32 %v933, 16
      %v1288 = vrot.slane %v1286, 1
      %v1289 = vsel %vm713, %v1284, %v1288
      %v1290 = vshrl.u32 %v933, 16
      %v1292 = vor.u32 %v1290, %v1288
      %v1294 = vshll.u32 %v934, 16
      %v1296 = vrot.slane %v1294, 1
      %v1297 = vsel %vm713, %v1292, %v1296
      %v1298 = vshrl.u32 %v934, 16
      %v1300 = vor.u32 %v1298, %v1296
      %v1302 = vshll.u32 %v935, 16
      %v1304 = vrot.slane %v1302, 1
      %v1305 = vsel %vm713, %v1300, %v1304
      %v1306 = vshrl.u32 %v935, 16
      %v1308 = vor.u32 %v1306, %v1304
      %v1310 = vshll.u32 %v1269, 16
      %v1312 = vrot.slane %v1310, 1
      %v1313 = vsel %vm713, %v1308, %v1312
      %v1335 = vunpack.c.l.b16 %v1251
      %v1336 = vunpack.c.l.b16 %v1252
      %v1337 = vunpack.c.l.b16 %v1253
      %v1338 = vunpack.c.l.b16 %v1254
      %v1339 = vunpack.c.l.b16 %v1255
      %v1340 = vunpack.c.l.b16 %v1256
      %v1341 = vunpack.c.l.b16 %v1257
      %v1342 = vunpack.c.l.b16 %v1258
      %v1343 = vunpack.c.l.b16 %v1259
      %v1344 = vunpack.c.l.b16 %v1260
      %v1345 = vunpack.c.l.b16 %v1261
      %v1346 = vunpack.c.l.b16 %v1262
      %v1347 = vunpack.c.l.b16 %v1263
      %v1348 = vunpack.c.l.b16 %v1264
      %v1349 = vunpack.c.l.b16 %v1265
      %v1350 = vunpack.c.l.b16 %v1266
      %v1351 = vpack.c.b16 %v1336, %v1335
      %v1352 = vpack.c.b16 %v1338, %v1337
      %v1353 = vpack.c.b16 %v1340, %v1339
      %v1354 = vpack.c.b16 %v1342, %v1341
      %v1355 = vpack.c.b16 %v1344, %v1343
      %v1356 = vpack.c.b16 %v1346, %v1345
      %v1357 = vpack.c.b16 %v1348, %v1347
      %v1358 = vpack.c.b16 %v1350, %v1349
      %1367 = vmatprep.subr.bf16.mxu0 0
      %1368 = vmatpush1.bf16.msra.mxu0 %v1351
      %1369 = vmatprep.subr.bf16.mxu0 0
      %1370 = vmatpush1.bf16.msra.mxu0 %v1352
      %1371 = vmatprep.subr.bf16.mxu0 0
      %1372 = vmatpush1.bf16.msra.mxu0 %v1353
      %1373 = vmatprep.subr.bf16.mxu0 0
      %1374 = vmatpush1.bf16.msra.mxu0 %v1354
      %1375 = vmatprep.subr.bf16.mxu0 0
      %1376 = vmatpush1.bf16.msra.mxu0 %v1355
      %1377 = vmatprep.subr.bf16.mxu0 0
      %1378 = vmatpush1.bf16.msra.mxu0 %v1356
      %1379 = vmatprep.subr.bf16.mxu0 0
      %1380 = vmatpush1.bf16.msra.mxu0 %v1357
      %1381 = vmatprep.subr.bf16.mxu0 0
      %1382 = vmatpush1.bf16.msra.mxu0 %v1358
      %1383 = vmatprep.subr.bf16.mxu0 0
      %1384 = vmatpush1.bf16.msra.mxu0 0
      %1385 = vmatprep.subr.bf16.mxu0 0
      %1386 = vmatpush1.bf16.msra.mxu0 0
      %1387 = vmatprep.subr.bf16.mxu0 0
      %1388 = vmatpush1.bf16.msra.mxu0 0
      %1389 = vmatprep.subr.bf16.mxu0 0
      %1390 = vmatpush1.bf16.msra.mxu0 0
      %1391 = vmatprep.subr.bf16.mxu0 0
      %1392 = vmatpush1.bf16.msra.mxu0 0
      %1393 = vmatprep.subr.bf16.mxu0 0
      %1394 = vmatpush1.bf16.msra.mxu0 0
      %1395 = vmatprep.subr.bf16.mxu0 0
      %1396 = vmatpush1.bf16.msra.mxu0 0
      %1397 = vmatprep.subr.bf16.mxu0 0
      %1398 = vmatpush1.bf16.msra.mxu0 0
      %1399 = vmatprep.mubr.bf16.mxu0 0
      %1400 = vmatmul.mubr.bf16.gmra.mrb[0].mxu0 %v1281
      %v1401 = vpop.f32.mrb[0].mxu0
      %v1402 = vadd.f32 0.0, %v1401
      %v1403 = vpop.f32.mrb[0].mxu0
      %v1404 = vpop.f32.mrb[0].mxu0
      %v1405 = vadd.f32 0.0, %v1404
      %v1406 = vpop.f32.mrb[0].mxu0
      %1407 = vmatprep.mubr.bf16.mxu0 0
      %1408 = vmatmul.mubr.bf16.gmra.mrb[0].mxu0 %v1289
      %v1409 = vpop.f32.mrb[0].mxu0
      %v1410 = vadd.f32 0.0, %v1409
      %v1411 = vpop.f32.mrb[0].mxu0
      %v1412 = vpop.f32.mrb[0].mxu0
      %v1413 = vadd.f32 0.0, %v1412
      %v1414 = vpop.f32.mrb[0].mxu0
      %1415 = vmatprep.mubr.bf16.mxu0 0
      %1416 = vmatmul.mubr.bf16.gmra.mrb[0].mxu0 %v1297
      %v1417 = vpop.f32.mrb[0].mxu0
      %v1418 = vadd.f32 0.0, %v1417
      %v1419 = vpop.f32.mrb[0].mxu0
      %v1420 = vpop.f32.mrb[0].mxu0
      %v1421 = vadd.f32 0.0, %v1420
      %v1422 = vpop.f32.mrb[0].mxu0
      %1423 = vmatprep.mubr.bf16.mxu0 0
      %1424 = vmatmul.mubr.bf16.gmra.mrb[0].mxu0 %v1305
      %v1425 = vpop.f32.mrb[0].mxu0
      %v1426 = vadd.f32 0.0, %v1425
      %v1427 = vpop.f32.mrb[0].mxu0
      %v1428 = vpop.f32.mrb[0].mxu0
      %v1429 = vadd.f32 0.0, %v1428
      %v1430 = vpop.f32.mrb[0].mxu0
      %1431 = vmatprep.mubr.bf16.mxu0 0
      %1432 = vmatmul.mubr.bf16.gmra.mrb[0].mxu0 %v1313
      %v1433 = vpop.f32.mrb[0].mxu0
      %v1434 = vadd.f32 0.0, %v1433
      %v1435 = vpop.f32.mrb[0].mxu0
      %v1436 = vpop.f32.mrb[0].mxu0
      %v1437 = vadd.f32 0.0, %v1436
      %v1438 = vpop.f32.mrb[0].mxu0
      %1439 = vdwg.mxu0
      %v1440 = vadd.f32 %v1240, %v1402
      %v1441 = vadd.f32 %v1241, %v1405
      %v1442 = vadd.f32 %v1242, %v1410
      %v1443 = vadd.f32 %v1243, %v1413
      %v1444 = vadd.f32 %v1244, %v1418
      %v1445 = vadd.f32 %v1245, %v1421
      %v1446 = vadd.f32 %v1246, %v1426
      %v1447 = vadd.f32 %v1247, %v1429
      %v1448 = vadd.f32 %v1248, %v1434
      %v1449 = vadd.f32 %v1249, %v1437
      %s1450 = scalar_lea.vmem %s4, 384
      %v1451 = vld [vmem:[%s1450] sm:$0xf]
      %v1452 = vld [vmem:[%s1450 + $0x4] sm:$0xf]
      %v1453 = vld [vmem:[%s1450 + $0x8] sm:$0xf]
      %v1454 = vld [vmem:[%s1450 + $0xc] sm:$0xf]
      %v1455 = vld [vmem:[%s1450 + $0x10] sm:$0xf]
      %v1456 = vld [vmem:[%s1450 + $0x14] sm:$0xf]
      %v1457 = vld [vmem:[%s1450 + $0x18] sm:$0xf]
      %v1458 = vld [vmem:[%s1450 + $0x1c] sm:$0xf]
      %v1459 = vld [vmem:[%s1450 + $0x20] sm:$0xf]
      %v1460 = vld [vmem:[%s1450 + $0x24] sm:$0xf]
      %v1461 = vld [vmem:[%s1450 + $0x28] sm:$0xf]
      %v1462 = vld [vmem:[%s1450 + $0x2c] sm:$0xf]
      %v1463 = vld [vmem:[%s1450 + $0x30] sm:$0xf]
      %v1464 = vld [vmem:[%s1450 + $0x34] sm:$0xf]
      %v1465 = vld [vmem:[%s1450 + $0x38] sm:$0xf]
      %v1466 = vld [vmem:[%s1450 + $0x3c] sm:$0xf]
      %v1468 = vunpack.c.l.b16 %v324
      %v1469 = vpack.c.b16 %v554, %v553
      %v1470 = vpack.c.b16 %v556, %v555
      %v1471 = vpack.c.b16 %v558, %v557
      %v1472 = vpack.c.b16 %v560, %v559
      %v1473 = vpack.c.b16 %v711, %v561
      %v1474 = vpack.c.b16 %v1468, %v1468
      %v1476 = vshrl.u32 %v1469, 16
      %v1478 = vshll.u32 %v1469, 16
      %v1480 = vrot.slane %v1478, 1
      %v1481 = vor.u32 %v1476, %v1480
      %v1483 = vshll.u32 %v1470, 16
      %v1485 = vrot.slane %v1483, 1
      %v1486 = vsel %vm713, %v1481, %v1485
      %v1487 = vshrl.u32 %v1470, 16
      %v1489 = vor.u32 %v1487, %v1485
      %v1491 = vshll.u32 %v1471, 16
      %v1493 = vrot.slane %v1491, 1
      %v1494 = vsel %vm713, %v1489, %v1493
      %v1495 = vshrl.u32 %v1471, 16
      %v1497 = vor.u32 %v1495, %v1493
      %v1499 = vshll.u32 %v1472, 16
      %v1501 = vrot.slane %v1499, 1
      %v1502 = vsel %vm713, %v1497, %v1501
      %v1503 = vshrl.u32 %v1472, 16
      %v1505 = vor.u32 %v1503, %v1501
      %v1507 = vshll.u32 %v1473, 16
      %v1509 = vrot.slane %v1507, 1
      %v1510 = vsel %vm713, %v1505, %v1509
      %v1511 = vshrl.u32 %v1473, 16
      %v1513 = vor.u32 %v1511, %v1509
      %v1515 = vshll.u32 %v1474, 16
      %v1517 = vrot.slane %v1515, 1
      %v1518 = vsel %vm713, %v1513, %v1517
      %v1540 = vunpack.c.l.b16 %v1451
      %v1541 = vunpack.c.l.b16 %v1452
      %v1542 = vunpack.c.l.b16 %v1453
      %v1543 = vunpack.c.l.b16 %v1454
      %v1544 = vunpack.c.l.b16 %v1455
      %v1545 = vunpack.c.l.b16 %v1456
      %v1546 = vunpack.c.l.b16 %v1457
      %v1547 = vunpack.c.l.b16 %v1458
      %v1548 = vunpack.c.l.b16 %v1459
      %v1549 = vunpack.c.l.b16 %v1460
      %v1550 = vunpack.c.l.b16 %v1461
      %v1551 = vunpack.c.l.b16 %v1462
      %v1552 = vunpack.c.l.b16 %v1463
      %v1553 = vunpack.c.l.b16 %v1464
      %v1554 = vunpack.c.l.b16 %v1465
      %v1555 = vunpack.c.l.b16 %v1466
      %v1556 = vpack.c.b16 %v1541, %v1540
      %v1557 = vpack.c.b16 %v1543, %v1542
      %v1558 = vpack.c.b16 %v1545, %v1544
      %v1559 = vpack.c.b16 %v1547, %v1546
      %v1560 = vpack.c.b16 %v1549, %v1548
      %v1561 = vpack.c.b16 %v1551, %v1550
      %v1562 = vpack.c.b16 %v1553, %v1552
      %v1563 = vpack.c.b16 %v1555, %v1554
      %1572 = vmatprep.subr.bf16.mxu0 0
      %1573 = vmatpush1.bf16.msra.mxu0 %v1556
      %1574 = vmatprep.subr.bf16.mxu0 0
      %1575 = vmatpush1.bf16.msra.mxu0 %v1557
      %1576 = vmatprep.subr.bf16.mxu0 0
      %1577 = vmatpush1.bf16.msra.mxu0 %v1558
      %1578 = vmatprep.subr.bf16.mxu0 0
      %1579 = vmatpush1.bf16.msra.mxu0 %v1559
      %1580 = vmatprep.subr.bf16.mxu0 0
      %1581 = vmatpush1.bf16.msra.mxu0 %v1560
      %1582 = vmatprep.subr.bf16.mxu0 0
      %1583 = vmatpush1.bf16.msra.mxu0 %v1561
      %1584 = vmatprep.subr.bf16.mxu0 0
      %1585 = vmatpush1.bf16.msra.mxu0 %v1562
      %1586 = vmatprep.subr.bf16.mxu0 0
      %1587 = vmatpush1.bf16.msra.mxu0 %v1563
      %1588 = vmatprep.subr.bf16.mxu0 0
      %1589 = vmatpush1.bf16.msra.mxu0 0
      %1590 = vmatprep.subr.bf16.mxu0 0
      %1591 = vmatpush1.bf16.msra.mxu0 0
      %1592 = vmatprep.subr.bf16.mxu0 0
      %1593 = vmatpush1.bf16.msra.mxu0 0
      %1594 = vmatprep.subr.bf16.mxu0 0
      %1595 = vmatpush1.bf16.msra.mxu0 0
      %1596 = vmatprep.subr.bf16.mxu0 0
      %1597 = vmatpush1.bf16.msra.mxu0 0
      %1598 = vmatprep.subr.bf16.mxu0 0
      %1599 = vmatpush1.bf16.msra.mxu0 0
      %1600 = vmatprep.subr.bf16.mxu0 0
      %1601 = vmatpush1.bf16.msra.mxu0 0
      %1602 = vmatprep.subr.bf16.mxu0 0
      %1603 = vmatpush1.bf16.msra.mxu0 0
      %1604 = vmatprep.mubr.bf16.mxu0 0
      %1605 = vmatmul.mubr.bf16.gmra.mrb[0].mxu0 %v1486
      %v1606 = vpop.f32.mrb[0].mxu0
      %v1607 = vadd.f32 0.0, %v1606
      %v1608 = vpop.f32.mrb[0].mxu0
      %v1609 = vpop.f32.mrb[0].mxu0
      %v1610 = vadd.f32 0.0, %v1609
      %v1611 = vpop.f32.mrb[0].mxu0
      %1612 = vmatprep.mubr.bf16.mxu0 0
      %1613 = vmatmul.mubr.bf16.gmra.mrb[0].mxu0 %v1494
      %v1614 = vpop.f32.mrb[0].mxu0
      %v1615 = vadd.f32 0.0, %v1614
      %v1616 = vpop.f32.mrb[0].mxu0
      %v1617 = vpop.f32.mrb[0].mxu0
      %v1618 = vadd.f32 0.0, %v1617
      %v1619 = vpop.f32.mrb[0].mxu0
      %1620 = vmatprep.mubr.bf16.mxu0 0
      %1621 = vmatmul.mubr.bf16.gmra.mrb[0].mxu0 %v1502
      %v1622 = vpop.f32.mrb[0].mxu0
      %v1623 = vadd.f32 0.0, %v1622
      %v1624 = vpop.f32.mrb[0].mxu0
      %v1625 = vpop.f32.mrb[0].mxu0
      %v1626 = vadd.f32 0.0, %v1625
      %v1627 = vpop.f32.mrb[0].mxu0
      %1628 = vmatprep.mubr.bf16.mxu0 0
      %1629 = vmatmul.mubr.bf16.gmra.mrb[0].mxu0 %v1510
      %v1630 = vpop.f32.mrb[0].mxu0
      %v1631 = vadd.f32 0.0, %v1630
      %v1632 = vpop.f32.mrb[0].mxu0
      %v1633 = vpop.f32.mrb[0].mxu0
      %v1634 = vadd.f32 0.0, %v1633
      %v1635 = vpop.f32.mrb[0].mxu0
      %1636 = vmatprep.mubr.bf16.mxu0 0
      %1637 = vmatmul.mubr.bf16.gmra.mrb[0].mxu0 %v1518
      %v1638 = vpop.f32.mrb[0].mxu0
      %v1639 = vadd.f32 0.0, %v1638
      %v1640 = vpop.f32.mrb[0].mxu0
      %v1641 = vpop.f32.mrb[0].mxu0
      %v1642 = vadd.f32 0.0, %v1641
      %v1643 = vpop.f32.mrb[0].mxu0
      %1644 = vdwg.mxu0
      %v1645 = vadd.f32 %v1440, %v1607
      %v1646 = vadd.f32 %v1441, %v1610
      %v1647 = vadd.f32 %v1442, %v1615
      %v1648 = vadd.f32 %v1443, %v1618
      %v1649 = vadd.f32 %v1444, %v1623
      %v1650 = vadd.f32 %v1445, %v1626
      %v1651 = vadd.f32 %v1446, %v1631
      %v1652 = vadd.f32 %v1447, %v1634
      %v1653 = vadd.f32 %v1448, %v1639
      %v1654 = vadd.f32 %v1449, %v1642
      %s1655 = scalar_lea.vmem %s4, 448
      %v1656 = vld [vmem:[%s1655] sm:$0xf]
      %v1657 = vld [vmem:[%s1655 + $0x4] sm:$0xf]
      %v1658 = vld [vmem:[%s1655 + $0x8] sm:$0xf]
      %v1659 = vld [vmem:[%s1655 + $0xc] sm:$0xf]
      %v1660 = vld [vmem:[%s1655 + $0x10] sm:$0xf]
      %v1661 = vld [vmem:[%s1655 + $0x14] sm:$0xf]
      %v1662 = vld [vmem:[%s1655 + $0x18] sm:$0xf]
      %v1663 = vld [vmem:[%s1655 + $0x1c] sm:$0xf]
      %v1664 = vld [vmem:[%s1655 + $0x20] sm:$0xf]
      %v1665 = vld [vmem:[%s1655 + $0x24] sm:$0xf]
      %v1666 = vld [vmem:[%s1655 + $0x28] sm:$0xf]
      %v1667 = vld [vmem:[%s1655 + $0x2c] sm:$0xf]
      %v1668 = vld [vmem:[%s1655 + $0x30] sm:$0xf]
      %v1669 = vld [vmem:[%s1655 + $0x34] sm:$0xf]
      %v1670 = vld [vmem:[%s1655 + $0x38] sm:$0xf]
      %v1671 = vld [vmem:[%s1655 + $0x3c] sm:$0xf]
      %v1674 = vunpack.c.l.b16 %v335
      %v1675 = vunpack.c.l.b16 %v336
      %v1676 = vpack.c.b16 %v403, %v402
      %v1677 = vpack.c.b16 %v405, %v404
      %v1678 = vpack.c.b16 %v407, %v406
      %v1679 = vpack.c.b16 %v409, %v408
      %v1680 = vpack.c.b16 %v1674, %v410
      %v1681 = vpack.c.b16 %v1675, %v1675
      %v1683 = vshrl.u32 %v1676, 16
      %v1685 = vshll.u32 %v1676, 16
      %v1687 = vrot.slane %v1685, 1
      %v1688 = vor.u32 %v1683, %v1687
      %v1690 = vshll.u32 %v1677, 16
      %v1692 = vrot.slane %v1690, 1
      %v1693 = vsel %vm713, %v1688, %v1692
      %v1694 = vshrl.u32 %v1677, 16
      %v1696 = vor.u32 %v1694, %v1692
      %v1698 = vshll.u32 %v1678, 16
      %v1700 = vrot.slane %v1698, 1
      %v1701 = vsel %vm713, %v1696, %v1700
      %v1702 = vshrl.u32 %v1678, 16
      %v1704 = vor.u32 %v1702, %v1700
      %v1706 = vshll.u32 %v1679, 16
      %v1708 = vrot.slane %v1706, 1
      %v1709 = vsel %vm713, %v1704, %v1708
      %v1710 = vshrl.u32 %v1679, 16
      %v1712 = vor.u32 %v1710, %v1708
      %v1714 = vshll.u32 %v1680, 16
      %v1716 = vrot.slane %v1714, 1
      %v1717 = vsel %vm713, %v1712, %v1716
      %v1718 = vshrl.u32 %v1680, 16
      %v1720 = vor.u32 %v1718, %v1716
      %v1722 = vshll.u32 %v1681, 16
      %v1724 = vrot.slane %v1722, 1
      %v1725 = vsel %vm713, %v1720, %v1724
      %v1747 = vunpack.c.l.b16 %v1656
      %v1748 = vunpack.c.l.b16 %v1657
      %v1749 = vunpack.c.l.b16 %v1658
      %v1750 = vunpack.c.l.b16 %v1659
      %v1751 = vunpack.c.l.b16 %v1660
      %v1752 = vunpack.c.l.b16 %v1661
      %v1753 = vunpack.c.l.b16 %v1662
      %v1754 = vunpack.c.l.b16 %v1663
      %v1755 = vunpack.c.l.b16 %v1664
      %v1756 = vunpack.c.l.b16 %v1665
      %v1757 = vunpack.c.l.b16 %v1666
      %v1758 = vunpack.c.l.b16 %v1667
      %v1759 = vunpack.c.l.b16 %v1668
      %v1760 = vunpack.c.l.b16 %v1669
      %v1761 = vunpack.c.l.b16 %v1670
      %v1762 = vunpack.c.l.b16 %v1671
      %v1763 = vpack.c.b16 %v1748, %v1747
      %v1764 = vpack.c.b16 %v1750, %v1749
      %v1765 = vpack.c.b16 %v1752, %v1751
      %v1766 = vpack.c.b16 %v1754, %v1753
      %v1767 = vpack.c.b16 %v1756, %v1755
      %v1768 = vpack.c.b16 %v1758, %v1757
      %v1769 = vpack.c.b16 %v1760, %v1759
      %v1770 = vpack.c.b16 %v1762, %v1761
      %1779 = vmatprep.subr.bf16.mxu0 0
      %1780 = vmatpush1.bf16.msra.mxu0 %v1763
      %1781 = vmatprep.subr.bf16.mxu0 0
      %1782 = vmatpush1.bf16.msra.mxu0 %v1764
      %1783 = vmatprep.subr.bf16.mxu0 0
      %1784 = vmatpush1.bf16.msra.mxu0 %v1765
      %1785 = vmatprep.subr.bf16.mxu0 0
      %1786 = vmatpush1.bf16.msra.mxu0 %v1766
      %1787 = vmatprep.subr.bf16.mxu0 0
      %1788 = vmatpush1.bf16.msra.mxu0 %v1767
      %1789 = vmatprep.subr.bf16.mxu0 0
      %1790 = vmatpush1.bf16.msra.mxu0 %v1768
      %1791 = vmatprep.subr.bf16.mxu0 0
      %1792 = vmatpush1.bf16.msra.mxu0 %v1769
      %1793 = vmatprep.subr.bf16.mxu0 0
      %1794 = vmatpush1.bf16.msra.mxu0 %v1770
      %1795 = vmatprep.subr.bf16.mxu0 0
      %1796 = vmatpush1.bf16.msra.mxu0 0
      %1797 = vmatprep.subr.bf16.mxu0 0
      %1798 = vmatpush1.bf16.msra.mxu0 0
      %1799 = vmatprep.subr.bf16.mxu0 0
      %1800 = vmatpush1.bf16.msra.mxu0 0
      %1801 = vmatprep.subr.bf16.mxu0 0
      %1802 = vmatpush1.bf16.msra.mxu0 0
      %1803 = vmatprep.subr.bf16.mxu0 0
      %1804 = vmatpush1.bf16.msra.mxu0 0
      %1805 = vmatprep.subr.bf16.mxu0 0
      %1806 = vmatpush1.bf16.msra.mxu0 0
      %1807 = vmatprep.subr.bf16.mxu0 0
      %1808 = vmatpush1.bf16.msra.mxu0 0
      %1809 = vmatprep.subr.bf16.mxu0 0
      %1810 = vmatpush1.bf16.msra.mxu0 0
      %1811 = vmatprep.mubr.bf16.mxu0 0
      %1812 = vmatmul.mubr.bf16.gmra.mrb[0].mxu0 %v1693
      %v1813 = vpop.f32.mrb[0].mxu0
      %v1814 = vadd.f32 0.0, %v1813
      %v1815 = vpop.f32.mrb[0].mxu0
      %v1816 = vpop.f32.mrb[0].mxu0
      %v1817 = vadd.f32 0.0, %v1816
      %v1818 = vpop.f32.mrb[0].mxu0
      %1819 = vmatprep.mubr.bf16.mxu0 0
      %1820 = vmatmul.mubr.bf16.gmra.mrb[0].mxu0 %v1701
      %v1821 = vpop.f32.mrb[0].mxu0
      %v1822 = vadd.f32 0.0, %v1821
      %v1823 = vpop.f32.mrb[0].mxu0
      %v1824 = vpop.f32.mrb[0].mxu0
      %v1825 = vadd.f32 0.0, %v1824
      %v1826 = vpop.f32.mrb[0].mxu0
      %1827 = vmatprep.mubr.bf16.mxu0 0
      %1828 = vmatmul.mubr.bf16.gmra.mrb[0].mxu0 %v1709
      %v1829 = vpop.f32.mrb[0].mxu0
      %v1830 = vadd.f32 0.0, %v1829
      %v1831 = vpop.f32.mrb[0].mxu0
      %v1832 = vpop.f32.mrb[0].mxu0
      %v1833 = vadd.f32 0.0, %v1832
      %v1834 = vpop.f32.mrb[0].mxu0
      %1835 = vmatprep.mubr.bf16.mxu0 0
      %1836 = vmatmul.mubr.bf16.gmra.mrb[0].mxu0 %v1717
      %v1837 = vpop.f32.mrb[0].mxu0
      %v1838 = vadd.f32 0.0, %v1837
      %v1839 = vpop.f32.mrb[0].mxu0
      %v1840 = vpop.f32.mrb[0].mxu0
      %v1841 = vadd.f32 0.0, %v1840
      %v1842 = vpop.f32.mrb[0].mxu0
      %1843 = vmatprep.mubr.bf16.mxu0 0
      %1844 = vmatmul.mubr.bf16.gmra.mrb[0].mxu0 %v1725
      %v1845 = vpop.f32.mrb[0].mxu0
      %v1846 = vadd.f32 0.0, %v1845
      %v1847 = vpop.f32.mrb[0].mxu0
      %v1848 = vpop.f32.mrb[0].mxu0
      %v1849 = vadd.f32 0.0, %v1848
      %v1850 = vpop.f32.mrb[0].mxu0
      %1851 = vdwg.mxu0
      %v1852 = vadd.f32 %v1645, %v1814
      %v1853 = vadd.f32 %v1646, %v1817
      %v1854 = vadd.f32 %v1647, %v1822
      %v1855 = vadd.f32 %v1648, %v1825
      %v1856 = vadd.f32 %v1649, %v1830
      %v1857 = vadd.f32 %v1650, %v1833
      %v1858 = vadd.f32 %v1651, %v1838
      %v1859 = vadd.f32 %v1652, %v1841
      %v1860 = vadd.f32 %v1653, %v1846
      %v1861 = vadd.f32 %v1654, %v1849
      %s1862 = scalar_lea.vmem %s4, 512
      %v1863 = vld [vmem:[%s1862] sm:$0xf]
      %v1864 = vld [vmem:[%s1862 + $0x4] sm:$0xf]
      %v1865 = vld [vmem:[%s1862 + $0x8] sm:$0xf]
      %v1866 = vld [vmem:[%s1862 + $0xc] sm:$0xf]
      %v1867 = vld [vmem:[%s1862 + $0x10] sm:$0xf]
      %v1868 = vld [vmem:[%s1862 + $0x14] sm:$0xf]
      %v1869 = vld [vmem:[%s1862 + $0x18] sm:$0xf]
      %v1870 = vld [vmem:[%s1862 + $0x1c] sm:$0xf]
      %v1871 = vld [vmem:[%s1862 + $0x20] sm:$0xf]
      %v1872 = vld [vmem:[%s1862 + $0x24] sm:$0xf]
      %v1873 = vld [vmem:[%s1862 + $0x28] sm:$0xf]
      %v1874 = vld [vmem:[%s1862 + $0x2c] sm:$0xf]
      %v1875 = vld [vmem:[%s1862 + $0x30] sm:$0xf]
      %v1876 = vld [vmem:[%s1862 + $0x34] sm:$0xf]
      %v1877 = vld [vmem:[%s1862 + $0x38] sm:$0xf]
      %v1878 = vld [vmem:[%s1862 + $0x3c] sm:$0xf]
      %vm1879 = vcmask 1046528
      %v1880 = vrot.slane %v1469, 1
      %v1881 = vrot.slane %v1470, 1
      %v1882 = vsel %vm1879, %v1880, %v1881
      %v1883 = vrot.slane %v1471, 1
      %v1884 = vsel %vm1879, %v1881, %v1883
      %v1885 = vrot.slane %v1472, 1
      %v1886 = vsel %vm1879, %v1883, %v1885
      %v1887 = vrot.slane %v1473, 1
      %v1888 = vsel %vm1879, %v1885, %v1887
      %v1889 = vrot.slane %v1474, 1
      %v1890 = vsel %vm1879, %v1887, %v1889
      %v1912 = vunpack.c.l.b16 %v1863
      %v1913 = vunpack.c.l.b16 %v1864
      %v1914 = vunpack.c.l.b16 %v1865
      %v1915 = vunpack.c.l.b16 %v1866
      %v1916 = vunpack.c.l.b16 %v1867
      %v1917 = vunpack.c.l.b16 %v1868
      %v1918 = vunpack.c.l.b16 %v1869
      %v1919 = vunpack.c.l.b16 %v1870
      %v1920 = vunpack.c.l.b16 %v1871
      %v1921 = vunpack.c.l.b16 %v1872
      %v1922 = vunpack.c.l.b16 %v1873
      %v1923 = vunpack.c.l.b16 %v1874
      %v1924 = vunpack.c.l.b16 %v1875
      %v1925 = vunpack.c.l.b16 %v1876
      %v1926 = vunpack.c.l.b16 %v1877
      %v1927 = vunpack.c.l.b16 %v1878
      %v1928 = vpack.c.b16 %v1913, %v1912
      %v1929 = vpack.c.b16 %v1915, %v1914
      %v1930 = vpack.c.b16 %v1917, %v1916
      %v1931 = vpack.c.b16 %v1919, %v1918
      %v1932 = vpack.c.b16 %v1921, %v1920
      %v1933 = vpack.c.b16 %v1923, %v1922
      %v1934 = vpack.c.b16 %v1925, %v1924
      %v1935 = vpack.c.b16 %v1927, %v1926
      %1944 = vmatprep.subr.bf16.mxu0 0
      %1945 = vmatpush1.bf16.msra.mxu0 %v1928
      %1946 = vmatprep.subr.bf16.mxu0 0
      %1947 = vmatpush1.bf16.msra.mxu0 %v1929
      %1948 = vmatprep.subr.bf16.mxu0 0
      %1949 = vmatpush1.bf16.msra.mxu0 %v1930
      %1950 = vmatprep.subr.bf16.mxu0 0
      %1951 = vmatpush1.bf16.msra.mxu0 %v1931
      %1952 = vmatprep.subr.bf16.mxu0 0
      %1953 = vmatpush1.bf16.msra.mxu0 %v1932
      %1954 = vmatprep.subr.bf16.mxu0 0
      %1955 = vmatpush1.bf16.msra.mxu0 %v1933
      %1956 = vmatprep.subr.bf16.mxu0 0
      %1957 = vmatpush1.bf16.msra.mxu0 %v1934
      %1958 = vmatprep.subr.bf16.mxu0 0
      %1959 = vmatpush1.bf16.msra.mxu0 %v1935
      %1960 = vmatprep.subr.bf16.mxu0 0
      %1961 = vmatpush1.bf16.msra.mxu0 0
      %1962 = vmatprep.subr.bf16.mxu0 0
      %1963 = vmatpush1.bf16.msra.mxu0 0
      %1964 = vmatprep.subr.bf16.mxu0 0
      %1965 = vmatpush1.bf16.msra.mxu0 0
      %1966 = vmatprep.subr.bf16.mxu0 0
      %1967 = vmatpush1.bf16.msra.mxu0 0
      %1968 = vmatprep.subr.bf16.mxu0 0
      %1969 = vmatpush1.bf16.msra.mxu0 0
      %1970 = vmatprep.subr.bf16.mxu0 0
      %1971 = vmatpush1.bf16.msra.mxu0 0
      %1972 = vmatprep.subr.bf16.mxu0 0
      %1973 = vmatpush1.bf16.msra.mxu0 0
      %1974 = vmatprep.subr.bf16.mxu0 0
      %1975 = vmatpush1.bf16.msra.mxu0 0
      %1976 = vmatprep.mubr.bf16.mxu0 0
      %1977 = vmatmul.mubr.bf16.gmra.mrb[0].mxu0 %v1882
      %v1978 = vpop.f32.mrb[0].mxu0
      %v1979 = vadd.f32 0.0, %v1978
      %v1980 = vpop.f32.mrb[0].mxu0
      %v1981 = vpop.f32.mrb[0].mxu0
      %v1982 = vadd.f32 0.0, %v1981
      %v1983 = vpop.f32.mrb[0].mxu0
      %1984 = vmatprep.mubr.bf16.mxu0 0
      %1985 = vmatmul.mubr.bf16.gmra.mrb[0].mxu0 %v1884
      %v1986 = vpop.f32.mrb[0].mxu0
      %v1987 = vadd.f32 0.0, %v1986
      %v1988 = vpop.f32.mrb[0].mxu0
      %v1989 = vpop.f32.mrb[0].mxu0
      %v1990 = vadd.f32 0.0, %v1989
      %v1991 = vpop.f32.mrb[0].mxu0
      %1992 = vmatprep.mubr.bf16.mxu0 0
      %1993 = vmatmul.mubr.bf16.gmra.mrb[0].mxu0 %v1886
      %v1994 = vpop.f32.mrb[0].mxu0
      %v1995 = vadd.f32 0.0, %v1994
      %v1996 = vpop.f32.mrb[0].mxu0
      %v1997 = vpop.f32.mrb[0].mxu0
      %v1998 = vadd.f32 0.0, %v1997
      %v1999 = vpop.f32.mrb[0].mxu0
      %2000 = vmatprep.mubr.bf16.mxu0 0
      %2001 = vmatmul.mubr.bf16.gmra.mrb[0].mxu0 %v1888
      %v2002 = vpop.f32.mrb[0].mxu0
      %v2003 = vadd.f32 0.0, %v2002
      %v2004 = vpop.f32.mrb[0].mxu0
      %v2005 = vpop.f32.mrb[0].mxu0
      %v2006 = vadd.f32 0.0, %v2005
      %v2007 = vpop.f32.mrb[0].mxu0
      %2008 = vmatprep.mubr.bf16.mxu0 0
      %2009 = vmatmul.mubr.bf16.gmra.mrb[0].mxu0 %v1890
      %v2010 = vpop.f32.mrb[0].mxu0
      %v2011 = vadd.f32 0.0, %v2010
      %v2012 = vpop.f32.mrb[0].mxu0
      %v2013 = vpop.f32.mrb[0].mxu0
      %v2014 = vadd.f32 0.0, %v2013
      %v2015 = vpop.f32.mrb[0].mxu0
      %2016 = vdwg.mxu0
      %v2017 = vadd.f32 %v1852, %v1979
      %v2018 = vadd.f32 %v1853, %v1982
      %v2019 = vadd.f32 %v1854, %v1987
      %v2020 = vadd.f32 %v1855, %v1990
      %v2021 = vadd.f32 %v1856, %v1995
      %v2022 = vadd.f32 %v1857, %v1998
      %v2023 = vadd.f32 %v1858, %v2003
      %v2024 = vadd.f32 %v1859, %v2006
      %v2025 = vadd.f32 %v1860, %v2011
      %v2026 = vadd.f32 %v1861, %v2014
      %v2027 = vld [vmem:[%s5] sm:$0x1]
      %v2029 = vlaneseq
      %v2030 = vshrl.u32 %v2029, 7
      %v2031 = vsub.s32 0, %v2030
      %v2032 = vrot.slane %v2027, %v2031
      %v2034 = vadd.f32 %v2017, %v2032
      %v2035 = vadd.f32 %v2018, %v2032
      %v2036 = vadd.f32 %v2019, %v2032
      %v2037 = vadd.f32 %v2020, %v2032
      %v2038 = vadd.f32 %v2021, %v2032
      %v2039 = vadd.f32 %v2022, %v2032
      %v2040 = vadd.f32 %v2023, %v2032
      %v2041 = vadd.f32 %v2024, %v2032
      %v2042 = vadd.f32 %v2025, %v2032
      %v2043 = vadd.f32 %v2026, %v2032
      %v2044 = vmax.f32 %v2034, 0.0
      %v2045 = vmax.f32 %v2035, 0.0
      %v2046 = vmax.f32 %v2036, 0.0
      %v2047 = vmax.f32 %v2037, 0.0
      %v2048 = vmax.f32 %v2038, 0.0
      %v2049 = vmax.f32 %v2039, 0.0
      %v2050 = vmax.f32 %v2040, 0.0
      %v2051 = vmax.f32 %v2041, 0.0
      %v2052 = vmax.f32 %v2042, 0.0
      %v2053 = vmax.f32 %v2043, 0.0
      %v2054 = vpack.c.bf16 %v2045, %v2044
      %v2055 = vpack.c.bf16 %v2047, %v2046
      %v2056 = vpack.c.bf16 %v2049, %v2048
      %v2057 = vpack.c.bf16 %v2051, %v2050
      %v2058 = vpack.c.bf16 %v2053, %v2052
      %v2064 = vunpack.c.l.b16 %v2054
      %v2065 = vunpack.c.h.b16 %v2054
      %v2066 = vunpack.c.l.b16 %v2055
      %v2067 = vunpack.c.h.b16 %v2055
      %v2068 = vunpack.c.l.b16 %v2056
      %v2069 = vunpack.c.h.b16 %v2056
      %v2070 = vunpack.c.l.b16 %v2057
      %v2071 = vunpack.c.h.b16 %v2057
      %v2072 = vunpack.c.l.b16 %v2058
      %v2073 = vunpack.c.h.b16 %v2058
      %v2074 = vpack.c.b16 %v2064, %v2064
      %v2075 = vpack.c.b16 %v2065, %v2065
      %v2076 = vpack.c.b16 %v2066, %v2066
      %v2077 = vpack.c.b16 %v2067, %v2067
      %v2078 = vpack.c.b16 %v2068, %v2068
      %v2079 = vpack.c.b16 %v2069, %v2069
      %v2080 = vpack.c.b16 %v2070, %v2070
      %v2081 = vpack.c.b16 %v2071, %v2071
      %v2082 = vpack.c.b16 %v2072, %v2072
      %v2083 = vpack.c.b16 %v2073, %v2073
      %2094 = vst [vmem:[%s311] sm:$0xf] %v2074
      %2095 = vst [vmem:[%s311 + $0x4] sm:$0xf] %v2075
      %2096 = vst [vmem:[%s311 + $0x8] sm:$0xf] %v2076
      %2097 = vst [vmem:[%s311 + $0xc] sm:$0xf] %v2077
      %2098 = vst [vmem:[%s311 + $0x10] sm:$0xf] %v2078
      %2099 = vst [vmem:[%s311 + $0x14] sm:$0xf] %v2079
      %2100 = vst [vmem:[%s311 + $0x18] sm:$0xf] %v2080
      %2101 = vst [vmem:[%s311 + $0x1c] sm:$0xf] %v2081
      %2102 = vst [vmem:[%s311 + $0x20] sm:$0xf] %v2082
      %2103 = vst [vmem:[%s311 + $0x24] sm:$0xf] %v2083
      %p2104 = scmp.lt.s32.totalorder %s17, 1
      %s2105 = scalar_select %p2104, %s17, 1
      %s2106 = smul.addr %s2105, 10
      %s2107 = smul.addr %s2106, 4
      %s2108 = scalar_lea.vmem %s6, %s2107
      // Predicated region
      $region45: #{encoder_cnn_forward.2} parent=43 // pred_check
        %p2109 = pneg %p181
      $region46: #{encoder_cnn_forward.2} parent=43 // pred_check_branch
        %2111 = sbr.rel (%p2109) target = $region48
      $region47: #{encoder_cnn_forward.2} parent=43 // pred_region
        _
      $region48: #{encoder_cnn_forward.2} parent=43 // pred_fallthru
        _
    $region44: #{encoder_cnn_forward.2} parent=5 // pred_fallthru
      _
    %p2112 = scmp.le.s32.totalorder 2, %s12
    // Predicated region
    $region49: #{encoder_cnn_forward.2} parent=5 // pred_check
      %p2113 = pneg %p2112
    $region50: #{encoder_cnn_forward.2} parent=5 // pred_check_branch
      %2115 = sbr.rel (%p2113) target = $region52
    $region51: #{encoder_cnn_forward.2} parent=5 // pred_region
      %s2116 = ssub.s32 %s12, 2
      // Predicated region
      $region53: #{encoder_cnn_forward.2} parent=51 // pred_check
        %p2117 = pneg %p187
      $region54: #{encoder_cnn_forward.2} parent=51 // pred_check_branch
        %2119 = sbr.rel (%p2117) target = $region56
      $region55: #{encoder_cnn_forward.2} parent=51 // pred_region
        %p2120 = scmp.lt.s32.totalorder %s18, 1
        %s2121 = scalar_select %p2120, %s18, 1
        %s2122 = smul.addr %s2121, 10
        %s2123 = smul.addr %s2122, 4
        %s2124 = scalar_lea.vmem %s6, %s2123
      $region56: #{encoder_cnn_forward.2} parent=51 // pred_fallthru
        _
    $region52: #{encoder_cnn_forward.2} parent=5 // pred_fallthru
      _
  $region6: #{encoder_cnn_forward.2} parent=0 // loop_footer
    %s16 = sadd.s32 1, %s12
  $region7: #{encoder_cnn_forward.2} parent=0 // loop_footer_branch
    %11 = sbr.rel target = $region3
  $region8: #{encoder_cnn_forward.2} parent=0 // loop_exit
    _

</llo_original>
